<compile_context>
chip_gen: v7x
topology: tpu7x:2x2x1
jax: 0.10.0
libtpu: 0.0.40
codegen_flags: <defaults>
</compile_context>

<pallas_src>
import functools

import jax
import jax.numpy as jnp
from jax.experimental import pallas as pl
from jax.experimental.pallas import tpu as pltpu

_SQRT_HALF = 0.7071067811865476


# ----------------------------------------------------------------------------
# In-kernel helpers (plain jnp ops -> VPU / EUP / XLU)
# ----------------------------------------------------------------------------
def _erf_poly(x):
    # Abramowitz & Stegun 7.1.26 rational approximation, |err| < 1.5e-7.
    # Keeps the exact (erf) GELU of torch.nn.GELU() on plain VPU/EUP ops.
    p = 0.3275911
    a1, a2, a3, a4, a5 = (0.254829592, -0.284496736, 1.421413741,
                          -1.453152027, 1.061405429)
    sgn = jnp.where(x >= 0.0, 1.0, -1.0)
    ax = jnp.abs(x)
    t = 1.0 / (1.0 + p * ax)      # exact divide (approx recip here would eat the tolerance)
    poly = ((((a5 * t + a4) * t + a3) * t + a2) * t + a1) * t
    return sgn * (1.0 - poly * jnp.exp(-ax * ax))


def _gelu_exact(x):
    return 0.5 * x * (1.0 + _erf_poly(x * _SQRT_HALF))


def _layernorm(x, gamma, beta, eps=1e-5):
    mu = jnp.mean(x, axis=-1, keepdims=True)
    xc = x - mu
    var = jnp.mean(xc * xc, axis=-1, keepdims=True)
    return xc * jax.lax.rsqrt(var + eps) * gamma + beta


# ----------------------------------------------------------------------------
# Fused kernel: dwconv+res+LN1 -> QKV -> region attention -> out proj -> LN2
#               -> MLP1(+res) -> LN3 -> MLP2(+res).   grid = (B,).
# ----------------------------------------------------------------------------
# Packed small-operand slab row layout (width = max(C, 4D)):
#   rows 0..8  : depthwise 3x3 filter (row 3*dy+dx, width C)
#   row  9     : dw bias (C)         rows 10,11 : ln1 gamma/beta (C)
#   rows 12-15 : bq, bk, bv, bo (D)  rows 16,17 : ln2 gamma/beta (D)
#   row  18    : b1a (4D)  row 19 : b1b (D)   rows 20,21 : ln3 gamma/beta (D)
#   row  22    : b2a (4D)  row 23 : b2b (D)
def _attention_block_kernel(xp_ref, vec_ref, rid_r_ref, rid_c_ref, padc_ref,
                            wq_ref, wk_ref, wv_ref, wo_ref,
                            w1a_ref, w1b_ref, w2a_ref, w2b_ref,
                            o_ref, *, H, W, C, D, pad):
    f32 = jnp.float32

    # ---- packed small operands: one DMA instead of ~16 tiny BlockSpecs ----
    vecs = vec_ref[...]
    dw_w = vecs[0:9, :C]
    dw_b = vecs[9:10, :C]
    ln1_g = vecs[10:11, :C]
    ln1_b = vecs[11:12, :C]
    bq = vecs[12:13, :D]
    bk = vecs[13:14, :D]
    bv = vecs[14:15, :D]
    bo = vecs[15:16, :D]
    ln2_g = vecs[16:17, :D]
    ln2_b = vecs[17:18, :D]
    b1a = vecs[18:19, :4 * D]
    b1b = vecs[19:20, :D]
    ln3_g = vecs[20:21, :D]
    ln3_b = vecs[21:22, :D]
    b2a = vecs[22:23, :4 * D]
    b2b = vecs[23:24, :D]

    # ---- depthwise 3x3 conv (padding=1, groups=C) + residual + LayerNorm1 ----
    xpt = xp_ref[0]                                     # (H+2, W+2, C), single ref load
    conv = None
    for dy in range(3):
        for dx in range(3):
            tap = xpt[dy:dy + H, dx:dx + W, :] * dw_w[3 * dy + dx:3 * dy + dx + 1, :]
            conv = tap if conv is None else conv + tap
    y = conv + dw_b + xpt[1:1 + H, 1:1 + W, :]          # conv + bias + residual
    x = _layernorm(y.reshape(H * W, C), ln1_g, ln1_b)   # (N, C)

    wq = wq_ref[...]; wk = wk_ref[...]; wv = wv_ref[...]; wo = wo_ref[...]
    w1a = w1a_ref[...]; w1b = w1b_ref[...]; w2a = w2a_ref[...]; w2b = w2b_ref[...]

    def mm(a, w, b):
        # MXU matmul with f32 accumulation; operand cast to the (static) weight dtype.
        return jnp.dot(a.astype(w.dtype), w, preferred_element_type=f32) + b

    # ---- BRA: QKV projections + per-region softmax attention + output proj ----
    q = mm(x, wq, bq)                                   # (N, D); padded queries are
    kk = mm(x, wk, bk)                                  # discarded anyway -> never built
    v = mm(x, wv, bv)

    s = jax.lax.dot_general(q.astype(wq.dtype), kk.astype(wq.dtype),
                            (((1,), (1,)), ((), ())),
                            preferred_element_type=f32)  # (N, N) = Q @ K^T
    m = jnp.max(s, axis=-1, keepdims=True)               # any per-row shift is valid
    if pad:
        m = jnp.maximum(m, 0.0)                          # padded keys score exactly 0
    e = jnp.exp(s - m)
    # Block-diagonal region mask from O(N) iota-id operands (no (N,N) HBM constant).
    blockmask = (rid_r_ref[...] == rid_c_ref[...]).astype(f32)   # (N, N)
    denom = jnp.dot(e, blockmask, preferred_element_type=f32)    # per-region softmax sums
    # Zero-valued padded keys each contribute exp(0 - m) to their region's denominator.
    denom = denom + jnp.exp(-m) * padc_ref[...]
    p = e / jnp.maximum(denom, 1e-30)                    # exact divide + NaN-guard
    attn = jnp.dot(p, v, preferred_element_type=f32)     # (N, D); padded values are zero

    # ---- output projection + LayerNorm2 ----
    y = _layernorm(mm(attn, wo, bo), ln2_g, ln2_b)

    # ---- MLP1 + residual, LayerNorm3, MLP2 + residual ----
    h = _gelu_exact(mm(y, w1a, b1a))
    y = mm(h, w1b, b1b) + y
    y = _layernorm(y, ln3_g, ln3_b)
    h = _gelu_exact(mm(y, w2a, b2a))
    y = mm(h, w2b, b2b) + y

    o_ref[0] = y.astype(o_ref.dtype)


def attention_block_forward(x, params, num_heads: int = 8, k: int = 5,
                            compute_dtype=jnp.float32):
    del num_heads                     # stored by the PyTorch module, unused in forward()
    B, H, W, C = x.shape
    D = params["wq"].shape[1]
    N = H * W
    pad = (k - N % k) % k
    rs = (N + pad) // k
    wmax = max(C, 4 * D)

    xp = jnp.pad(x.astype(jnp.float32), ((0, 0), (1, 1), (1, 1), (0, 0)))

    def row(v):
        v = jnp.asarray(v, jnp.float32).reshape(1, -1)
        return jnp.pad(v, ((0, 0), (0, wmax - v.shape[1])))

    vecs = jnp.concatenate(
        [jnp.pad(params["dw_w"].astype(jnp.float32).reshape(9, C),
                 ((0, 0), (0, wmax - C)))]
        + [row(params[n]) for n in
           ("dw_b", "ln1_g", "ln1_b", "bq", "bk", "bv", "bo",
            "ln2_g", "ln2_b", "b1a", "b1b", "ln3_g", "ln3_b", "b2a", "b2b")],
        axis=0)                                          # (24, wmax)

    rid = jnp.arange(N, dtype=jnp.int32) // rs           # region id of each real token
    rid_r = rid.reshape(N, 1)
    rid_c = rid.reshape(1, N)
    pad_ids = jnp.arange(N, N + pad, dtype=jnp.int32) // rs
    pad_per_region = jnp.zeros((k,), jnp.float32).at[pad_ids].add(1.0)
    padc = pad_per_region[rid].reshape(1, N)             # padded keys in each col's region

    wmats = [params[n].astype(compute_dtype) for n in
             ("wq", "wk", "wv", "wo", "w1a", "w1b", "w2a", "w2b")]

    const = lambda a: pl.BlockSpec(a.shape, lambda b: (0,) * a.ndim)
    kern = functools.partial(_attention_block_kernel, H=H, W=W, C=C, D=D, pad=pad)

    out = pl.pallas_call(
        kern,
        out_shape=jax.ShapeDtypeStruct((B, N, D), jnp.float32),
        grid=(B,),
        in_specs=[pl.BlockSpec((1, H + 2, W + 2, C), lambda b: (b, 0, 0, 0)),
                  const(vecs), const(rid_r), const(rid_c), const(padc)]
                 + [const(w) for w in wmats],
        out_specs=pl.BlockSpec((1, N, D), lambda b: (b, 0, 0)),
        compiler_params=pltpu.CompilerParams(dimension_semantics=("parallel",)),
    )(xp, vecs, rid_r, rid_c, padc, *wmats)
    return out.reshape(B, H, W, D)


# ----------------------------------------------------------------------------
# Pure-JAX reference (mirrors the PyTorch forward line by line).
# ----------------------------------------------------------------------------
def _gelu_ref(x):
    return 0.5 * x * (1.0 + jax.lax.erf(x * _SQRT_HALF))


def _ln_ref(x, g, b, eps=1e-5):
    mu = x.mean(-1, keepdims=True)
    var = ((x - mu) ** 2).mean(-1, keepdims=True)
    return (x - mu) / jnp.sqrt(var + eps) * g + b


def _bra_ref(x, params, k):
    B, N, _ = x.shape
    Q = x @ params["wq"] + params["bq"]
    K = x @ params["wk"] + params["bk"]
    V = x @ params["wv"] + params["bv"]
    n = N
    rem = N % k
    if rem:
        pad = k - rem
        Q = jnp.pad(Q, ((0, 0), (0, pad), (0, 0)))
        K = jnp.pad(K, ((0, 0), (0, pad), (0, 0)))
        V = jnp.pad(V, ((0, 0), (0, pad), (0, 0)))
        n = N + pad
    rs = n // k
    Kg = K.reshape(B, k, rs, -1)
    A = jax.nn.softmax(jnp.einsum("bqd,bgkd->bqgk", Q, Kg), axis=-1)
    Vg = V.reshape(B, k, rs, -1)
    out = jnp.einsum("bqgk,bgkd->bqd", A, Vg)[:, :N]
    return out @ params["wo"] + params["bo"]


def attention_block_reference(x, params, k=5):
    B, H, W, C = x.shape
    xp = jnp.pad(x, ((0, 0), (1, 1), (1, 1), (0, 0)))
    conv = jnp.zeros_like(x)
    for dy in range(3):
        for dx in range(3):
            conv = conv + xp[:, dy:dy + H, dx:dx + W, :] * params["dw_w"][dy, dx]
    y = conv + params["dw_b"] + x
    y = _ln_ref(y, params["ln1_g"], params["ln1_b"])
    z = _bra_ref(y.reshape(B, H * W, C), params, k)
    z = _ln_ref(z, params["ln2_g"], params["ln2_b"])
    z = _gelu_ref(z @ params["w1a"] + params["b1a"]) @ params["w1b"] + params["b1b"] + z
    z = _ln_ref(z, params["ln3_g"], params["ln3_b"])
    z = _gelu_ref(z @ params["w2a"] + params["b2a"]) @ params["w2b"] + params["b2b"] + z
    return z.reshape(B, H, W, -1)


if __name__ == "__main__":
    B, H, W = 2, 8, 8
    C, D = 32, 32            # input_dim, output_dim
    num_heads, k = 8, 5      # N = 64 -> pad 1 -> region_size = 13 (exercises padding)

    root = jax.random.PRNGKey(0)
    ks = iter(jax.random.split(root, 32))

    def init_linear(fan_in, fan_out):
        bound = 1.0 / (fan_in ** 0.5)
        w = jax.random.uniform(next(ks), (fan_in, fan_out), jnp.float32, -bound, bound)
        b = jax.random.uniform(next(ks), (fan_out,), jnp.float32, -bound, bound)
        return w, b

    def init_ln(dim):
        g = 1.0 + 0.05 * jax.random.normal(next(ks), (dim,), jnp.float32)
        b = 0.05 * jax.random.normal(next(ks), (dim,), jnp.float32)
        return g, b

    params = {}
    params["dw_w"] = jax.random.uniform(next(ks), (3, 3, C), jnp.float32, -1.0 / 3.0, 1.0 / 3.0)
    params["dw_b"] = jax.random.uniform(next(ks), (C,), jnp.float32, -1.0 / 3.0, 1.0 / 3.0)
    params["ln1_g"], params["ln1_b"] = init_ln(C)
    params["wq"], params["bq"] = init_linear(C, D)
    params["wk"], params["bk"] = init_linear(C, D)
    params["wv"], params["bv"] = init_linear(C, D)
    params["wo"], params["bo"] = init_linear(D, D)
    params["ln2_g"], params["ln2_b"] = init_ln(D)
    params["w1a"], params["b1a"] = init_linear(D, 4 * D)
    params["w1b"], params["b1b"] = init_linear(4 * D, D)
    params["ln3_g"], params["ln3_b"] = init_ln(D)
    params["w2a"], params["b2a"] = init_linear(D, 4 * D)
    params["w2b"], params["b2b"] = init_linear(4 * D, D)

    x = jax.random.normal(next(ks), (B, H, W, C), jnp.float32)

    fwd = jax.jit(functools.partial(attention_block_forward, num_heads=num_heads, k=k))
    out = jax.block_until_ready(fwd(x, params))

    ref = attention_block_reference(x, params, k=k)
    assert out.shape == (B, H, W, D), out.shape
    max_err = float(jnp.max(jnp.abs(out - ref)))
    assert jnp.allclose(out, ref, atol=2e-3, rtol=2e-3), max_err

    print("KERNEL_OK")
</pallas_src>

<mosaic_0001>
module attributes {stable_mosaic.version = 11 : i64} {
  func.func @_attention_block_kernel(%arg0: i32, %arg1: memref<1x10x10x32xf32, #tpu.memory_space<vmem>>, %arg2: memref<24x128xf32, #tpu.memory_space<vmem>>, %arg3: memref<64x1xi32, #tpu.memory_space<vmem>>, %arg4: memref<1x64xi32, #tpu.memory_space<vmem>>, %arg5: memref<1x64xf32, #tpu.memory_space<vmem>>, %arg6: memref<32x32xf32, #tpu.memory_space<vmem>>, %arg7: memref<32x32xf32, #tpu.memory_space<vmem>>, %arg8: memref<32x32xf32, #tpu.memory_space<vmem>>, %arg9: memref<32x32xf32, #tpu.memory_space<vmem>>, %arg10: memref<32x128xf32, #tpu.memory_space<vmem>>, %arg11: memref<128x32xf32, #tpu.memory_space<vmem>>, %arg12: memref<32x128xf32, #tpu.memory_space<vmem>>, %arg13: memref<128x32xf32, #tpu.memory_space<vmem>>, %arg14: memref<1x64x32xf32, #tpu.memory_space<vmem>>) attributes {dimension_semantics = [#tpu.dimension_semantics<parallel>], iteration_bounds = array<i64: 2>, scalar_prefetch = 0 : i64, scratch_operands = 0 : i64, tpu.core_type = #tpu.core_type<tc>, window_params = [{transform_indices = @transform_0, window_bounds = array<i64: 1, 10, 10, 32>}, {pipeline_mode = #tpu.pipeline_mode<synchronous>, transform_indices = @transform_1, window_bounds = array<i64: 24, 128>}, {pipeline_mode = #tpu.pipeline_mode<synchronous>, transform_indices = @transform_2, window_bounds = array<i64: 64, 1>}, {pipeline_mode = #tpu.pipeline_mode<synchronous>, transform_indices = @transform_3, window_bounds = array<i64: 1, 64>}, {pipeline_mode = #tpu.pipeline_mode<synchronous>, transform_indices = @transform_4, window_bounds = array<i64: 1, 64>}, {pipeline_mode = #tpu.pipeline_mode<synchronous>, transform_indices = @transform_5, window_bounds = array<i64: 32, 32>}, {pipeline_mode = #tpu.pipeline_mode<synchronous>, transform_indices = @transform_6, window_bounds = array<i64: 32, 32>}, {pipeline_mode = #tpu.pipeline_mode<synchronous>, transform_indices = @transform_7, window_bounds = array<i64: 32, 32>}, {pipeline_mode = #tpu.pipeline_mode<synchronous>, transform_indices = @transform_8, window_bounds = array<i64: 32, 32>}, {pipeline_mode = #tpu.pipeline_mode<synchronous>, transform_indices = @transform_9, window_bounds = array<i64: 32, 128>}, {pipeline_mode = #tpu.pipeline_mode<synchronous>, transform_indices = @transform_10, window_bounds = array<i64: 128, 32>}, {pipeline_mode = #tpu.pipeline_mode<synchronous>, transform_indices = @transform_11, window_bounds = array<i64: 32, 128>}, {pipeline_mode = #tpu.pipeline_mode<synchronous>, transform_indices = @transform_12, window_bounds = array<i64: 128, 32>}, {transform_indices = @transform_13, window_bounds = array<i64: 1, 64, 32>}]} {
    %c0 = arith.constant 0 : index
    %c0_0 = arith.constant 0 : index
    %0 = vector.load %arg2[%c0, %c0_0] : memref<24x128xf32, #tpu.memory_space<vmem>>, vector<24x128xf32>
    %1 = vector.extract_strided_slice %0 {offsets = [0, 0], sizes = [9, 32], strides = [1, 1]} : vector<24x128xf32> to vector<9x32xf32>
    %2 = vector.extract_strided_slice %0 {offsets = [9, 0], sizes = [1, 32], strides = [1, 1]} : vector<24x128xf32> to vector<1x32xf32>
    %3 = vector.extract_strided_slice %0 {offsets = [10, 0], sizes = [1, 32], strides = [1, 1]} : vector<24x128xf32> to vector<1x32xf32>
    %4 = vector.extract_strided_slice %0 {offsets = [11, 0], sizes = [1, 32], strides = [1, 1]} : vector<24x128xf32> to vector<1x32xf32>
    %5 = vector.extract_strided_slice %0 {offsets = [12, 0], sizes = [1, 32], strides = [1, 1]} : vector<24x128xf32> to vector<1x32xf32>
    %6 = vector.extract_strided_slice %0 {offsets = [13, 0], sizes = [1, 32], strides = [1, 1]} : vector<24x128xf32> to vector<1x32xf32>
    %7 = vector.extract_strided_slice %0 {offsets = [14, 0], sizes = [1, 32], strides = [1, 1]} : vector<24x128xf32> to vector<1x32xf32>
    %8 = vector.extract_strided_slice %0 {offsets = [15, 0], sizes = [1, 32], strides = [1, 1]} : vector<24x128xf32> to vector<1x32xf32>
    %9 = vector.extract_strided_slice %0 {offsets = [16, 0], sizes = [1, 32], strides = [1, 1]} : vector<24x128xf32> to vector<1x32xf32>
    %10 = vector.extract_strided_slice %0 {offsets = [17, 0], sizes = [1, 32], strides = [1, 1]} : vector<24x128xf32> to vector<1x32xf32>
    %11 = vector.extract_strided_slice %0 {offsets = [18, 0], sizes = [1, 128], strides = [1, 1]} : vector<24x128xf32> to vector<1x128xf32>
    %12 = vector.extract_strided_slice %0 {offsets = [19, 0], sizes = [1, 32], strides = [1, 1]} : vector<24x128xf32> to vector<1x32xf32>
    %13 = vector.extract_strided_slice %0 {offsets = [20, 0], sizes = [1, 32], strides = [1, 1]} : vector<24x128xf32> to vector<1x32xf32>
    %14 = vector.extract_strided_slice %0 {offsets = [21, 0], sizes = [1, 32], strides = [1, 1]} : vector<24x128xf32> to vector<1x32xf32>
    %15 = vector.extract_strided_slice %0 {offsets = [22, 0], sizes = [1, 128], strides = [1, 1]} : vector<24x128xf32> to vector<1x128xf32>
    %16 = vector.extract_strided_slice %0 {offsets = [23, 0], sizes = [1, 32], strides = [1, 1]} : vector<24x128xf32> to vector<1x32xf32>
    %c0_1 = arith.constant 0 : index
    %c0_2 = arith.constant 0 : index
    %c0_3 = arith.constant 0 : index
    %c0_4 = arith.constant 0 : index
    %17 = vector.load %arg1[%c0_1, %c0_2, %c0_3, %c0_4] : memref<1x10x10x32xf32, #tpu.memory_space<vmem>>, vector<1x10x10x32xf32>
    %18 = vector.shape_cast %17 : vector<1x10x10x32xf32> to vector<10x10x32xf32>
    %19 = vector.extract_strided_slice %18 {offsets = [0, 0, 0], sizes = [8, 8, 32], strides = [1, 1, 1]} : vector<10x10x32xf32> to vector<8x8x32xf32>
    %20 = vector.extract_strided_slice %1 {offsets = [0, 0], sizes = [1, 32], strides = [1, 1]} : vector<9x32xf32> to vector<1x32xf32>
    %21 = vector.shape_cast %20 : vector<1x32xf32> to vector<1x1x32xf32>
    %22 = vector.broadcast %21 : vector<1x1x32xf32> to vector<8x8x32xf32>
    %23 = arith.mulf %19, %22 : vector<8x8x32xf32>
    %24 = vector.extract_strided_slice %18 {offsets = [0, 1, 0], sizes = [8, 8, 32], strides = [1, 1, 1]} : vector<10x10x32xf32> to vector<8x8x32xf32>
    %25 = vector.extract_strided_slice %1 {offsets = [1, 0], sizes = [1, 32], strides = [1, 1]} : vector<9x32xf32> to vector<1x32xf32>
    %26 = vector.shape_cast %25 : vector<1x32xf32> to vector<1x1x32xf32>
    %27 = vector.broadcast %26 : vector<1x1x32xf32> to vector<8x8x32xf32>
    %28 = arith.mulf %24, %27 : vector<8x8x32xf32>
    %29 = arith.addf %23, %28 : vector<8x8x32xf32>
    %30 = vector.extract_strided_slice %18 {offsets = [0, 2, 0], sizes = [8, 8, 32], strides = [1, 1, 1]} : vector<10x10x32xf32> to vector<8x8x32xf32>
    %31 = vector.extract_strided_slice %1 {offsets = [2, 0], sizes = [1, 32], strides = [1, 1]} : vector<9x32xf32> to vector<1x32xf32>
    %32 = vector.shape_cast %31 : vector<1x32xf32> to vector<1x1x32xf32>
    %33 = vector.broadcast %32 : vector<1x1x32xf32> to vector<8x8x32xf32>
    %34 = arith.mulf %30, %33 : vector<8x8x32xf32>
    %35 = arith.addf %29, %34 : vector<8x8x32xf32>
    %36 = vector.extract_strided_slice %18 {offsets = [1, 0, 0], sizes = [8, 8, 32], strides = [1, 1, 1]} : vector<10x10x32xf32> to vector<8x8x32xf32>
    %37 = vector.extract_strided_slice %1 {offsets = [3, 0], sizes = [1, 32], strides = [1, 1]} : vector<9x32xf32> to vector<1x32xf32>
    %38 = vector.shape_cast %37 : vector<1x32xf32> to vector<1x1x32xf32>
    %39 = vector.broadcast %38 : vector<1x1x32xf32> to vector<8x8x32xf32>
    %40 = arith.mulf %36, %39 : vector<8x8x32xf32>
    %41 = arith.addf %35, %40 : vector<8x8x32xf32>
    %42 = vector.extract_strided_slice %18 {offsets = [1, 1, 0], sizes = [8, 8, 32], strides = [1, 1, 1]} : vector<10x10x32xf32> to vector<8x8x32xf32>
    %43 = vector.extract_strided_slice %1 {offsets = [4, 0], sizes = [1, 32], strides = [1, 1]} : vector<9x32xf32> to vector<1x32xf32>
    %44 = vector.shape_cast %43 : vector<1x32xf32> to vector<1x1x32xf32>
    %45 = vector.broadcast %44 : vector<1x1x32xf32> to vector<8x8x32xf32>
    %46 = arith.mulf %42, %45 : vector<8x8x32xf32>
    %47 = arith.addf %41, %46 : vector<8x8x32xf32>
    %48 = vector.extract_strided_slice %18 {offsets = [1, 2, 0], sizes = [8, 8, 32], strides = [1, 1, 1]} : vector<10x10x32xf32> to vector<8x8x32xf32>
    %49 = vector.extract_strided_slice %1 {offsets = [5, 0], sizes = [1, 32], strides = [1, 1]} : vector<9x32xf32> to vector<1x32xf32>
    %50 = vector.shape_cast %49 : vector<1x32xf32> to vector<1x1x32xf32>
    %51 = vector.broadcast %50 : vector<1x1x32xf32> to vector<8x8x32xf32>
    %52 = arith.mulf %48, %51 : vector<8x8x32xf32>
    %53 = arith.addf %47, %52 : vector<8x8x32xf32>
    %54 = vector.extract_strided_slice %18 {offsets = [2, 0, 0], sizes = [8, 8, 32], strides = [1, 1, 1]} : vector<10x10x32xf32> to vector<8x8x32xf32>
    %55 = vector.extract_strided_slice %1 {offsets = [6, 0], sizes = [1, 32], strides = [1, 1]} : vector<9x32xf32> to vector<1x32xf32>
    %56 = vector.shape_cast %55 : vector<1x32xf32> to vector<1x1x32xf32>
    %57 = vector.broadcast %56 : vector<1x1x32xf32> to vector<8x8x32xf32>
    %58 = arith.mulf %54, %57 : vector<8x8x32xf32>
    %59 = arith.addf %53, %58 : vector<8x8x32xf32>
    %60 = vector.extract_strided_slice %18 {offsets = [2, 1, 0], sizes = [8, 8, 32], strides = [1, 1, 1]} : vector<10x10x32xf32> to vector<8x8x32xf32>
    %61 = vector.extract_strided_slice %1 {offsets = [7, 0], sizes = [1, 32], strides = [1, 1]} : vector<9x32xf32> to vector<1x32xf32>
    %62 = vector.shape_cast %61 : vector<1x32xf32> to vector<1x1x32xf32>
    %63 = vector.broadcast %62 : vector<1x1x32xf32> to vector<8x8x32xf32>
    %64 = arith.mulf %60, %63 : vector<8x8x32xf32>
    %65 = arith.addf %59, %64 : vector<8x8x32xf32>
    %66 = vector.extract_strided_slice %18 {offsets = [2, 2, 0], sizes = [8, 8, 32], strides = [1, 1, 1]} : vector<10x10x32xf32> to vector<8x8x32xf32>
    %67 = vector.extract_strided_slice %1 {offsets = [8, 0], sizes = [1, 32], strides = [1, 1]} : vector<9x32xf32> to vector<1x32xf32>
    %68 = vector.shape_cast %67 : vector<1x32xf32> to vector<1x1x32xf32>
    %69 = vector.broadcast %68 : vector<1x1x32xf32> to vector<8x8x32xf32>
    %70 = arith.mulf %66, %69 : vector<8x8x32xf32>
    %71 = arith.addf %65, %70 : vector<8x8x32xf32>
    %72 = vector.shape_cast %2 : vector<1x32xf32> to vector<1x1x32xf32>
    %73 = vector.broadcast %72 : vector<1x1x32xf32> to vector<8x8x32xf32>
    %74 = arith.addf %71, %73 : vector<8x8x32xf32>
    %75 = vector.extract_strided_slice %18 {offsets = [1, 1, 0], sizes = [8, 8, 32], strides = [1, 1, 1]} : vector<10x10x32xf32> to vector<8x8x32xf32>
    %76 = arith.addf %74, %75 : vector<8x8x32xf32>
    %77 = vector.shape_cast %76 : vector<8x8x32xf32> to vector<64x32xf32>
    %cst = arith.constant dense<0.000000e+00> : vector<64xf32>
    %78 = vector.multi_reduction <add>, %77, %cst [1] : vector<64x32xf32> to vector<64xf32>
    %79 = vector.shape_cast %78 : vector<64xf32> to vector<64x1xf32>
    %cst_5 = arith.constant 3.200000e+01 : f32
    %80 = vector.broadcast %cst_5 : f32 to vector<64x1xf32>
    %81 = arith.divf %79, %80 : vector<64x1xf32>
    %82 = vector.broadcast %81 : vector<64x1xf32> to vector<64x32xf32>
    %83 = arith.subf %77, %82 : vector<64x32xf32>
    %84 = arith.mulf %83, %83 : vector<64x32xf32>
    %cst_6 = arith.constant dense<0.000000e+00> : vector<64xf32>
    %85 = vector.multi_reduction <add>, %84, %cst_6 [1] : vector<64x32xf32> to vector<64xf32>
    %86 = vector.shape_cast %85 : vector<64xf32> to vector<64x1xf32>
    %cst_7 = arith.constant 3.200000e+01 : f32
    %87 = vector.broadcast %cst_7 : f32 to vector<64x1xf32>
    %88 = arith.divf %86, %87 : vector<64x1xf32>
    %cst_8 = arith.constant 9.99999974E-6 : f32
    %89 = vector.broadcast %cst_8 : f32 to vector<64x1xf32>
    %90 = arith.addf %88, %89 : vector<64x1xf32>
    %91 = math.rsqrt %90 : vector<64x1xf32>
    %92 = vector.broadcast %91 : vector<64x1xf32> to vector<64x32xf32>
    %93 = arith.mulf %83, %92 : vector<64x32xf32>
    %94 = vector.broadcast %3 : vector<1x32xf32> to vector<64x32xf32>
    %95 = arith.mulf %93, %94 : vector<64x32xf32>
    %96 = vector.broadcast %4 : vector<1x32xf32> to vector<64x32xf32>
    %97 = arith.addf %95, %96 : vector<64x32xf32>
    %c0_9 = arith.constant 0 : index
    %c0_10 = arith.constant 0 : index
    %98 = vector.load %arg6[%c0_9, %c0_10] : memref<32x32xf32, #tpu.memory_space<vmem>>, vector<32x32xf32>
    %c0_11 = arith.constant 0 : index
    %c0_12 = arith.constant 0 : index
    %99 = vector.load %arg7[%c0_11, %c0_12] : memref<32x32xf32, #tpu.memory_space<vmem>>, vector<32x32xf32>
    %c0_13 = arith.constant 0 : index
    %c0_14 = arith.constant 0 : index
    %100 = vector.load %arg8[%c0_13, %c0_14] : memref<32x32xf32, #tpu.memory_space<vmem>>, vector<32x32xf32>
    %c0_15 = arith.constant 0 : index
    %c0_16 = arith.constant 0 : index
    %101 = vector.load %arg9[%c0_15, %c0_16] : memref<32x32xf32, #tpu.memory_space<vmem>>, vector<32x32xf32>
    %c0_17 = arith.constant 0 : index
    %c0_18 = arith.constant 0 : index
    %102 = vector.load %arg10[%c0_17, %c0_18] : memref<32x128xf32, #tpu.memory_space<vmem>>, vector<32x128xf32>
    %c0_19 = arith.constant 0 : index
    %c0_20 = arith.constant 0 : index
    %103 = vector.load %arg11[%c0_19, %c0_20] : memref<128x32xf32, #tpu.memory_space<vmem>>, vector<128x32xf32>
    %c0_21 = arith.constant 0 : index
    %c0_22 = arith.constant 0 : index
    %104 = vector.load %arg12[%c0_21, %c0_22] : memref<32x128xf32, #tpu.memory_space<vmem>>, vector<32x128xf32>
    %c0_23 = arith.constant 0 : index
    %c0_24 = arith.constant 0 : index
    %105 = vector.load %arg13[%c0_23, %c0_24] : memref<128x32xf32, #tpu.memory_space<vmem>>, vector<128x32xf32>
    %cst_25 = arith.constant dense<0.000000e+00> : vector<64x32xf32>
    %106 = tpu.matmul %97, %98, %cst_25 {dimension_numbers = #tpu.dot_dimension_numbers<[1], [0], [0], [1], [0, 0, 1, 1], [], []>} : vector<64x32xf32>, vector<32x32xf32>, vector<64x32xf32> -> vector<64x32xf32>
    %107 = vector.broadcast %5 : vector<1x32xf32> to vector<64x32xf32>
    %108 = arith.addf %106, %107 : vector<64x32xf32>
    %cst_26 = arith.constant dense<0.000000e+00> : vector<64x32xf32>
    %109 = tpu.matmul %97, %99, %cst_26 {dimension_numbers = #tpu.dot_dimension_numbers<[1], [0], [0], [1], [0, 0, 1, 1], [], []>} : vector<64x32xf32>, vector<32x32xf32>, vector<64x32xf32> -> vector<64x32xf32>
    %110 = vector.broadcast %6 : vector<1x32xf32> to vector<64x32xf32>
    %111 = arith.addf %109, %110 : vector<64x32xf32>
    %cst_27 = arith.constant dense<0.000000e+00> : vector<64x32xf32>
    %112 = tpu.matmul %97, %100, %cst_27 {dimension_numbers = #tpu.dot_dimension_numbers<[1], [0], [0], [1], [0, 0, 1, 1], [], []>} : vector<64x32xf32>, vector<32x32xf32>, vector<64x32xf32> -> vector<64x32xf32>
    %113 = vector.broadcast %7 : vector<1x32xf32> to vector<64x32xf32>
    %114 = arith.addf %112, %113 : vector<64x32xf32>
    %cst_28 = arith.constant dense<0.000000e+00> : vector<64x64xf32>
    %115 = tpu.matmul %108, %111, %cst_28 {dimension_numbers = #tpu.dot_dimension_numbers<[1], [1], [0], [0], [0, 0, 1, 0], [], []>} : vector<64x32xf32>, vector<64x32xf32>, vector<64x64xf32> -> vector<64x64xf32>
    %cst_29 = arith.constant dense<0xFF800000> : vector<64xf32>
    %116 = vector.multi_reduction <maximumf>, %115, %cst_29 [1] : vector<64x64xf32> to vector<64xf32>
    %117 = vector.shape_cast %116 : vector<64xf32> to vector<64x1xf32>
    %cst_30 = arith.constant 0.000000e+00 : f32
    %118 = vector.broadcast %cst_30 : f32 to vector<64x1xf32>
    %119 = arith.maximumf %117, %118 : vector<64x1xf32>
    %120 = vector.broadcast %119 : vector<64x1xf32> to vector<64x64xf32>
    %121 = arith.subf %115, %120 : vector<64x64xf32>
    %122 = math.exp %121 : vector<64x64xf32>
    %c0_31 = arith.constant 0 : index
    %c0_32 = arith.constant 0 : index
    %123 = vector.load %arg3[%c0_31, %c0_32] : memref<64x1xi32, #tpu.memory_space<vmem>>, vector<64x1xi32>
    %c0_33 = arith.constant 0 : index
    %c0_34 = arith.constant 0 : index
    %124 = vector.load %arg4[%c0_33, %c0_34] : memref<1x64xi32, #tpu.memory_space<vmem>>, vector<1x64xi32>
    %125 = vector.broadcast %123 : vector<64x1xi32> to vector<64x64xi32>
    %126 = vector.broadcast %124 : vector<1x64xi32> to vector<64x64xi32>
    %127 = arith.cmpi eq, %125, %126 : vector<64x64xi32>
    %128 = arith.extui %127 : vector<64x64xi1> to vector<64x64xi32>
    %129 = arith.sitofp %128 : vector<64x64xi32> to vector<64x64xf32>
    %cst_35 = arith.constant dense<0.000000e+00> : vector<64x64xf32>
    %130 = tpu.matmul %122, %129, %cst_35 {dimension_numbers = #tpu.dot_dimension_numbers<[1], [0], [0], [1], [0, 0, 1, 1], [], []>} : vector<64x64xf32>, vector<64x64xf32>, vector<64x64xf32> -> vector<64x64xf32>
    %cst_36 = arith.constant 0.000000e+00 : f32
    %131 = vector.broadcast %cst_36 : f32 to vector<64x1xf32>
    %132 = arith.subf %131, %119 : vector<64x1xf32>
    %133 = math.exp %132 : vector<64x1xf32>
    %c0_37 = arith.constant 0 : index
    %c0_38 = arith.constant 0 : index
    %134 = vector.load %arg5[%c0_37, %c0_38] : memref<1x64xf32, #tpu.memory_space<vmem>>, vector<1x64xf32>
    %135 = vector.broadcast %133 : vector<64x1xf32> to vector<64x64xf32>
    %136 = vector.broadcast %134 : vector<1x64xf32> to vector<64x64xf32>
    %137 = arith.mulf %135, %136 : vector<64x64xf32>
    %138 = arith.addf %130, %137 : vector<64x64xf32>
    %cst_39 = arith.constant 1.000000e-30 : f32
    %139 = vector.broadcast %cst_39 : f32 to vector<64x64xf32>
    %140 = arith.maximumf %138, %139 : vector<64x64xf32>
    %141 = arith.divf %122, %140 : vector<64x64xf32>
    %cst_40 = arith.constant dense<0.000000e+00> : vector<64x32xf32>
    %142 = tpu.matmul %141, %114, %cst_40 {dimension_numbers = #tpu.dot_dimension_numbers<[1], [0], [0], [1], [0, 0, 1, 1], [], []>} : vector<64x64xf32>, vector<64x32xf32>, vector<64x32xf32> -> vector<64x32xf32>
    %cst_41 = arith.constant dense<0.000000e+00> : vector<64x32xf32>
    %143 = tpu.matmul %142, %101, %cst_41 {dimension_numbers = #tpu.dot_dimension_numbers<[1], [0], [0], [1], [0, 0, 1, 1], [], []>} : vector<64x32xf32>, vector<32x32xf32>, vector<64x32xf32> -> vector<64x32xf32>
    %144 = vector.broadcast %8 : vector<1x32xf32> to vector<64x32xf32>
    %145 = arith.addf %143, %144 : vector<64x32xf32>
    %cst_42 = arith.constant dense<0.000000e+00> : vector<64xf32>
    %146 = vector.multi_reduction <add>, %145, %cst_42 [1] : vector<64x32xf32> to vector<64xf32>
    %147 = vector.shape_cast %146 : vector<64xf32> to vector<64x1xf32>
    %cst_43 = arith.constant 3.200000e+01 : f32
    %148 = vector.broadcast %cst_43 : f32 to vector<64x1xf32>
    %149 = arith.divf %147, %148 : vector<64x1xf32>
    %150 = vector.broadcast %149 : vector<64x1xf32> to vector<64x32xf32>
    %151 = arith.subf %145, %150 : vector<64x32xf32>
    %152 = arith.mulf %151, %151 : vector<64x32xf32>
    %cst_44 = arith.constant dense<0.000000e+00> : vector<64xf32>
    %153 = vector.multi_reduction <add>, %152, %cst_44 [1] : vector<64x32xf32> to vector<64xf32>
    %154 = vector.shape_cast %153 : vector<64xf32> to vector<64x1xf32>
    %cst_45 = arith.constant 3.200000e+01 : f32
    %155 = vector.broadcast %cst_45 : f32 to vector<64x1xf32>
    %156 = arith.divf %154, %155 : vector<64x1xf32>
    %cst_46 = arith.constant 9.99999974E-6 : f32
    %157 = vector.broadcast %cst_46 : f32 to vector<64x1xf32>
    %158 = arith.addf %156, %157 : vector<64x1xf32>
    %159 = math.rsqrt %158 : vector<64x1xf32>
    %160 = vector.broadcast %159 : vector<64x1xf32> to vector<64x32xf32>
    %161 = arith.mulf %151, %160 : vector<64x32xf32>
    %162 = vector.broadcast %9 : vector<1x32xf32> to vector<64x32xf32>
    %163 = arith.mulf %161, %162 : vector<64x32xf32>
    %164 = vector.broadcast %10 : vector<1x32xf32> to vector<64x32xf32>
    %165 = arith.addf %163, %164 : vector<64x32xf32>
    %cst_47 = arith.constant dense<0.000000e+00> : vector<64x128xf32>
    %166 = tpu.matmul %165, %102, %cst_47 {dimension_numbers = #tpu.dot_dimension_numbers<[1], [0], [0], [1], [0, 0, 1, 1], [], []>} : vector<64x32xf32>, vector<32x128xf32>, vector<64x128xf32> -> vector<64x128xf32>
    %167 = vector.broadcast %11 : vector<1x128xf32> to vector<64x128xf32>
    %168 = arith.addf %166, %167 : vector<64x128xf32>
    %cst_48 = arith.constant 5.000000e-01 : f32
    %169 = vector.broadcast %cst_48 : f32 to vector<64x128xf32>
    %170 = arith.mulf %169, %168 : vector<64x128xf32>
    %cst_49 = arith.constant 0.707106769 : f32
    %171 = vector.broadcast %cst_49 : f32 to vector<64x128xf32>
    %172 = arith.mulf %168, %171 : vector<64x128xf32>
    %cst_50 = arith.constant 0.000000e+00 : f32
    %173 = vector.broadcast %cst_50 : f32 to vector<64x128xf32>
    %174 = arith.cmpf oge, %172, %173 : vector<64x128xf32>
    %cst_51 = arith.constant 1.000000e+00 : f32
    %cst_52 = arith.constant -1.000000e+00 : f32
    %175 = vector.broadcast %cst_51 : f32 to vector<64x128xf32>
    %176 = vector.broadcast %cst_52 : f32 to vector<64x128xf32>
    %177 = arith.select %174, %175, %176 : vector<64x128xi1>, vector<64x128xf32>
    %178 = math.absf %172 : vector<64x128xf32>
    %cst_53 = arith.constant 0.327591091 : f32
    %179 = vector.broadcast %cst_53 : f32 to vector<64x128xf32>
    %180 = arith.mulf %179, %178 : vector<64x128xf32>
    %cst_54 = arith.constant 1.000000e+00 : f32
    %181 = vector.broadcast %cst_54 : f32 to vector<64x128xf32>
    %182 = arith.addf %181, %180 : vector<64x128xf32>
    %cst_55 = arith.constant 1.000000e+00 : f32
    %183 = vector.broadcast %cst_55 : f32 to vector<64x128xf32>
    %184 = arith.divf %183, %182 : vector<64x128xf32>
    %cst_56 = arith.constant 1.06140542 : f32
    %185 = vector.broadcast %cst_56 : f32 to vector<64x128xf32>
    %186 = arith.mulf %185, %184 : vector<64x128xf32>
    %cst_57 = arith.constant -1.45315206 : f32
    %187 = vector.broadcast %cst_57 : f32 to vector<64x128xf32>
    %188 = arith.addf %186, %187 : vector<64x128xf32>
    %189 = arith.mulf %188, %184 : vector<64x128xf32>
    %cst_58 = arith.constant 1.42141378 : f32
    %190 = vector.broadcast %cst_58 : f32 to vector<64x128xf32>
    %191 = arith.addf %189, %190 : vector<64x128xf32>
    %192 = arith.mulf %191, %184 : vector<64x128xf32>
    %cst_59 = arith.constant -0.284496725 : f32
    %193 = vector.broadcast %cst_59 : f32 to vector<64x128xf32>
    %194 = arith.addf %192, %193 : vector<64x128xf32>
    %195 = arith.mulf %194, %184 : vector<64x128xf32>
    %cst_60 = arith.constant 0.254829586 : f32
    %196 = vector.broadcast %cst_60 : f32 to vector<64x128xf32>
    %197 = arith.addf %195, %196 : vector<64x128xf32>
    %198 = arith.mulf %197, %184 : vector<64x128xf32>
    %cst_61 = arith.constant 0.000000e+00 : f32
    %199 = vector.broadcast %cst_61 : f32 to vector<64x128xf32>
    %200 = arith.subf %199, %178 : vector<64x128xf32>
    %201 = arith.mulf %200, %178 : vector<64x128xf32>
    %202 = math.exp %201 : vector<64x128xf32>
    %203 = arith.mulf %198, %202 : vector<64x128xf32>
    %cst_62 = arith.constant 1.000000e+00 : f32
    %204 = vector.broadcast %cst_62 : f32 to vector<64x128xf32>
    %205 = arith.subf %204, %203 : vector<64x128xf32>
    %206 = arith.mulf %177, %205 : vector<64x128xf32>
    %cst_63 = arith.constant 1.000000e+00 : f32
    %207 = vector.broadcast %cst_63 : f32 to vector<64x128xf32>
    %208 = arith.addf %207, %206 : vector<64x128xf32>
    %209 = arith.mulf %170, %208 : vector<64x128xf32>
    %cst_64 = arith.constant dense<0.000000e+00> : vector<64x32xf32>
    %210 = tpu.matmul %209, %103, %cst_64 {dimension_numbers = #tpu.dot_dimension_numbers<[1], [0], [0], [1], [0, 0, 1, 1], [], []>} : vector<64x128xf32>, vector<128x32xf32>, vector<64x32xf32> -> vector<64x32xf32>
    %211 = vector.broadcast %12 : vector<1x32xf32> to vector<64x32xf32>
    %212 = arith.addf %210, %211 : vector<64x32xf32>
    %213 = arith.addf %212, %165 : vector<64x32xf32>
    %cst_65 = arith.constant dense<0.000000e+00> : vector<64xf32>
    %214 = vector.multi_reduction <add>, %213, %cst_65 [1] : vector<64x32xf32> to vector<64xf32>
    %215 = vector.shape_cast %214 : vector<64xf32> to vector<64x1xf32>
    %cst_66 = arith.constant 3.200000e+01 : f32
    %216 = vector.broadcast %cst_66 : f32 to vector<64x1xf32>
    %217 = arith.divf %215, %216 : vector<64x1xf32>
    %218 = vector.broadcast %217 : vector<64x1xf32> to vector<64x32xf32>
    %219 = arith.subf %213, %218 : vector<64x32xf32>
    %220 = arith.mulf %219, %219 : vector<64x32xf32>
    %cst_67 = arith.constant dense<0.000000e+00> : vector<64xf32>
    %221 = vector.multi_reduction <add>, %220, %cst_67 [1] : vector<64x32xf32> to vector<64xf32>
    %222 = vector.shape_cast %221 : vector<64xf32> to vector<64x1xf32>
    %cst_68 = arith.constant 3.200000e+01 : f32
    %223 = vector.broadcast %cst_68 : f32 to vector<64x1xf32>
    %224 = arith.divf %222, %223 : vector<64x1xf32>
    %cst_69 = arith.constant 9.99999974E-6 : f32
    %225 = vector.broadcast %cst_69 : f32 to vector<64x1xf32>
    %226 = arith.addf %224, %225 : vector<64x1xf32>
    %227 = math.rsqrt %226 : vector<64x1xf32>
    %228 = vector.broadcast %227 : vector<64x1xf32> to vector<64x32xf32>
    %229 = arith.mulf %219, %228 : vector<64x32xf32>
    %230 = vector.broadcast %13 : vector<1x32xf32> to vector<64x32xf32>
    %231 = arith.mulf %229, %230 : vector<64x32xf32>
    %232 = vector.broadcast %14 : vector<1x32xf32> to vector<64x32xf32>
    %233 = arith.addf %231, %232 : vector<64x32xf32>
    %cst_70 = arith.constant dense<0.000000e+00> : vector<64x128xf32>
    %234 = tpu.matmul %233, %104, %cst_70 {dimension_numbers = #tpu.dot_dimension_numbers<[1], [0], [0], [1], [0, 0, 1, 1], [], []>} : vector<64x32xf32>, vector<32x128xf32>, vector<64x128xf32> -> vector<64x128xf32>
    %235 = vector.broadcast %15 : vector<1x128xf32> to vector<64x128xf32>
    %236 = arith.addf %234, %235 : vector<64x128xf32>
    %cst_71 = arith.constant 5.000000e-01 : f32
    %237 = vector.broadcast %cst_71 : f32 to vector<64x128xf32>
    %238 = arith.mulf %237, %236 : vector<64x128xf32>
    %cst_72 = arith.constant 0.707106769 : f32
    %239 = vector.broadcast %cst_72 : f32 to vector<64x128xf32>
    %240 = arith.mulf %236, %239 : vector<64x128xf32>
    %cst_73 = arith.constant 0.000000e+00 : f32
    %241 = vector.broadcast %cst_73 : f32 to vector<64x128xf32>
    %242 = arith.cmpf oge, %240, %241 : vector<64x128xf32>
    %cst_74 = arith.constant 1.000000e+00 : f32
    %cst_75 = arith.constant -1.000000e+00 : f32
    %243 = vector.broadcast %cst_74 : f32 to vector<64x128xf32>
    %244 = vector.broadcast %cst_75 : f32 to vector<64x128xf32>
    %245 = arith.select %242, %243, %244 : vector<64x128xi1>, vector<64x128xf32>
    %246 = math.absf %240 : vector<64x128xf32>
    %cst_76 = arith.constant 0.327591091 : f32
    %247 = vector.broadcast %cst_76 : f32 to vector<64x128xf32>
    %248 = arith.mulf %247, %246 : vector<64x128xf32>
    %cst_77 = arith.constant 1.000000e+00 : f32
    %249 = vector.broadcast %cst_77 : f32 to vector<64x128xf32>
    %250 = arith.addf %249, %248 : vector<64x128xf32>
    %cst_78 = arith.constant 1.000000e+00 : f32
    %251 = vector.broadcast %cst_78 : f32 to vector<64x128xf32>
    %252 = arith.divf %251, %250 : vector<64x128xf32>
    %cst_79 = arith.constant 1.06140542 : f32
    %253 = vector.broadcast %cst_79 : f32 to vector<64x128xf32>
    %254 = arith.mulf %253, %252 : vector<64x128xf32>
    %cst_80 = arith.constant -1.45315206 : f32
    %255 = vector.broadcast %cst_80 : f32 to vector<64x128xf32>
    %256 = arith.addf %254, %255 : vector<64x128xf32>
    %257 = arith.mulf %256, %252 : vector<64x128xf32>
    %cst_81 = arith.constant 1.42141378 : f32
    %258 = vector.broadcast %cst_81 : f32 to vector<64x128xf32>
    %259 = arith.addf %257, %258 : vector<64x128xf32>
    %260 = arith.mulf %259, %252 : vector<64x128xf32>
    %cst_82 = arith.constant -0.284496725 : f32
    %261 = vector.broadcast %cst_82 : f32 to vector<64x128xf32>
    %262 = arith.addf %260, %261 : vector<64x128xf32>
    %263 = arith.mulf %262, %252 : vector<64x128xf32>
    %cst_83 = arith.constant 0.254829586 : f32
    %264 = vector.broadcast %cst_83 : f32 to vector<64x128xf32>
    %265 = arith.addf %263, %264 : vector<64x128xf32>
    %266 = arith.mulf %265, %252 : vector<64x128xf32>
    %cst_84 = arith.constant 0.000000e+00 : f32
    %267 = vector.broadcast %cst_84 : f32 to vector<64x128xf32>
    %268 = arith.subf %267, %246 : vector<64x128xf32>
    %269 = arith.mulf %268, %246 : vector<64x128xf32>
    %270 = math.exp %269 : vector<64x128xf32>
    %271 = arith.mulf %266, %270 : vector<64x128xf32>
    %cst_85 = arith.constant 1.000000e+00 : f32
    %272 = vector.broadcast %cst_85 : f32 to vector<64x128xf32>
    %273 = arith.subf %272, %271 : vector<64x128xf32>
    %274 = arith.mulf %245, %273 : vector<64x128xf32>
    %cst_86 = arith.constant 1.000000e+00 : f32
    %275 = vector.broadcast %cst_86 : f32 to vector<64x128xf32>
    %276 = arith.addf %275, %274 : vector<64x128xf32>
    %277 = arith.mulf %238, %276 : vector<64x128xf32>
    %cst_87 = arith.constant dense<0.000000e+00> : vector<64x32xf32>
    %278 = tpu.matmul %277, %105, %cst_87 {dimension_numbers = #tpu.dot_dimension_numbers<[1], [0], [0], [1], [0, 0, 1, 1], [], []>} : vector<64x128xf32>, vector<128x32xf32>, vector<64x32xf32> -> vector<64x32xf32>
    %279 = vector.broadcast %16 : vector<1x32xf32> to vector<64x32xf32>
    %280 = arith.addf %278, %279 : vector<64x32xf32>
    %281 = arith.addf %280, %233 : vector<64x32xf32>
    %c0_88 = arith.constant 0 : index
    %c0_89 = arith.constant 0 : index
    %c0_90 = arith.constant 0 : index
    %282 = vector.load %arg14[%c0_88, %c0_89, %c0_90] : memref<1x64x32xf32, #tpu.memory_space<vmem>>, vector<1x64x32xf32>
    %283 = vector.shape_cast %282 : vector<1x64x32xf32> to vector<64x32xf32>
    %284 = vector.shape_cast %281 : vector<64x32xf32> to vector<1x64x32xf32>
    tpu.vector_store %arg14[%c0_88, %c0_89, %c0_90], %284 {strides = array<i32>} : memref<1x64x32xf32, #tpu.memory_space<vmem>>, vector<1x64x32xf32>,
    return
  }
  func.func @transform_0(%arg0: i32) -> (i32, i32, i32, i32) {
    %c0_i32 = arith.constant 0 : i32
    %c0_i32_0 = arith.constant 0 : i32
    %c0_i32_1 = arith.constant 0 : i32
    %c0_i32_2 = arith.constant 0 : i32
    return %arg0, %c0_i32, %c0_i32_0, %c0_i32_1 : i32, i32, i32, i32
  }
  func.func @transform_1(%arg0: i32) -> (i32, i32) {
    %c0_i32 = arith.constant 0 : i32
    %c0_i32_0 = arith.constant 0 : i32
    %c0_i32_1 = arith.constant 0 : i32
    return %c0_i32, %c0_i32_0 : i32, i32
  }
  func.func @transform_2(%arg0: i32) -> (i32, i32) {
    %c0_i32 = arith.constant 0 : i32
    %c0_i32_0 = arith.constant 0 : i32
    %c0_i32_1 = arith.constant 0 : i32
    return %c0_i32, %c0_i32_0 : i32, i32
  }
  func.func @transform_3(%arg0: i32) -> (i32, i32) {
    %c0_i32 = arith.constant 0 : i32
    %c0_i32_0 = arith.constant 0 : i32
    %c0_i32_1 = arith.constant 0 : i32
    return %c0_i32, %c0_i32_0 : i32, i32
  }
  func.func @transform_4(%arg0: i32) -> (i32, i32) {
    %c0_i32 = arith.constant 0 : i32
    %c0_i32_0 = arith.constant 0 : i32
    %c0_i32_1 = arith.constant 0 : i32
    return %c0_i32, %c0_i32_0 : i32, i32
  }
  func.func @transform_5(%arg0: i32) -> (i32, i32) {
    %c0_i32 = arith.constant 0 : i32
    %c0_i32_0 = arith.constant 0 : i32
    %c0_i32_1 = arith.constant 0 : i32
    return %c0_i32, %c0_i32_0 : i32, i32
  }
  func.func @transform_6(%arg0: i32) -> (i32, i32) {
    %c0_i32 = arith.constant 0 : i32
    %c0_i32_0 = arith.constant 0 : i32
    %c0_i32_1 = arith.constant 0 : i32
    return %c0_i32, %c0_i32_0 : i32, i32
  }
  func.func @transform_7(%arg0: i32) -> (i32, i32) {
    %c0_i32 = arith.constant 0 : i32
    %c0_i32_0 = arith.constant 0 : i32
    %c0_i32_1 = arith.constant 0 : i32
    return %c0_i32, %c0_i32_0 : i32, i32
  }
  func.func @transform_8(%arg0: i32) -> (i32, i32) {
    %c0_i32 = arith.constant 0 : i32
    %c0_i32_0 = arith.constant 0 : i32
    %c0_i32_1 = arith.constant 0 : i32
    return %c0_i32, %c0_i32_0 : i32, i32
  }
  func.func @transform_9(%arg0: i32) -> (i32, i32) {
    %c0_i32 = arith.constant 0 : i32
    %c0_i32_0 = arith.constant 0 : i32
    %c0_i32_1 = arith.constant 0 : i32
    return %c0_i32, %c0_i32_0 : i32, i32
  }
  func.func @transform_10(%arg0: i32) -> (i32, i32) {
    %c0_i32 = arith.constant 0 : i32
    %c0_i32_0 = arith.constant 0 : i32
    %c0_i32_1 = arith.constant 0 : i32
    return %c0_i32, %c0_i32_0 : i32, i32
  }
  func.func @transform_11(%arg0: i32) -> (i32, i32) {
    %c0_i32 = arith.constant 0 : i32
    %c0_i32_0 = arith.constant 0 : i32
    %c0_i32_1 = arith.constant 0 : i32
    return %c0_i32, %c0_i32_0 : i32, i32
  }
  func.func @transform_12(%arg0: i32) -> (i32, i32) {
    %c0_i32 = arith.constant 0 : i32
    %c0_i32_0 = arith.constant 0 : i32
    %c0_i32_1 = arith.constant 0 : i32
    return %c0_i32, %c0_i32_0 : i32, i32
  }
  func.func @transform_13(%arg0: i32) -> (i32, i32, i32) {
    %c0_i32 = arith.constant 0 : i32
    %c0_i32_0 = arith.constant 0 : i32
    %c0_i32_1 = arith.constant 0 : i32
    return %arg0, %c0_i32, %c0_i32_0 : i32, i32, i32
  }
}

</mosaic_0001>

<llo_original>
// kernel: attention_block_forward.1
$region0: #{attention_block_forward.1}
  #allocation0 [shape = 'u32[]', space=smem, size = 0x4, offset = 0x4, fixed_abs, tag = 'smem constant byte address 0x4 - core index']
  #allocation1 [shape = 'u32[144,128]{1,0:T(1,128)}', space=vmem, size = 0x12000, scoped, tag = 'internal scratch']
  %s0 = inlined_call_operand.vmem [shape: f32[2,10,10,32], index: 0, kind: input, shape index: {}]
  %s1 = inlined_call_operand.vmem [shape: f32[24,128], index: 1, kind: input, shape index: {}]
  %s2 = inlined_call_operand.vmem [shape: s32[64,1], index: 2, kind: input, shape index: {}]
  %s3 = inlined_call_operand.vmem [shape: s32[1,64], index: 3, kind: input, shape index: {}]
  %s4 = inlined_call_operand.vmem [shape: f32[1,64], index: 4, kind: input, shape index: {}]
  %s5 = inlined_call_operand.vmem [shape: f32[32,32], index: 5, kind: input, shape index: {}]
  %s6 = inlined_call_operand.vmem [shape: f32[32,32], index: 6, kind: input, shape index: {}]
  %s7 = inlined_call_operand.vmem [shape: f32[32,32], index: 7, kind: input, shape index: {}]
  %s8 = inlined_call_operand.vmem [shape: f32[32,32], index: 8, kind: input, shape index: {}]
  %s9 = inlined_call_operand.vmem [shape: f32[32,128], index: 9, kind: input, shape index: {}]
  %s10 = inlined_call_operand.vmem [shape: f32[128,32], index: 10, kind: input, shape index: {}]
  %s11 = inlined_call_operand.vmem [shape: f32[32,128], index: 11, kind: input, shape index: {}]
  %s12 = inlined_call_operand.vmem [shape: f32[128,32], index: 12, kind: input, shape index: {}]
  %s13 = inlined_call_operand.hbm [shape: f32[2,64,32], index: 13, kind: output, shape index: {}]
  %s14 = sld [smem:[#allocation0]]
  $region85: #{attention_block_forward.1} parent=0
    _
  %s16 = ssub.s32 1, %s14
  %s17 = scalar_select 0, %s16, %s14
  $region1: #{attention_block_forward.1} parent=0
    #allocation2 [shape = 'u8[65536]{0}', space=vmem, size = 0x10000, scoped, tag = 'output window, operand 0']
    #allocation3 [shape = 's32[2]{0}', space=sflag, size = 0x8, scoped, tag = 'scoped memory for attention_block_forward.1']
    %18 = vsyncpa [#allocation3], 0
    %s19 = scalar_lea.sflag [#allocation3], 1
    %20 = vsyncpa %s19, 0
    loop: start=0, step=1, limit=4
    $region2: #{attention_block_forward.1} parent=1 // loop_pre_header
      _
    $region3: #{attention_block_forward.1} parent=1 // loop_header
      %s22 = sphi 0, %s26
      %p23 = scmp.ge.s32.totalorder %s22, 4
      %s32 = sphi 0, %s34
      %s35 = sphi 0, %s32
      %s36 = sphi 0, %s35
      %s52 = sphi 0, %s36
      %s56 = sphi 0, %s56
      %s58 = sphi 0, %s56
      %s59 = sphi 0, %s58
      %s73 = sphi 0, %s59
      %s77 = sphi 0, %s77
      %s79 = sphi 0, %s77
      %s80 = sphi 0, %s79
      %s94 = sphi 0, %s80
      %s98 = sphi 0, %s98
      %s100 = sphi 0, %s98
      %s101 = sphi 0, %s100
      %s115 = sphi 0, %s101
      %s119 = sphi 0, %s119
      %s121 = sphi 0, %s119
      %s122 = sphi 0, %s121
      %s136 = sphi 0, %s122
      %s140 = sphi 0, %s140
      %s142 = sphi 0, %s140
      %s143 = sphi 0, %s142
      %s157 = sphi 0, %s143
      %s161 = sphi 0, %s161
      %s163 = sphi 0, %s161
      %s164 = sphi 0, %s163
      %s178 = sphi 0, %s164
      %s182 = sphi 0, %s182
      %s184 = sphi 0, %s182
      %s185 = sphi 0, %s184
      %s199 = sphi 0, %s185
      %s203 = sphi 0, %s203
      %s205 = sphi 0, %s203
      %s206 = sphi 0, %s205
      %s220 = sphi 0, %s206
      %s224 = sphi 0, %s224
      %s226 = sphi 0, %s224
      %s227 = sphi 0, %s226
      %s241 = sphi 0, %s227
      %s245 = sphi 0, %s245
      %s247 = sphi 0, %s245
      %s248 = sphi 0, %s247
      %s262 = sphi 0, %s248
      %s266 = sphi 0, %s266
      %s268 = sphi 0, %s266
      %s269 = sphi 0, %s268
      %s283 = sphi 0, %s269
      %s287 = sphi 0, %s287
      %s289 = sphi 0, %s287
      %s290 = sphi 0, %s289
      %s304 = sphi 0, %s290
      %s310 = sphi 0, %s312
      %s313 = sphi 0, %s310
      %s314 = sphi 0, %s313
      %s330 = sphi 0, %s314
    $region4: #{attention_block_forward.1} parent=1 // loop_header_branch
      %25 = sbr.rel (%p23) target = $region8
    $region5: #{attention_block_forward.1} parent=1 // loop_body
      %s27 = ssub.s32 %s22, 1
      %s28 = ssub.s32 %s22, 2
      %s29 = sadd.s32 %s22, 1
      %s30 = ssub.s32 %s22, %s29
      %p31 = scmp.eq.s32.totalorder %s30, 0
      %s33 = sadd.s32 %s32, 1
      %s34 = scalar_select %p31, %s32, %s33
      %p37 = pneg %p31
      %p38 = scmp.eq.s32.totalorder %s22, 1
      %p39 = por %p37, %p38
      %p40 = scmp.ne.s32.totalorder %s32, %s35
      %p41 = scmp.eq.s32.totalorder %s22, 0
      %p42 = por %p40, %p41
      %p43 = scmp.ne.s32.totalorder %s32, %s35
      %p44 = scmp.eq.s32.totalorder %s27, 1
      %p45 = por %p43, %p44
      %p46 = scmp.ne.s32.totalorder %s35, %s36
      %p47 = scmp.eq.s32.totalorder %s27, 0
      %p48 = por %p46, %p47
      %p49 = scmp.ne.s32.totalorder %s35, %s36
      %p50 = scmp.eq.s32.totalorder %s28, 1
      %p51 = por %p49, %p50
      %p53 = scmp.ne.s32.totalorder %s36, %s52
      %p54 = scmp.eq.s32.totalorder %s28, 0
      %p55 = por %p53, %p54
      %s57 = sadd.s32 %s56, 1
      %p60 = scmp.eq.s32.totalorder %s22, 1
      %p61 = scmp.ne.s32.totalorder %s56, %s58
      %p62 = scmp.eq.s32.totalorder %s22, 0
      %p63 = por %p61, %p62
      %p64 = scmp.ne.s32.totalorder %s56, %s58
      %p65 = scmp.eq.s32.totalorder %s27, 1
      %p66 = por %p64, %p65
      %p67 = scmp.ne.s32.totalorder %s58, %s59
      %p68 = scmp.eq.s32.totalorder %s27, 0
      %p69 = por %p67, %p68
      %p70 = scmp.ne.s32.totalorder %s58, %s59
      %p71 = scmp.eq.s32.totalorder %s28, 1
      %p72 = por %p70, %p71
      %p74 = scmp.ne.s32.totalorder %s59, %s73
      %p75 = scmp.eq.s32.totalorder %s28, 0
      %p76 = por %p74, %p75
      %s78 = sadd.s32 %s77, 1
      %p81 = scmp.eq.s32.totalorder %s22, 1
      %p82 = scmp.ne.s32.totalorder %s77, %s79
      %p83 = scmp.eq.s32.totalorder %s22, 0
      %p84 = por %p82, %p83
      %p85 = scmp.ne.s32.totalorder %s77, %s79
      %p86 = scmp.eq.s32.totalorder %s27, 1
      %p87 = por %p85, %p86
      %p88 = scmp.ne.s32.totalorder %s79, %s80
      %p89 = scmp.eq.s32.totalorder %s27, 0
      %p90 = por %p88, %p89
      %p91 = scmp.ne.s32.totalorder %s79, %s80
      %p92 = scmp.eq.s32.totalorder %s28, 1
      %p93 = por %p91, %p92
      %p95 = scmp.ne.s32.totalorder %s80, %s94
      %p96 = scmp.eq.s32.totalorder %s28, 0
      %p97 = por %p95, %p96
      %s99 = sadd.s32 %s98, 1
      %p102 = scmp.eq.s32.totalorder %s22, 1
      %p103 = scmp.ne.s32.totalorder %s98, %s100
      %p104 = scmp.eq.s32.totalorder %s22, 0
      %p105 = por %p103, %p104
      %p106 = scmp.ne.s32.totalorder %s98, %s100
      %p107 = scmp.eq.s32.totalorder %s27, 1
      %p108 = por %p106, %p107
      %p109 = scmp.ne.s32.totalorder %s100, %s101
      %p110 = scmp.eq.s32.totalorder %s27, 0
      %p111 = por %p109, %p110
      %p112 = scmp.ne.s32.totalorder %s100, %s101
      %p113 = scmp.eq.s32.totalorder %s28, 1
      %p114 = por %p112, %p113
      %p116 = scmp.ne.s32.totalorder %s101, %s115
      %p117 = scmp.eq.s32.totalorder %s28, 0
      %p118 = por %p116, %p117
      %s120 = sadd.s32 %s119, 1
      %p123 = scmp.eq.s32.totalorder %s22, 1
      %p124 = scmp.ne.s32.totalorder %s119, %s121
      %p125 = scmp.eq.s32.totalorder %s22, 0
      %p126 = por %p124, %p125
      %p127 = scmp.ne.s32.totalorder %s119, %s121
      %p128 = scmp.eq.s32.totalorder %s27, 1
      %p129 = por %p127, %p128
      %p130 = scmp.ne.s32.totalorder %s121, %s122
      %p131 = scmp.eq.s32.totalorder %s27, 0
      %p132 = por %p130, %p131
      %p133 = scmp.ne.s32.totalorder %s121, %s122
      %p134 = scmp.eq.s32.totalorder %s28, 1
      %p135 = por %p133, %p134
      %p137 = scmp.ne.s32.totalorder %s122, %s136
      %p138 = scmp.eq.s32.totalorder %s28, 0
      %p139 = por %p137, %p138
      %s141 = sadd.s32 %s140, 1
      %p144 = scmp.eq.s32.totalorder %s22, 1
      %p145 = scmp.ne.s32.totalorder %s140, %s142
      %p146 = scmp.eq.s32.totalorder %s22, 0
      %p147 = por %p145, %p146
      %p148 = scmp.ne.s32.totalorder %s140, %s142
      %p149 = scmp.eq.s32.totalorder %s27, 1
      %p150 = por %p148, %p149
      %p151 = scmp.ne.s32.totalorder %s142, %s143
      %p152 = scmp.eq.s32.totalorder %s27, 0
      %p153 = por %p151, %p152
      %p154 = scmp.ne.s32.totalorder %s142, %s143
      %p155 = scmp.eq.s32.totalorder %s28, 1
      %p156 = por %p154, %p155
      %p158 = scmp.ne.s32.totalorder %s143, %s157
      %p159 = scmp.eq.s32.totalorder %s28, 0
      %p160 = por %p158, %p159
      %s162 = sadd.s32 %s161, 1
      %p165 = scmp.eq.s32.totalorder %s22, 1
      %p166 = scmp.ne.s32.totalorder %s161, %s163
      %p167 = scmp.eq.s32.totalorder %s22, 0
      %p168 = por %p166, %p167
      %p169 = scmp.ne.s32.totalorder %s161, %s163
      %p170 = scmp.eq.s32.totalorder %s27, 1
      %p171 = por %p169, %p170
      %p172 = scmp.ne.s32.totalorder %s163, %s164
      %p173 = scmp.eq.s32.totalorder %s27, 0
      %p174 = por %p172, %p173
      %p175 = scmp.ne.s32.totalorder %s163, %s164
      %p176 = scmp.eq.s32.totalorder %s28, 1
      %p177 = por %p175, %p176
      %p179 = scmp.ne.s32.totalorder %s164, %s178
      %p180 = scmp.eq.s32.totalorder %s28, 0
      %p181 = por %p179, %p180
      %s183 = sadd.s32 %s182, 1
      %p186 = scmp.eq.s32.totalorder %s22, 1
      %p187 = scmp.ne.s32.totalorder %s182, %s184
      %p188 = scmp.eq.s32.totalorder %s22, 0
      %p189 = por %p187, %p188
      %p190 = scmp.ne.s32.totalorder %s182, %s184
      %p191 = scmp.eq.s32.totalorder %s27, 1
      %p192 = por %p190, %p191
      %p193 = scmp.ne.s32.totalorder %s184, %s185
      %p194 = scmp.eq.s32.totalorder %s27, 0
      %p195 = por %p193, %p194
      %p196 = scmp.ne.s32.totalorder %s184, %s185
      %p197 = scmp.eq.s32.totalorder %s28, 1
      %p198 = por %p196, %p197
      %p200 = scmp.ne.s32.totalorder %s185, %s199
      %p201 = scmp.eq.s32.totalorder %s28, 0
      %p202 = por %p200, %p201
      %s204 = sadd.s32 %s203, 1
      %p207 = scmp.eq.s32.totalorder %s22, 1
      %p208 = scmp.ne.s32.totalorder %s203, %s205
      %p209 = scmp.eq.s32.totalorder %s22, 0
      %p210 = por %p208, %p209
      %p211 = scmp.ne.s32.totalorder %s203, %s205
      %p212 = scmp.eq.s32.totalorder %s27, 1
      %p213 = por %p211, %p212
      %p214 = scmp.ne.s32.totalorder %s205, %s206
      %p215 = scmp.eq.s32.totalorder %s27, 0
      %p216 = por %p214, %p215
      %p217 = scmp.ne.s32.totalorder %s205, %s206
      %p218 = scmp.eq.s32.totalorder %s28, 1
      %p219 = por %p217, %p218
      %p221 = scmp.ne.s32.totalorder %s206, %s220
      %p222 = scmp.eq.s32.totalorder %s28, 0
      %p223 = por %p221, %p222
      %s225 = sadd.s32 %s224, 1
      %p228 = scmp.eq.s32.totalorder %s22, 1
      %p229 = scmp.ne.s32.totalorder %s224, %s226
      %p230 = scmp.eq.s32.totalorder %s22, 0
      %p231 = por %p229, %p230
      %p232 = scmp.ne.s32.totalorder %s224, %s226
      %p233 = scmp.eq.s32.totalorder %s27, 1
      %p234 = por %p232, %p233
      %p235 = scmp.ne.s32.totalorder %s226, %s227
      %p236 = scmp.eq.s32.totalorder %s27, 0
      %p237 = por %p235, %p236
      %p238 = scmp.ne.s32.totalorder %s226, %s227
      %p239 = scmp.eq.s32.totalorder %s28, 1
      %p240 = por %p238, %p239
      %p242 = scmp.ne.s32.totalorder %s227, %s241
      %p243 = scmp.eq.s32.totalorder %s28, 0
      %p244 = por %p242, %p243
      %s246 = sadd.s32 %s245, 1
      %p249 = scmp.eq.s32.totalorder %s22, 1
      %p250 = scmp.ne.s32.totalorder %s245, %s247
      %p251 = scmp.eq.s32.totalorder %s22, 0
      %p252 = por %p250, %p251
      %p253 = scmp.ne.s32.totalorder %s245, %s247
      %p254 = scmp.eq.s32.totalorder %s27, 1
      %p255 = por %p253, %p254
      %p256 = scmp.ne.s32.totalorder %s247, %s248
      %p257 = scmp.eq.s32.totalorder %s27, 0
      %p258 = por %p256, %p257
      %p259 = scmp.ne.s32.totalorder %s247, %s248
      %p260 = scmp.eq.s32.totalorder %s28, 1
      %p261 = por %p259, %p260
      %p263 = scmp.ne.s32.totalorder %s248, %s262
      %p264 = scmp.eq.s32.totalorder %s28, 0
      %p265 = por %p263, %p264
      %s267 = sadd.s32 %s266, 1
      %p270 = scmp.eq.s32.totalorder %s22, 1
      %p271 = scmp.ne.s32.totalorder %s266, %s268
      %p272 = scmp.eq.s32.totalorder %s22, 0
      %p273 = por %p271, %p272
      %p274 = scmp.ne.s32.totalorder %s266, %s268
      %p275 = scmp.eq.s32.totalorder %s27, 1
      %p276 = por %p274, %p275
      %p277 = scmp.ne.s32.totalorder %s268, %s269
      %p278 = scmp.eq.s32.totalorder %s27, 0
      %p279 = por %p277, %p278
      %p280 = scmp.ne.s32.totalorder %s268, %s269
      %p281 = scmp.eq.s32.totalorder %s28, 1
      %p282 = por %p280, %p281
      %p284 = scmp.ne.s32.totalorder %s269, %s283
      %p285 = scmp.eq.s32.totalorder %s28, 0
      %p286 = por %p284, %p285
      %s288 = sadd.s32 %s287, 1
      %p291 = scmp.eq.s32.totalorder %s22, 1
      %p292 = scmp.ne.s32.totalorder %s287, %s289
      %p293 = scmp.eq.s32.totalorder %s22, 0
      %p294 = por %p292, %p293
      %p295 = scmp.ne.s32.totalorder %s287, %s289
      %p296 = scmp.eq.s32.totalorder %s27, 1
      %p297 = por %p295, %p296
      %p298 = scmp.ne.s32.totalorder %s289, %s290
      %p299 = scmp.eq.s32.totalorder %s27, 0
      %p300 = por %p298, %p299
      %p301 = scmp.ne.s32.totalorder %s289, %s290
      %p302 = scmp.eq.s32.totalorder %s28, 1
      %p303 = por %p301, %p302
      %p305 = scmp.ne.s32.totalorder %s290, %s304
      %p306 = scmp.eq.s32.totalorder %s28, 0
      %p307 = por %p305, %p306
      %s308 = ssub.s32 %s22, %s29
      %p309 = scmp.eq.s32.totalorder %s308, 0
      %s311 = sadd.s32 %s310, 1
      %s312 = scalar_select %p309, %s310, %s311
      %p315 = pneg %p309
      %p316 = scmp.eq.s32.totalorder %s22, 1
      %p317 = por %p315, %p316
      %p318 = scmp.ne.s32.totalorder %s310, %s313
      %p319 = scmp.eq.s32.totalorder %s22, 0
      %p320 = por %p318, %p319
      %p321 = scmp.ne.s32.totalorder %s310, %s313
      %p322 = scmp.eq.s32.totalorder %s27, 1
      %p323 = por %p321, %p322
      %p324 = scmp.ne.s32.totalorder %s313, %s314
      %p325 = scmp.eq.s32.totalorder %s27, 0
      %p326 = por %p324, %p325
      %p327 = scmp.ne.s32.totalorder %s313, %s314
      %p328 = scmp.eq.s32.totalorder %s28, 1
      %p329 = por %p327, %p328
      %p331 = scmp.ne.s32.totalorder %s314, %s330
      %p332 = scmp.eq.s32.totalorder %s28, 0
      %p333 = por %p331, %p332
      %p334 = scmp.le.s32.totalorder 1, %s22
      %p335 = scmp.lt.s32.totalorder %s22, 3
      %p336 = pnand %p334, %p335
      %p337 = pneg %p336
      // Predicated region
      $region9: #{attention_block_forward.1} parent=5 // pred_check
        _
      $region10: #{attention_block_forward.1} parent=5 // pred_check_branch
        %339 = sbr.rel (%p336) target = $region12
      $region11: #{attention_block_forward.1} parent=5 // pred_region
        %s340 = ssub.s32 %s22, 1
        // Predicated region
        $region13: #{attention_block_forward.1} parent=11 // pred_check
          %p341 = pneg %p69
        $region14: #{attention_block_forward.1} parent=11 // pred_check_branch
          %343 = sbr.rel (%p341) target = $region16
        $region15: #{attention_block_forward.1} parent=11 // pred_region
          _
        $region16: #{attention_block_forward.1} parent=11 // pred_fallthru
          _
        // Predicated region
        $region17: #{attention_block_forward.1} parent=11 // pred_check
          %p344 = pneg %p90
        $region18: #{attention_block_forward.1} parent=11 // pred_check_branch
          %346 = sbr.rel (%p344) target = $region20
        $region19: #{attention_block_forward.1} parent=11 // pred_region
          _
        $region20: #{attention_block_forward.1} parent=11 // pred_fallthru
          _
        // Predicated region
        $region21: #{attention_block_forward.1} parent=11 // pred_check
          %p347 = pneg %p111
        $region22: #{attention_block_forward.1} parent=11 // pred_check_branch
          %349 = sbr.rel (%p347) target = $region24
        $region23: #{attention_block_forward.1} parent=11 // pred_region
          _
        $region24: #{attention_block_forward.1} parent=11 // pred_fallthru
          _
        // Predicated region
        $region25: #{attention_block_forward.1} parent=11 // pred_check
          %p350 = pneg %p132
        $region26: #{attention_block_forward.1} parent=11 // pred_check_branch
          %352 = sbr.rel (%p350) target = $region28
        $region27: #{attention_block_forward.1} parent=11 // pred_region
          _
        $region28: #{attention_block_forward.1} parent=11 // pred_fallthru
          _
        // Predicated region
        $region29: #{attention_block_forward.1} parent=11 // pred_check
          %p353 = pneg %p153
        $region30: #{attention_block_forward.1} parent=11 // pred_check_branch
          %355 = sbr.rel (%p353) target = $region32
        $region31: #{attention_block_forward.1} parent=11 // pred_region
          _
        $region32: #{attention_block_forward.1} parent=11 // pred_fallthru
          _
        // Predicated region
        $region33: #{attention_block_forward.1} parent=11 // pred_check
          %p356 = pneg %p174
        $region34: #{attention_block_forward.1} parent=11 // pred_check_branch
          %358 = sbr.rel (%p356) target = $region36
        $region35: #{attention_block_forward.1} parent=11 // pred_region
          _
        $region36: #{attention_block_forward.1} parent=11 // pred_fallthru
          _
        // Predicated region
        $region37: #{attention_block_forward.1} parent=11 // pred_check
          %p359 = pneg %p195
        $region38: #{attention_block_forward.1} parent=11 // pred_check_branch
          %361 = sbr.rel (%p359) target = $region40
        $region39: #{attention_block_forward.1} parent=11 // pred_region
          _
        $region40: #{attention_block_forward.1} parent=11 // pred_fallthru
          _
        // Predicated region
        $region41: #{attention_block_forward.1} parent=11 // pred_check
          %p362 = pneg %p216
        $region42: #{attention_block_forward.1} parent=11 // pred_check_branch
          %364 = sbr.rel (%p362) target = $region44
        $region43: #{attention_block_forward.1} parent=11 // pred_region
          _
        $region44: #{attention_block_forward.1} parent=11 // pred_fallthru
          _
        // Predicated region
        $region45: #{attention_block_forward.1} parent=11 // pred_check
          %p365 = pneg %p237
        $region46: #{attention_block_forward.1} parent=11 // pred_check_branch
          %367 = sbr.rel (%p365) target = $region48
        $region47: #{attention_block_forward.1} parent=11 // pred_region
          _
        $region48: #{attention_block_forward.1} parent=11 // pred_fallthru
          _
        // Predicated region
        $region49: #{attention_block_forward.1} parent=11 // pred_check
          %p368 = pneg %p258
        $region50: #{attention_block_forward.1} parent=11 // pred_check_branch
          %370 = sbr.rel (%p368) target = $region52
        $region51: #{attention_block_forward.1} parent=11 // pred_region
          _
        $region52: #{attention_block_forward.1} parent=11 // pred_fallthru
          _
        // Predicated region
        $region53: #{attention_block_forward.1} parent=11 // pred_check
          %p371 = pneg %p279
        $region54: #{attention_block_forward.1} parent=11 // pred_check_branch
          %373 = sbr.rel (%p371) target = $region56
        $region55: #{attention_block_forward.1} parent=11 // pred_region
          _
        $region56: #{attention_block_forward.1} parent=11 // pred_fallthru
          _
        // Predicated region
        $region57: #{attention_block_forward.1} parent=11 // pred_check
          %p374 = pneg %p300
        $region58: #{attention_block_forward.1} parent=11 // pred_check_branch
          %376 = sbr.rel (%p374) target = $region60
        $region59: #{attention_block_forward.1} parent=11 // pred_region
          _
        $region60: #{attention_block_forward.1} parent=11 // pred_fallthru
          _
      $region12: #{attention_block_forward.1} parent=5 // pred_fallthru
        _
      %p377 = scmp.lt.s32.totalorder %s22, 2
      // Predicated region
      $region61: #{attention_block_forward.1} parent=5 // pred_check
        %p378 = pneg %p377
      $region62: #{attention_block_forward.1} parent=5 // pred_check_branch
        %380 = sbr.rel (%p378) target = $region64
      $region63: #{attention_block_forward.1} parent=5 // pred_region
        // Predicated region
        $region65: #{attention_block_forward.1} parent=63 // pred_check
          %p381 = pneg %p42
        $region66: #{attention_block_forward.1} parent=63 // pred_check_branch
          %383 = sbr.rel (%p381) target = $region68
        $region67: #{attention_block_forward.1} parent=63 // pred_region
          %p384 = scmp.lt.s32.totalorder %s22, 1
          %s385 = scalar_select %p384, %s22, 1
          %s386 = smul.addr %s385, 20
          %s387 = smul.addr %s386, 8
          %s388 = scalar_lea.vmem %s0, %s387
        $region68: #{attention_block_forward.1} parent=63 // pred_fallthru
          _
      $region64: #{attention_block_forward.1} parent=5 // pred_fallthru
        _
      %p389 = scmp.le.s32.totalorder 1, %s22
      %p390 = scmp.lt.s32.totalorder %s22, 3
      %p391 = pnand %p389, %p390
      %p392 = pneg %p391
      // Predicated region
      $region69: #{attention_block_forward.1} parent=5 // pred_check
        _
      $region70: #{attention_block_forward.1} parent=5 // pred_check_branch
        %394 = sbr.rel (%p391) target = $region72
      $region71: #{attention_block_forward.1} parent=5 // pred_region
        %s395 = ssub.s32 %s22, 1
        %p396 = scmp.lt.s32.totalorder %s27, 1
        %s397 = scalar_select %p396, %s27, 1
        %s398 = smul.addr %s397, 20
        %s399 = smul.addr %s398, 8
        %s400 = scalar_lea.vmem %s0, %s399
        %p401 = pneg %p48
        %p402 = pneg %p45
        %p403 = pneg %p69
        %p404 = pneg %p66
        %p405 = pneg %p90
        %p406 = pneg %p87
        %p407 = pneg %p111
        %p408 = pneg %p108
        %p409 = pneg %p132
        %p410 = pneg %p129
        %p411 = pneg %p153
        %p412 = pneg %p150
        %p413 = pneg %p174
        %p414 = pneg %p171
        %p415 = pneg %p195
        %p416 = pneg %p192
        %p417 = pneg %p216
        %p418 = pneg %p213
        %p419 = pneg %p237
        %p420 = pneg %p234
        %p421 = pneg %p258
        %p422 = pneg %p255
        %p423 = pneg %p279
        %p424 = pneg %p276
        %p425 = pneg %p300
        %p426 = pneg %p297
        %p427 = pneg %p326
        %p428 = pneg %p323
        %s429 = sand.u32 %s313, 1
        %s430 = scalar_lea.sflag [#allocation3], %s429
        %s431 = sand.u32 %s313, 1
        %s432 = smul.addr %s431, 64
        %s433 = scalar_lea.vmem [#allocation2], %s432
        %p434 = scmp.lt.s32.totalorder %s27, 1
        %s435 = scalar_select %p434, %s27, 1
        %s436 = smul.addr %s435, 20
        %s437 = smul.addr %s436, 8
        %s438 = scalar_lea.vmem %s0, %s437
        %v439 = vld [vmem:[%s1] sm:$0xff]
        %v440 = vld [vmem:[%s1 + $0x8] sm:$0xff]
        %v441 = vld [vmem:[%s1 + $0x10] sm:$0xff]
        %v442 = vld [vmem:[%s438] sm:$0xff]
        %v443 = vld [vmem:[%s438 + $0x8] sm:$0x3]
        %v444 = vld [vmem:[%s438 + $0x10] sm:$0xff]
        %v445 = vld [vmem:[%s438 + $0x18] sm:$0x3]
        %v446 = vld [vmem:[%s438 + $0x20] sm:$0xff]
        %v447 = vld [vmem:[%s438 + $0x28] sm:$0x3]
        %v448 = vld [vmem:[%s438 + $0x30] sm:$0xff]
        %v449 = vld [vmem:[%s438 + $0x38] sm:$0x3]
        %v450 = vld [vmem:[%s438 + $0x40] sm:$0xff]
        %v451 = vld [vmem:[%s438 + $0x48] sm:$0x3]
        %v452 = vld [vmem:[%s438 + $0x50] sm:$0xff]
        %v453 = vld [vmem:[%s438 + $0x58] sm:$0x3]
        %v454 = vld [vmem:[%s438 + $0x60] sm:$0xff]
        %v455 = vld [vmem:[%s438 + $0x68] sm:$0x3]
        %v456 = vld [vmem:[%s438 + $0x70] sm:$0xff]
        %v457 = vld [vmem:[%s438 + $0x78] sm:$0x3]
        %v458 = vld [vmem:[%s438 + $0x80] sm:$0xff]
        %v459 = vld [vmem:[%s438 + $0x88] sm:$0x3]
        %v460 = vld [vmem:[%s438 + $0x90] sm:$0xff]
        %v461 = vld [vmem:[%s438 + $0x98] sm:$0x3]
        %v462 = vlaneseq
        %v463 = vshrl.u32 %v462, 7
        %v464 = vsub.s32 0, %v463
        %v465 = vrot.slane %v439, %v464
        %v466 = vmul.f32 %v442, %v465
        %v467 = vmul.f32 %v444, %v465
        %v468 = vmul.f32 %v446, %v465
        %v469 = vmul.f32 %v448, %v465
        %v470 = vmul.f32 %v450, %v465
        %v471 = vmul.f32 %v452, %v465
        %v472 = vmul.f32 %v454, %v465
        %v473 = vmul.f32 %v456, %v465
        %v474 = vlaneseq
        %v475 = vshrl.u32 %v474, 7
        %v476 = vsub.s32 1, %v475
        %v477 = vrot.slane %v439, %v476
        %v478 = vmul.f32 %v442, %v477
        %v479 = vmul.f32 %v443, %v477
        %v480 = vmul.f32 %v444, %v477
        %v481 = vmul.f32 %v445, %v477
        %v482 = vmul.f32 %v446, %v477
        %v483 = vmul.f32 %v447, %v477
        %v484 = vmul.f32 %v448, %v477
        %v485 = vmul.f32 %v449, %v477
        %v486 = vmul.f32 %v450, %v477
        %v487 = vmul.f32 %v451, %v477
        %v488 = vmul.f32 %v452, %v477
        %v489 = vmul.f32 %v453, %v477
        %v490 = vmul.f32 %v454, %v477
        %v491 = vmul.f32 %v455, %v477
        %v492 = vmul.f32 %v456, %v477
        %v493 = vmul.f32 %v457, %v477
        %vm510 = vcmask 1046528
        %v511 = vrot.slane %v478, 1
        %v512 = vrot.slane %v479, 1
        %v513 = vsel %vm510, %v511, %v512
        %v514 = vrot.slane %v480, 1
        %v515 = vrot.slane %v481, 1
        %v516 = vsel %vm510, %v514, %v515
        %v517 = vrot.slane %v482, 1
        %v518 = vrot.slane %v483, 1
        %v519 = vsel %vm510, %v517, %v518
        %v520 = vrot.slane %v484, 1
        %v521 = vrot.slane %v485, 1
        %v522 = vsel %vm510, %v520, %v521
        %v523 = vrot.slane %v486, 1
        %v524 = vrot.slane %v487, 1
        %v525 = vsel %vm510, %v523, %v524
        %v526 = vrot.slane %v488, 1
        %v527 = vrot.slane %v489, 1
        %v528 = vsel %vm510, %v526, %v527
        %v529 = vrot.slane %v490, 1
        %v530 = vrot.slane %v491, 1
        %v531 = vsel %vm510, %v529, %v530
        %v532 = vrot.slane %v492, 1
        %v533 = vrot.slane %v493, 1
        %v534 = vsel %vm510, %v532, %v533
        %v543 = vadd.f32 %v466, %v513
        %v544 = vadd.f32 %v467, %v516
        %v545 = vadd.f32 %v468, %v519
        %v546 = vadd.f32 %v469, %v522
        %v547 = vadd.f32 %v470, %v525
        %v548 = vadd.f32 %v471, %v528
        %v549 = vadd.f32 %v472, %v531
        %v550 = vadd.f32 %v473, %v534
        %v551 = vlaneseq
        %v552 = vshrl.u32 %v551, 7
        %v553 = vsub.s32 2, %v552
        %v554 = vrot.slane %v439, %v553
        %v555 = vmul.f32 %v442, %v554
        %v556 = vmul.f32 %v443, %v554
        %v557 = vmul.f32 %v444, %v554
        %v558 = vmul.f32 %v445, %v554
        %v559 = vmul.f32 %v446, %v554
        %v560 = vmul.f32 %v447, %v554
        %v561 = vmul.f32 %v448, %v554
        %v562 = vmul.f32 %v449, %v554
        %v563 = vmul.f32 %v450, %v554
        %v564 = vmul.f32 %v451, %v554
        %v565 = vmul.f32 %v452, %v554
        %v566 = vmul.f32 %v453, %v554
        %v567 = vmul.f32 %v454, %v554
        %v568 = vmul.f32 %v455, %v554
        %v569 = vmul.f32 %v456, %v554
        %v570 = vmul.f32 %v457, %v554
        %vm587 = vcmask 1045504
        %v588 = vrot.slane %v555, 2
        %v589 = vrot.slane %v556, 2
        %v590 = vsel %vm587, %v588, %v589
        %v591 = vrot.slane %v557, 2
        %v592 = vrot.slane %v558, 2
        %v593 = vsel %vm587, %v591, %v592
        %v594 = vrot.slane %v559, 2
        %v595 = vrot.slane %v560, 2
        %v596 = vsel %vm587, %v594, %v595
        %v597 = vrot.slane %v561, 2
        %v598 = vrot.slane %v562, 2
        %v599 = vsel %vm587, %v597, %v598
        %v600 = vrot.slane %v563, 2
        %v601 = vrot.slane %v564, 2
        %v602 = vsel %vm587, %v600, %v601
        %v603 = vrot.slane %v565, 2
        %v604 = vrot.slane %v566, 2
        %v605 = vsel %vm587, %v603, %v604
        %v606 = vrot.slane %v567, 2
        %v607 = vrot.slane %v568, 2
        %v608 = vsel %vm587, %v606, %v607
        %v609 = vrot.slane %v569, 2
        %v610 = vrot.slane %v570, 2
        %v611 = vsel %vm587, %v609, %v610
        %v620 = vadd.f32 %v543, %v590
        %v621 = vadd.f32 %v544, %v593
        %v622 = vadd.f32 %v545, %v596
        %v623 = vadd.f32 %v546, %v599
        %v624 = vadd.f32 %v547, %v602
        %v625 = vadd.f32 %v548, %v605
        %v626 = vadd.f32 %v549, %v608
        %v627 = vadd.f32 %v550, %v611
        %v628 = vlaneseq
        %v629 = vshrl.u32 %v628, 7
        %v630 = vsub.s32 3, %v629
        %v631 = vrot.slane %v439, %v630
        %v632 = vmul.f32 %v444, %v631
        %v633 = vmul.f32 %v446, %v631
        %v634 = vmul.f32 %v448, %v631
        %v635 = vmul.f32 %v450, %v631
        %v636 = vmul.f32 %v452, %v631
        %v637 = vmul.f32 %v454, %v631
        %v638 = vmul.f32 %v456, %v631
        %v639 = vmul.f32 %v458, %v631
        %v640 = vadd.f32 %v620, %v632
        %v641 = vadd.f32 %v621, %v633
        %v642 = vadd.f32 %v622, %v634
        %v643 = vadd.f32 %v623, %v635
        %v644 = vadd.f32 %v624, %v636
        %v645 = vadd.f32 %v625, %v637
        %v646 = vadd.f32 %v626, %v638
        %v647 = vadd.f32 %v627, %v639
        %v648 = vlaneseq
        %v649 = vshrl.u32 %v648, 7
        %v650 = vsub.s32 4, %v649
        %v651 = vrot.slane %v439, %v650
        %v652 = vmul.f32 %v444, %v651
        %v653 = vmul.f32 %v445, %v651
        %v654 = vmul.f32 %v446, %v651
        %v655 = vmul.f32 %v447, %v651
        %v656 = vmul.f32 %v448, %v651
        %v657 = vmul.f32 %v449, %v651
        %v658 = vmul.f32 %v450, %v651
        %v659 = vmul.f32 %v451, %v651
        %v660 = vmul.f32 %v452, %v651
        %v661 = vmul.f32 %v453, %v651
        %v662 = vmul.f32 %v454, %v651
        %v663 = vmul.f32 %v455, %v651
        %v664 = vmul.f32 %v456, %v651
        %v665 = vmul.f32 %v457, %v651
        %v666 = vmul.f32 %v458, %v651
        %v667 = vmul.f32 %v459, %v651
        %v684 = vrot.slane %v652, 1
        %v685 = vrot.slane %v653, 1
        %v686 = vsel %vm510, %v684, %v685
        %v687 = vrot.slane %v654, 1
        %v688 = vrot.slane %v655, 1
        %v689 = vsel %vm510, %v687, %v688
        %v690 = vrot.slane %v656, 1
        %v691 = vrot.slane %v657, 1
        %v692 = vsel %vm510, %v690, %v691
        %v693 = vrot.slane %v658, 1
        %v694 = vrot.slane %v659, 1
        %v695 = vsel %vm510, %v693, %v694
        %v696 = vrot.slane %v660, 1
        %v697 = vrot.slane %v661, 1
        %v698 = vsel %vm510, %v696, %v697
        %v699 = vrot.slane %v662, 1
        %v700 = vrot.slane %v663, 1
        %v701 = vsel %vm510, %v699, %v700
        %v702 = vrot.slane %v664, 1
        %v703 = vrot.slane %v665, 1
        %v704 = vsel %vm510, %v702, %v703
        %v705 = vrot.slane %v666, 1
        %v706 = vrot.slane %v667, 1
        %v707 = vsel %vm510, %v705, %v706
        %v716 = vadd.f32 %v640, %v686
        %v717 = vadd.f32 %v641, %v689
        %v718 = vadd.f32 %v642, %v692
        %v719 = vadd.f32 %v643, %v695
        %v720 = vadd.f32 %v644, %v698
        %v721 = vadd.f32 %v645, %v701
        %v722 = vadd.f32 %v646, %v704
        %v723 = vadd.f32 %v647, %v707
        %v724 = vlaneseq
        %v725 = vshrl.u32 %v724, 7
        %v726 = vsub.s32 5, %v725
        %v727 = vrot.slane %v439, %v726
        %v728 = vmul.f32 %v444, %v727
        %v729 = vmul.f32 %v445, %v727
        %v730 = vmul.f32 %v446, %v727
        %v731 = vmul.f32 %v447, %v727
        %v732 = vmul.f32 %v448, %v727
        %v733 = vmul.f32 %v449, %v727
        %v734 = vmul.f32 %v450, %v727
        %v735 = vmul.f32 %v451, %v727
        %v736 = vmul.f32 %v452, %v727
        %v737 = vmul.f32 %v453, %v727
        %v738 = vmul.f32 %v454, %v727
        %v739 = vmul.f32 %v455, %v727
        %v740 = vmul.f32 %v456, %v727
        %v741 = vmul.f32 %v457, %v727
        %v742 = vmul.f32 %v458, %v727
        %v743 = vmul.f32 %v459, %v727
        %v760 = vrot.slane %v728, 2
        %v761 = vrot.slane %v729, 2
        %v762 = vsel %vm587, %v760, %v761
        %v763 = vrot.slane %v730, 2
        %v764 = vrot.slane %v731, 2
        %v765 = vsel %vm587, %v763, %v764
        %v766 = vrot.slane %v732, 2
        %v767 = vrot.slane %v733, 2
        %v768 = vsel %vm587, %v766, %v767
        %v769 = vrot.slane %v734, 2
        %v770 = vrot.slane %v735, 2
        %v771 = vsel %vm587, %v769, %v770
        %v772 = vrot.slane %v736, 2
        %v773 = vrot.slane %v737, 2
        %v774 = vsel %vm587, %v772, %v773
        %v775 = vrot.slane %v738, 2
        %v776 = vrot.slane %v739, 2
        %v777 = vsel %vm587, %v775, %v776
        %v778 = vrot.slane %v740, 2
        %v779 = vrot.slane %v741, 2
        %v780 = vsel %vm587, %v778, %v779
        %v781 = vrot.slane %v742, 2
        %v782 = vrot.slane %v743, 2
        %v783 = vsel %vm587, %v781, %v782
        %v792 = vadd.f32 %v716, %v762
        %v793 = vadd.f32 %v717, %v765
        %v794 = vadd.f32 %v718, %v768
        %v795 = vadd.f32 %v719, %v771
        %v796 = vadd.f32 %v720, %v774
        %v797 = vadd.f32 %v721, %v777
        %v798 = vadd.f32 %v722, %v780
        %v799 = vadd.f32 %v723, %v783
        %v800 = vlaneseq
        %v801 = vshrl.u32 %v800, 7
        %v802 = vsub.s32 6, %v801
        %v803 = vrot.slane %v439, %v802
        %v804 = vmul.f32 %v446, %v803
        %v805 = vmul.f32 %v448, %v803
        %v806 = vmul.f32 %v450, %v803
        %v807 = vmul.f32 %v452, %v803
        %v808 = vmul.f32 %v454, %v803
        %v809 = vmul.f32 %v456, %v803
        %v810 = vmul.f32 %v458, %v803
        %v811 = vmul.f32 %v460, %v803
        %v812 = vadd.f32 %v792, %v804
        %v813 = vadd.f32 %v793, %v805
        %v814 = vadd.f32 %v794, %v806
        %v815 = vadd.f32 %v795, %v807
        %v816 = vadd.f32 %v796, %v808
        %v817 = vadd.f32 %v797, %v809
        %v818 = vadd.f32 %v798, %v810
        %v819 = vadd.f32 %v799, %v811
        %v820 = vlaneseq
        %v821 = vshrl.u32 %v820, 7
        %v822 = vsub.s32 7, %v821
        %v823 = vrot.slane %v439, %v822
        %v824 = vmul.f32 %v446, %v823
        %v825 = vmul.f32 %v447, %v823
        %v826 = vmul.f32 %v448, %v823
        %v827 = vmul.f32 %v449, %v823
        %v828 = vmul.f32 %v450, %v823
        %v829 = vmul.f32 %v451, %v823
        %v830 = vmul.f32 %v452, %v823
        %v831 = vmul.f32 %v453, %v823
        %v832 = vmul.f32 %v454, %v823
        %v833 = vmul.f32 %v455, %v823
        %v834 = vmul.f32 %v456, %v823
        %v835 = vmul.f32 %v457, %v823
        %v836 = vmul.f32 %v458, %v823
        %v837 = vmul.f32 %v459, %v823
        %v838 = vmul.f32 %v460, %v823
        %v839 = vmul.f32 %v461, %v823
        %v856 = vrot.slane %v824, 1
        %v857 = vrot.slane %v825, 1
        %v858 = vsel %vm510, %v856, %v857
        %v859 = vrot.slane %v826, 1
        %v860 = vrot.slane %v827, 1
        %v861 = vsel %vm510, %v859, %v860
        %v862 = vrot.slane %v828, 1
        %v863 = vrot.slane %v829, 1
        %v864 = vsel %vm510, %v862, %v863
        %v865 = vrot.slane %v830, 1
        %v866 = vrot.slane %v831, 1
        %v867 = vsel %vm510, %v865, %v866
        %v868 = vrot.slane %v832, 1
        %v869 = vrot.slane %v833, 1
        %v870 = vsel %vm510, %v868, %v869
        %v871 = vrot.slane %v834, 1
        %v872 = vrot.slane %v835, 1
        %v873 = vsel %vm510, %v871, %v872
        %v874 = vrot.slane %v836, 1
        %v875 = vrot.slane %v837, 1
        %v876 = vsel %vm510, %v874, %v875
        %v877 = vrot.slane %v838, 1
        %v878 = vrot.slane %v839, 1
        %v879 = vsel %vm510, %v877, %v878
        %v888 = vadd.f32 %v812, %v858
        %v889 = vadd.f32 %v813, %v861
        %v890 = vadd.f32 %v814, %v864
        %v891 = vadd.f32 %v815, %v867
        %v892 = vadd.f32 %v816, %v870
        %v893 = vadd.f32 %v817, %v873
        %v894 = vadd.f32 %v818, %v876
        %v895 = vadd.f32 %v819, %v879
        %v896 = vlaneseq
        %v897 = vshrl.u32 %v896, 7
        %v898 = vsub.s32 0, %v897
        %v899 = vrot.slane %v440, %v898
        %v900 = vmul.f32 %v446, %v899
        %v901 = vmul.f32 %v447, %v899
        %v902 = vmul.f32 %v448, %v899
        %v903 = vmul.f32 %v449, %v899
        %v904 = vmul.f32 %v450, %v899
        %v905 = vmul.f32 %v451, %v899
        %v906 = vmul.f32 %v452, %v899
        %v907 = vmul.f32 %v453, %v899
        %v908 = vmul.f32 %v454, %v899
        %v909 = vmul.f32 %v455, %v899
        %v910 = vmul.f32 %v456, %v899
        %v911 = vmul.f32 %v457, %v899
        %v912 = vmul.f32 %v458, %v899
        %v913 = vmul.f32 %v459, %v899
        %v914 = vmul.f32 %v460, %v899
        %v915 = vmul.f32 %v461, %v899
        %v932 = vrot.slane %v900, 2
        %v933 = vrot.slane %v901, 2
        %v934 = vsel %vm587, %v932, %v933
        %v935 = vrot.slane %v902, 2
        %v936 = vrot.slane %v903, 2
        %v937 = vsel %vm587, %v935, %v936
        %v938 = vrot.slane %v904, 2
        %v939 = vrot.slane %v905, 2
        %v940 = vsel %vm587, %v938, %v939
        %v941 = vrot.slane %v906, 2
        %v942 = vrot.slane %v907, 2
        %v943 = vsel %vm587, %v941, %v942
        %v944 = vrot.slane %v908, 2
        %v945 = vrot.slane %v909, 2
        %v946 = vsel %vm587, %v944, %v945
        %v947 = vrot.slane %v910, 2
        %v948 = vrot.slane %v911, 2
        %v949 = vsel %vm587, %v947, %v948
        %v950 = vrot.slane %v912, 2
        %v951 = vrot.slane %v913, 2
        %v952 = vsel %vm587, %v950, %v951
        %v953 = vrot.slane %v914, 2
        %v954 = vrot.slane %v915, 2
        %v955 = vsel %vm587, %v953, %v954
        %v964 = vadd.f32 %v888, %v934
        %v965 = vadd.f32 %v889, %v937
        %v966 = vadd.f32 %v890, %v940
        %v967 = vadd.f32 %v891, %v943
        %v968 = vadd.f32 %v892, %v946
        %v969 = vadd.f32 %v893, %v949
        %v970 = vadd.f32 %v894, %v952
        %v971 = vadd.f32 %v895, %v955
        %v972 = vlaneseq
        %v973 = vshrl.u32 %v972, 7
        %v974 = vsub.s32 1, %v973
        %v975 = vrot.slane %v440, %v974
        %v976 = vadd.f32 %v964, %v975
        %v977 = vadd.f32 %v965, %v975
        %v978 = vadd.f32 %v966, %v975
        %v979 = vadd.f32 %v967, %v975
        %v980 = vadd.f32 %v968, %v975
        %v981 = vadd.f32 %v969, %v975
        %v982 = vadd.f32 %v970, %v975
        %v983 = vadd.f32 %v971, %v975
        %v1000 = vrot.slane %v444, 1
        %v1001 = vrot.slane %v445, 1
        %v1002 = vsel %vm510, %v1000, %v1001
        %v1003 = vrot.slane %v446, 1
        %v1004 = vrot.slane %v447, 1
        %v1005 = vsel %vm510, %v1003, %v1004
        %v1006 = vrot.slane %v448, 1
        %v1007 = vrot.slane %v449, 1
        %v1008 = vsel %vm510, %v1006, %v1007
        %v1009 = vrot.slane %v450, 1
        %v1010 = vrot.slane %v451, 1
        %v1011 = vsel %vm510, %v1009, %v1010
        %v1012 = vrot.slane %v452, 1
        %v1013 = vrot.slane %v453, 1
        %v1014 = vsel %vm510, %v1012, %v1013
        %v1015 = vrot.slane %v454, 1
        %v1016 = vrot.slane %v455, 1
        %v1017 = vsel %vm510, %v1015, %v1016
        %v1018 = vrot.slane %v456, 1
        %v1019 = vrot.slane %v457, 1
        %v1020 = vsel %vm510, %v1018, %v1019
        %v1021 = vrot.slane %v458, 1
        %v1022 = vrot.slane %v459, 1
        %v1023 = vsel %vm510, %v1021, %v1022
        %v1032 = vadd.f32 %v976, %v1002
        %v1033 = vadd.f32 %v977, %v1005
        %v1034 = vadd.f32 %v978, %v1008
        %v1035 = vadd.f32 %v979, %v1011
        %v1036 = vadd.f32 %v980, %v1014
        %v1037 = vadd.f32 %v981, %v1017
        %v1038 = vadd.f32 %v982, %v1020
        %v1039 = vadd.f32 %v983, %v1023
        %vm1040 = vcmask 261120
        %v1041 = vsel %vm1040, %v1032, 0.0
        %1042 = vadd.xlane.f32.xlu0 %v1041
        %v1043 = vpop.xlane.xlu0 %1042
        %v1044 = vsel %vm1040, %v1033, 0.0
        %1045 = vadd.xlane.f32.xlu0 %v1044
        %v1046 = vpop.xlane.xlu0 %1045
        %v1047 = vsel %vm1040, %v1034, 0.0
        %1048 = vadd.xlane.f32.xlu0 %v1047
        %v1049 = vpop.xlane.xlu0 %1048
        %v1050 = vsel %vm1040, %v1035, 0.0
        %1051 = vadd.xlane.f32.xlu0 %v1050
        %v1052 = vpop.xlane.xlu0 %1051
        %v1053 = vsel %vm1040, %v1036, 0.0
        %1054 = vadd.xlane.f32.xlu0 %v1053
        %v1055 = vpop.xlane.xlu0 %1054
        %v1056 = vsel %vm1040, %v1037, 0.0
        %1057 = vadd.xlane.f32.xlu0 %v1056
        %v1058 = vpop.xlane.xlu0 %1057
        %v1059 = vsel %vm1040, %v1038, 0.0
        %1060 = vadd.xlane.f32.xlu0 %v1059
        %v1061 = vpop.xlane.xlu0 %1060
        %v1062 = vsel %vm1040, %v1039, 0.0
        %1063 = vadd.xlane.f32.xlu0 %v1062
        %v1064 = vpop.xlane.xlu0 %1063
        %v1065 = vrcp.pop 32.0
        %v1066 = vmul.f32 %v1043, %v1065
        %v1067 = vmul.f32 %v1046, %v1065
        %v1068 = vmul.f32 %v1049, %v1065
        %v1069 = vmul.f32 %v1052, %v1065
        %v1070 = vmul.f32 %v1055, %v1065
        %v1071 = vmul.f32 %v1058, %v1065
        %v1072 = vmul.f32 %v1061, %v1065
        %v1073 = vmul.f32 %v1064, %v1065
        %v1074 = vsub.f32 %v1032, %v1066
        %v1075 = vsub.f32 %v1033, %v1067
        %v1076 = vsub.f32 %v1034, %v1068
        %v1077 = vsub.f32 %v1035, %v1069
        %v1078 = vsub.f32 %v1036, %v1070
        %v1079 = vsub.f32 %v1037, %v1071
        %v1080 = vsub.f32 %v1038, %v1072
        %v1081 = vsub.f32 %v1039, %v1073
        %v1082 = vmul.f32 %v1074, %v1074
        %v1083 = vmul.f32 %v1075, %v1075
        %v1084 = vmul.f32 %v1076, %v1076
        %v1085 = vmul.f32 %v1077, %v1077
        %v1086 = vmul.f32 %v1078, %v1078
        %v1087 = vmul.f32 %v1079, %v1079
        %v1088 = vmul.f32 %v1080, %v1080
        %v1089 = vmul.f32 %v1081, %v1081
        %v1090 = vsel %vm1040, %v1082, 0.0
        %1091 = vadd.xlane.f32.xlu0 %v1090
        %v1092 = vpop.xlane.xlu0 %1091
        %v1093 = vsel %vm1040, %v1083, 0.0
        %1094 = vadd.xlane.f32.xlu0 %v1093
        %v1095 = vpop.xlane.xlu0 %1094
        %v1096 = vsel %vm1040, %v1084, 0.0
        %1097 = vadd.xlane.f32.xlu0 %v1096
        %v1098 = vpop.xlane.xlu0 %1097
        %v1099 = vsel %vm1040, %v1085, 0.0
        %1100 = vadd.xlane.f32.xlu0 %v1099
        %v1101 = vpop.xlane.xlu0 %1100
        %v1102 = vsel %vm1040, %v1086, 0.0
        %1103 = vadd.xlane.f32.xlu0 %v1102
        %v1104 = vpop.xlane.xlu0 %1103
        %v1105 = vsel %vm1040, %v1087, 0.0
        %1106 = vadd.xlane.f32.xlu0 %v1105
        %v1107 = vpop.xlane.xlu0 %1106
        %v1108 = vsel %vm1040, %v1088, 0.0
        %1109 = vadd.xlane.f32.xlu0 %v1108
        %v1110 = vpop.xlane.xlu0 %1109
        %v1111 = vsel %vm1040, %v1089, 0.0
        %1112 = vadd.xlane.f32.xlu0 %v1111
        %v1113 = vpop.xlane.xlu0 %1112
        %v1114 = vmul.f32 %v1092, %v1065
        %v1115 = vmul.f32 %v1095, %v1065
        %v1116 = vmul.f32 %v1098, %v1065
        %v1117 = vmul.f32 %v1101, %v1065
        %v1118 = vmul.f32 %v1104, %v1065
        %v1119 = vmul.f32 %v1107, %v1065
        %v1120 = vmul.f32 %v1110, %v1065
        %v1121 = vmul.f32 %v1113, %v1065
        %v1122 = vadd.f32 %v1114, 1e-05
        %v1123 = vadd.f32 %v1115, 1e-05
        %v1124 = vadd.f32 %v1116, 1e-05
        %v1125 = vadd.f32 %v1117, 1e-05
        %v1126 = vadd.f32 %v1118, 1e-05
        %v1127 = vadd.f32 %v1119, 1e-05
        %v1128 = vadd.f32 %v1120, 1e-05
        %v1129 = vadd.f32 %v1121, 1e-05
        %v1130 = vrsqrt.pop %v1122
        %v1131 = vrsqrt.pop %v1123
        %v1132 = vrsqrt.pop %v1124
        %v1133 = vrsqrt.pop %v1125
        %v1134 = vrsqrt.pop %v1126
        %v1135 = vrsqrt.pop %v1127
        %v1136 = vrsqrt.pop %v1128
        %v1137 = vrsqrt.pop %v1129
        %v1138 = vmul.f32 %v1074, %v1130
        %v1139 = vmul.f32 %v1075, %v1131
        %v1140 = vmul.f32 %v1076, %v1132
        %v1141 = vmul.f32 %v1077, %v1133
        %v1142 = vmul.f32 %v1078, %v1134
        %v1143 = vmul.f32 %v1079, %v1135
        %v1144 = vmul.f32 %v1080, %v1136
        %v1145 = vmul.f32 %v1081, %v1137
        %v1146 = vlaneseq
        %v1147 = vshrl.u32 %v1146, 7
        %v1148 = vsub.s32 2, %v1147
        %v1149 = vrot.slane %v440, %v1148
        %v1150 = vmul.f32 %v1138, %v1149
        %v1151 = vmul.f32 %v1139, %v1149
        %v1152 = vmul.f32 %v1140, %v1149
        %v1153 = vmul.f32 %v1141, %v1149
        %v1154 = vmul.f32 %v1142, %v1149
        %v1155 = vmul.f32 %v1143, %v1149
        %v1156 = vmul.f32 %v1144, %v1149
        %v1157 = vmul.f32 %v1145, %v1149
        %v1158 = vlaneseq
        %v1159 = vshrl.u32 %v1158, 7
        %v1160 = vsub.s32 3, %v1159
        %v1161 = vrot.slane %v440, %v1160
        %v1162 = vadd.f32 %v1150, %v1161
        %v1163 = vadd.f32 %v1151, %v1161
        %v1164 = vadd.f32 %v1152, %v1161
        %v1165 = vadd.f32 %v1153, %v1161
        %v1166 = vadd.f32 %v1154, %v1161
        %v1167 = vadd.f32 %v1155, %v1161
        %v1168 = vadd.f32 %v1156, %v1161
        %v1169 = vadd.f32 %v1157, %v1161
        %v1170 = vld [vmem:[%s5] sm:$0xff]
        %v1171 = vld [vmem:[%s5 + $0x8] sm:$0xff]
        %v1172 = vld [vmem:[%s5 + $0x10] sm:$0xff]
        %v1173 = vld [vmem:[%s5 + $0x18] sm:$0xff]
        %v1174 = vld [vmem:[%s6] sm:$0xff]
        %v1175 = vld [vmem:[%s6 + $0x8] sm:$0xff]
        %v1176 = vld [vmem:[%s6 + $0x10] sm:$0xff]
        %v1177 = vld [vmem:[%s6 + $0x18] sm:$0xff]
        %v1178 = vld [vmem:[%s7] sm:$0xff]
        %v1179 = vld [vmem:[%s7 + $0x8] sm:$0xff]
        %v1180 = vld [vmem:[%s7 + $0x10] sm:$0xff]
        %v1181 = vld [vmem:[%s7 + $0x18] sm:$0xff]
        %v1182 = vld [vmem:[%s8] sm:$0xff]
        %v1183 = vld [vmem:[%s8 + $0x8] sm:$0xff]
        %v1184 = vld [vmem:[%s8 + $0x10] sm:$0xff]
        %v1185 = vld [vmem:[%s8 + $0x18] sm:$0xff]
        %v1186 = vld [vmem:[%s9] sm:$0xff]
        %v1187 = vld [vmem:[%s9 + $0x8] sm:$0xff]
        %v1188 = vld [vmem:[%s9 + $0x10] sm:$0xff]
        %v1189 = vld [vmem:[%s9 + $0x18] sm:$0xff]
        %v1190 = vld [vmem:[%s10] sm:$0xff]
        %v1191 = vld [vmem:[%s10 + $0x8] sm:$0xff]
        %v1192 = vld [vmem:[%s10 + $0x10] sm:$0xff]
        %v1193 = vld [vmem:[%s10 + $0x18] sm:$0xff]
        %v1194 = vld [vmem:[%s10 + $0x20] sm:$0xff]
        %v1195 = vld [vmem:[%s10 + $0x28] sm:$0xff]
        %v1196 = vld [vmem:[%s10 + $0x30] sm:$0xff]
        %v1197 = vld [vmem:[%s10 + $0x38] sm:$0xff]
        %v1198 = vld [vmem:[%s10 + $0x40] sm:$0xff]
        %v1199 = vld [vmem:[%s10 + $0x48] sm:$0xff]
        %v1200 = vld [vmem:[%s10 + $0x50] sm:$0xff]
        %v1201 = vld [vmem:[%s10 + $0x58] sm:$0xff]
        %v1202 = vld [vmem:[%s10 + $0x60] sm:$0xff]
        %v1203 = vld [vmem:[%s10 + $0x68] sm:$0xff]
        %v1204 = vld [vmem:[%s10 + $0x70] sm:$0xff]
        %v1205 = vld [vmem:[%s10 + $0x78] sm:$0xff]
        %v1206 = vld [vmem:[%s11] sm:$0xff]
        %v1207 = vld [vmem:[%s11 + $0x8] sm:$0xff]
        %v1208 = vld [vmem:[%s11 + $0x10] sm:$0xff]
        %v1209 = vld [vmem:[%s11 + $0x18] sm:$0xff]
        %v1210 = vld [vmem:[%s12] sm:$0xff]
        %v1211 = vld [vmem:[%s12 + $0x8] sm:$0xff]
        %v1212 = vld [vmem:[%s12 + $0x10] sm:$0xff]
        %v1213 = vld [vmem:[%s12 + $0x18] sm:$0xff]
        %v1214 = vld [vmem:[%s12 + $0x20] sm:$0xff]
        %v1215 = vld [vmem:[%s12 + $0x28] sm:$0xff]
        %v1216 = vld [vmem:[%s12 + $0x30] sm:$0xff]
        %v1217 = vld [vmem:[%s12 + $0x38] sm:$0xff]
        %v1218 = vld [vmem:[%s12 + $0x40] sm:$0xff]
        %v1219 = vld [vmem:[%s12 + $0x48] sm:$0xff]
        %v1220 = vld [vmem:[%s12 + $0x50] sm:$0xff]
        %v1221 = vld [vmem:[%s12 + $0x58] sm:$0xff]
        %v1222 = vld [vmem:[%s12 + $0x60] sm:$0xff]
        %v1223 = vld [vmem:[%s12 + $0x68] sm:$0xff]
        %v1224 = vld [vmem:[%s12 + $0x70] sm:$0xff]
        %v1225 = vld [vmem:[%s12 + $0x78] sm:$0xff]
        %v1226 = vlaneseq
        %v1227 = vshrl.u32 %v1226, 7
        %v1228 = vsub.s32 4, %v1227
        %v1229 = vrot.slane %v440, %v1228
        %v1231 = vsel %vm1040, %v1162, 0
        %v1234 = vsel %vm1040, %v1163, 0
        %v1237 = vsel %vm1040, %v1164, 0
        %v1240 = vsel %vm1040, %v1165, 0
        %v1243 = vsel %vm1040, %v1166, 0
        %v1246 = vsel %vm1040, %v1167, 0
        %v1249 = vsel %vm1040, %v1168, 0
        %v1252 = vsel %vm1040, %v1169, 0
        %1254 = vmatprep.subr.mxu0 0.0
        %1255 = vmatpush1.msra.mxu0 %v1170
        %1256 = vmatprep.subr.mxu0 0.0
        %1257 = vmatpush1.msra.mxu0 %v1171
        %1258 = vmatprep.subr.mxu0 0.0
        %1259 = vmatpush1.msra.mxu0 %v1172
        %1260 = vmatprep.subr.mxu0 0.0
        %1261 = vmatpush1.msra.mxu0 %v1173
        %1262 = vmatprep.subr.mxu0 0.0
        %1263 = vmatpush1.msra.mxu0 0.0
        %1264 = vmatprep.subr.mxu0 0.0
        %1265 = vmatpush1.msra.mxu0 0.0
        %1266 = vmatprep.subr.mxu0 0.0
        %1267 = vmatpush1.msra.mxu0 0.0
        %1268 = vmatprep.subr.mxu0 0.0
        %1269 = vmatpush1.msra.mxu0 0.0
        %1270 = vmatprep.subr.mxu0 0.0
        %1271 = vmatpush1.msra.mxu0 0.0
        %1272 = vmatprep.subr.mxu0 0.0
        %1273 = vmatpush1.msra.mxu0 0.0
        %1274 = vmatprep.subr.mxu0 0.0
        %1275 = vmatpush1.msra.mxu0 0.0
        %1276 = vmatprep.subr.mxu0 0.0
        %1277 = vmatpush1.msra.mxu0 0.0
        %1278 = vmatprep.subr.mxu0 0.0
        %1279 = vmatpush1.msra.mxu0 0.0
        %1280 = vmatprep.subr.mxu0 0.0
        %1281 = vmatpush1.msra.mxu0 0.0
        %1282 = vmatprep.subr.mxu0 0.0
        %1283 = vmatpush1.msra.mxu0 0.0
        %1284 = vmatprep.subr.mxu0 0.0
        %1285 = vmatpush1.msra.mxu0 0.0
        %1286 = vmatprep.subr.mxu0 0.0
        %1287 = vmatpush1.msra.mxu0 0.0
        %1288 = vmatprep.subr.mxu0 0.0
        %1289 = vmatpush1.msra.mxu0 0.0
        %1290 = vmatprep.subr.mxu0 0.0
        %1291 = vmatpush1.msra.mxu0 0.0
        %1292 = vmatprep.subr.mxu0 0.0
        %1293 = vmatpush1.msra.mxu0 0.0
        %1294 = vmatprep.subr.mxu0 0.0
        %1295 = vmatpush1.msra.mxu0 0.0
        %1296 = vmatprep.subr.mxu0 0.0
        %1297 = vmatpush1.msra.mxu0 0.0
        %1298 = vmatprep.subr.mxu0 0.0
        %1299 = vmatpush1.msra.mxu0 0.0
        %1300 = vmatprep.subr.mxu0 0.0
        %1301 = vmatpush1.msra.mxu0 0.0
        %1302 = vmatprep.subr.mxu0 0.0
        %1303 = vmatpush1.msra.mxu0 0.0
        %1304 = vmatprep.subr.mxu0 0.0
        %1305 = vmatpush1.msra.mxu0 0.0
        %1306 = vmatprep.subr.mxu0 0.0
        %1307 = vmatpush1.msra.mxu0 0.0
        %1308 = vmatprep.subr.mxu0 0.0
        %1309 = vmatpush1.msra.mxu0 0.0
        %1310 = vmatprep.subr.mxu0 0.0
        %1311 = vmatpush1.msra.mxu0 0.0
        %1312 = vmatprep.subr.mxu0 0.0
        %1313 = vmatpush1.msra.mxu0 0.0
        %1314 = vmatprep.subr.mxu0 0.0
        %1315 = vmatpush1.msra.mxu0 0.0
        %1316 = vmatprep.subr.mxu0 0.0
        %1317 = vmatpush1.msra.mxu0 0.0
        %1318 = vmatprep.mubr.f32.mxu0 0.0
        %1319 = vmatmul.mubr.f32.gmra.mrb[0].mxu0 %v1231
        %v1320 = vpop.f32.mrb[0].mxu0
        %v1321 = vadd.f32 %v1229, %v1320
        %v1322 = vpop.f32.mrb[0].mxu0
        %1323 = vmatprep.mubr.f32.mxu0 0.0
        %1324 = vmatmul.mubr.f32.gmra.mrb[0].mxu0 %v1234
        %v1325 = vpop.f32.mrb[0].mxu0
        %v1326 = vadd.f32 %v1229, %v1325
        %v1327 = vpop.f32.mrb[0].mxu0
        %1328 = vmatprep.mubr.f32.mxu0 0.0
        %1329 = vmatmul.mubr.f32.gmra.mrb[0].mxu0 %v1237
        %v1330 = vpop.f32.mrb[0].mxu0
        %v1331 = vadd.f32 %v1229, %v1330
        %v1332 = vpop.f32.mrb[0].mxu0
        %1333 = vmatprep.mubr.f32.mxu0 0.0
        %1334 = vmatmul.mubr.f32.gmra.mrb[0].mxu0 %v1240
        %v1335 = vpop.f32.mrb[0].mxu0
        %v1336 = vadd.f32 %v1229, %v1335
        %v1337 = vpop.f32.mrb[0].mxu0
        %1338 = vmatprep.mubr.f32.mxu0 0.0
        %1339 = vmatmul.mubr.f32.gmra.mrb[0].mxu0 %v1243
        %v1340 = vpop.f32.mrb[0].mxu0
        %v1341 = vadd.f32 %v1229, %v1340
        %v1342 = vpop.f32.mrb[0].mxu0
        %1343 = vmatprep.mubr.f32.mxu0 0.0
        %1344 = vmatmul.mubr.f32.gmra.mrb[0].mxu0 %v1246
        %v1345 = vpop.f32.mrb[0].mxu0
        %v1346 = vadd.f32 %v1229, %v1345
        %v1347 = vpop.f32.mrb[0].mxu0
        %1348 = vmatprep.mubr.f32.mxu0 0.0
        %1349 = vmatmul.mubr.f32.gmra.mrb[0].mxu0 %v1249
        %v1350 = vpop.f32.mrb[0].mxu0
        %v1351 = vadd.f32 %v1229, %v1350
        %v1352 = vpop.f32.mrb[0].mxu0
        %1353 = vmatprep.mubr.f32.mxu0 0.0
        %1354 = vmatmul.mubr.f32.gmra.mrb[0].mxu0 %v1252
        %v1355 = vpop.f32.mrb[0].mxu0
        %v1356 = vadd.f32 %v1229, %v1355
        %v1357 = vpop.f32.mrb[0].mxu0
        %1358 = vdwg.mxu0
        %v1359 = vlaneseq
        %v1360 = vshrl.u32 %v1359, 7
        %v1361 = vsub.s32 5, %v1360
        %v1362 = vrot.slane %v440, %v1361
        %1363 = vmatprep.subr.mxu0 0.0
        %1364 = vmatpush1.msra.mxu0 %v1174
        %1365 = vmatprep.subr.mxu0 0.0
        %1366 = vmatpush1.msra.mxu0 %v1175
        %1367 = vmatprep.subr.mxu0 0.0
        %1368 = vmatpush1.msra.mxu0 %v1176
        %1369 = vmatprep.subr.mxu0 0.0
        %1370 = vmatpush1.msra.mxu0 %v1177
        %1371 = vmatprep.subr.mxu0 0.0
        %1372 = vmatpush1.msra.mxu0 0.0
        %1373 = vmatprep.subr.mxu0 0.0
        %1374 = vmatpush1.msra.mxu0 0.0
        %1375 = vmatprep.subr.mxu0 0.0
        %1376 = vmatpush1.msra.mxu0 0.0
        %1377 = vmatprep.subr.mxu0 0.0
        %1378 = vmatpush1.msra.mxu0 0.0
        %1379 = vmatprep.subr.mxu0 0.0
        %1380 = vmatpush1.msra.mxu0 0.0
        %1381 = vmatprep.subr.mxu0 0.0
        %1382 = vmatpush1.msra.mxu0 0.0
        %1383 = vmatprep.subr.mxu0 0.0
        %1384 = vmatpush1.msra.mxu0 0.0
        %1385 = vmatprep.subr.mxu0 0.0
        %1386 = vmatpush1.msra.mxu0 0.0
        %1387 = vmatprep.subr.mxu0 0.0
        %1388 = vmatpush1.msra.mxu0 0.0
        %1389 = vmatprep.subr.mxu0 0.0
        %1390 = vmatpush1.msra.mxu0 0.0
        %1391 = vmatprep.subr.mxu0 0.0
        %1392 = vmatpush1.msra.mxu0 0.0
        %1393 = vmatprep.subr.mxu0 0.0
        %1394 = vmatpush1.msra.mxu0 0.0
        %1395 = vmatprep.subr.mxu0 0.0
        %1396 = vmatpush1.msra.mxu0 0.0
        %1397 = vmatprep.subr.mxu0 0.0
        %1398 = vmatpush1.msra.mxu0 0.0
        %1399 = vmatprep.subr.mxu0 0.0
        %1400 = vmatpush1.msra.mxu0 0.0
        %1401 = vmatprep.subr.mxu0 0.0
        %1402 = vmatpush1.msra.mxu0 0.0
        %1403 = vmatprep.subr.mxu0 0.0
        %1404 = vmatpush1.msra.mxu0 0.0
        %1405 = vmatprep.subr.mxu0 0.0
        %1406 = vmatpush1.msra.mxu0 0.0
        %1407 = vmatprep.subr.mxu0 0.0
        %1408 = vmatpush1.msra.mxu0 0.0
        %1409 = vmatprep.subr.mxu0 0.0
        %1410 = vmatpush1.msra.mxu0 0.0
        %1411 = vmatprep.subr.mxu0 0.0
        %1412 = vmatpush1.msra.mxu0 0.0
        %1413 = vmatprep.subr.mxu0 0.0
        %1414 = vmatpush1.msra.mxu0 0.0
        %1415 = vmatprep.subr.mxu0 0.0
        %1416 = vmatpush1.msra.mxu0 0.0
        %1417 = vmatprep.subr.mxu0 0.0
        %1418 = vmatpush1.msra.mxu0 0.0
        %1419 = vmatprep.subr.mxu0 0.0
        %1420 = vmatpush1.msra.mxu0 0.0
        %1421 = vmatprep.subr.mxu0 0.0
        %1422 = vmatpush1.msra.mxu0 0.0
        %1423 = vmatprep.subr.mxu0 0.0
        %1424 = vmatpush1.msra.mxu0 0.0
        %1425 = vmatprep.subr.mxu0 0.0
        %1426 = vmatpush1.msra.mxu0 0.0
        %1427 = vmatprep.mubr.f32.mxu0 0.0
        %1428 = vmatmul.mubr.f32.gmra.mrb[0].mxu0 %v1231
        %v1429 = vpop.f32.mrb[0].mxu0
        %v1430 = vadd.f32 %v1362, %v1429
        %v1431 = vpop.f32.mrb[0].mxu0
        %1432 = vmatprep.mubr.f32.mxu0 0.0
        %1433 = vmatmul.mubr.f32.gmra.mrb[0].mxu0 %v1234
        %v1434 = vpop.f32.mrb[0].mxu0
        %v1435 = vadd.f32 %v1362, %v1434
        %v1436 = vpop.f32.mrb[0].mxu0
        %1437 = vmatprep.mubr.f32.mxu0 0.0
        %1438 = vmatmul.mubr.f32.gmra.mrb[0].mxu0 %v1237
        %v1439 = vpop.f32.mrb[0].mxu0
        %v1440 = vadd.f32 %v1362, %v1439
        %v1441 = vpop.f32.mrb[0].mxu0
        %1442 = vmatprep.mubr.f32.mxu0 0.0
        %1443 = vmatmul.mubr.f32.gmra.mrb[0].mxu0 %v1240
        %v1444 = vpop.f32.mrb[0].mxu0
        %v1445 = vadd.f32 %v1362, %v1444
        %v1446 = vpop.f32.mrb[0].mxu0
        %1447 = vmatprep.mubr.f32.mxu0 0.0
        %1448 = vmatmul.mubr.f32.gmra.mrb[0].mxu0 %v1243
        %v1449 = vpop.f32.mrb[0].mxu0
        %v1450 = vadd.f32 %v1362, %v1449
        %v1451 = vpop.f32.mrb[0].mxu0
        %1452 = vmatprep.mubr.f32.mxu0 0.0
        %1453 = vmatmul.mubr.f32.gmra.mrb[0].mxu0 %v1246
        %v1454 = vpop.f32.mrb[0].mxu0
        %v1455 = vadd.f32 %v1362, %v1454
        %v1456 = vpop.f32.mrb[0].mxu0
        %1457 = vmatprep.mubr.f32.mxu0 0.0
        %1458 = vmatmul.mubr.f32.gmra.mrb[0].mxu0 %v1249
        %v1459 = vpop.f32.mrb[0].mxu0
        %v1460 = vadd.f32 %v1362, %v1459
        %v1461 = vpop.f32.mrb[0].mxu0
        %1462 = vmatprep.mubr.f32.mxu0 0.0
        %1463 = vmatmul.mubr.f32.gmra.mrb[0].mxu0 %v1252
        %v1464 = vpop.f32.mrb[0].mxu0
        %v1465 = vadd.f32 %v1362, %v1464
        %v1466 = vpop.f32.mrb[0].mxu0
        %1467 = vdwg.mxu0
        %v1468 = vlaneseq
        %v1469 = vshrl.u32 %v1468, 7
        %v1470 = vsub.s32 6, %v1469
        %v1471 = vrot.slane %v440, %v1470
        %1472 = vmatprep.subr.mxu0 0.0
        %1473 = vmatpush1.msra.mxu0 %v1178
        %1474 = vmatprep.subr.mxu0 0.0
        %1475 = vmatpush1.msra.mxu0 %v1179
        %1476 = vmatprep.subr.mxu0 0.0
        %1477 = vmatpush1.msra.mxu0 %v1180
        %1478 = vmatprep.subr.mxu0 0.0
        %1479 = vmatpush1.msra.mxu0 %v1181
        %1480 = vmatprep.subr.mxu0 0.0
        %1481 = vmatpush1.msra.mxu0 0.0
        %1482 = vmatprep.subr.mxu0 0.0
        %1483 = vmatpush1.msra.mxu0 0.0
        %1484 = vmatprep.subr.mxu0 0.0
        %1485 = vmatpush1.msra.mxu0 0.0
        %1486 = vmatprep.subr.mxu0 0.0
        %1487 = vmatpush1.msra.mxu0 0.0
        %1488 = vmatprep.subr.mxu0 0.0
        %1489 = vmatpush1.msra.mxu0 0.0
        %1490 = vmatprep.subr.mxu0 0.0
        %1491 = vmatpush1.msra.mxu0 0.0
        %1492 = vmatprep.subr.mxu0 0.0
        %1493 = vmatpush1.msra.mxu0 0.0
        %1494 = vmatprep.subr.mxu0 0.0
        %1495 = vmatpush1.msra.mxu0 0.0
        %1496 = vmatprep.subr.mxu0 0.0
        %1497 = vmatpush1.msra.mxu0 0.0
        %1498 = vmatprep.subr.mxu0 0.0
        %1499 = vmatpush1.msra.mxu0 0.0
        %1500 = vmatprep.subr.mxu0 0.0
        %1501 = vmatpush1.msra.mxu0 0.0
        %1502 = vmatprep.subr.mxu0 0.0
        %1503 = vmatpush1.msra.mxu0 0.0
        %1504 = vmatprep.subr.mxu0 0.0
        %1505 = vmatpush1.msra.mxu0 0.0
        %1506 = vmatprep.subr.mxu0 0.0
        %1507 = vmatpush1.msra.mxu0 0.0
        %1508 = vmatprep.subr.mxu0 0.0
        %1509 = vmatpush1.msra.mxu0 0.0
        %1510 = vmatprep.subr.mxu0 0.0
        %1511 = vmatpush1.msra.mxu0 0.0
        %1512 = vmatprep.subr.mxu0 0.0
        %1513 = vmatpush1.msra.mxu0 0.0
        %1514 = vmatprep.subr.mxu0 0.0
        %1515 = vmatpush1.msra.mxu0 0.0
        %1516 = vmatprep.subr.mxu0 0.0
        %1517 = vmatpush1.msra.mxu0 0.0
        %1518 = vmatprep.subr.mxu0 0.0
        %1519 = vmatpush1.msra.mxu0 0.0
        %1520 = vmatprep.subr.mxu0 0.0
        %1521 = vmatpush1.msra.mxu0 0.0
        %1522 = vmatprep.subr.mxu0 0.0
        %1523 = vmatpush1.msra.mxu0 0.0
        %1524 = vmatprep.subr.mxu0 0.0
        %1525 = vmatpush1.msra.mxu0 0.0
        %1526 = vmatprep.subr.mxu0 0.0
        %1527 = vmatpush1.msra.mxu0 0.0
        %1528 = vmatprep.subr.mxu0 0.0
        %1529 = vmatpush1.msra.mxu0 0.0
        %1530 = vmatprep.subr.mxu0 0.0
        %1531 = vmatpush1.msra.mxu0 0.0
        %1532 = vmatprep.subr.mxu0 0.0
        %1533 = vmatpush1.msra.mxu0 0.0
        %1534 = vmatprep.subr.mxu0 0.0
        %1535 = vmatpush1.msra.mxu0 0.0
        %1536 = vmatprep.mubr.f32.mxu0 0.0
        %1537 = vmatmul.mubr.f32.gmra.mrb[0].mxu0 %v1231
        %v1538 = vpop.f32.mrb[0].mxu0
        %v1539 = vadd.f32 %v1471, %v1538
        %v1540 = vpop.f32.mrb[0].mxu0
        %1541 = vmatprep.mubr.f32.mxu0 0.0
        %1542 = vmatmul.mubr.f32.gmra.mrb[0].mxu0 %v1234
        %v1543 = vpop.f32.mrb[0].mxu0
        %v1544 = vadd.f32 %v1471, %v1543
        %v1545 = vpop.f32.mrb[0].mxu0
        %1546 = vmatprep.mubr.f32.mxu0 0.0
        %1547 = vmatmul.mubr.f32.gmra.mrb[0].mxu0 %v1237
        %v1548 = vpop.f32.mrb[0].mxu0
        %v1549 = vadd.f32 %v1471, %v1548
        %v1550 = vpop.f32.mrb[0].mxu0
        %1551 = vmatprep.mubr.f32.mxu0 0.0
        %1552 = vmatmul.mubr.f32.gmra.mrb[0].mxu0 %v1240
        %v1553 = vpop.f32.mrb[0].mxu0
        %v1554 = vadd.f32 %v1471, %v1553
        %v1555 = vpop.f32.mrb[0].mxu0
        %1556 = vmatprep.mubr.f32.mxu0 0.0
        %1557 = vmatmul.mubr.f32.gmra.mrb[0].mxu0 %v1243
        %v1558 = vpop.f32.mrb[0].mxu0
        %v1559 = vadd.f32 %v1471, %v1558
        %v1560 = vpop.f32.mrb[0].mxu0
        %1561 = vmatprep.mubr.f32.mxu0 0.0
        %1562 = vmatmul.mubr.f32.gmra.mrb[0].mxu0 %v1246
        %v1563 = vpop.f32.mrb[0].mxu0
        %v1564 = vadd.f32 %v1471, %v1563
        %v1565 = vpop.f32.mrb[0].mxu0
        %1566 = vmatprep.mubr.f32.mxu0 0.0
        %1567 = vmatmul.mubr.f32.gmra.mrb[0].mxu0 %v1249
        %v1568 = vpop.f32.mrb[0].mxu0
        %v1569 = vadd.f32 %v1471, %v1568
        %v1570 = vpop.f32.mrb[0].mxu0
        %1571 = vmatprep.mubr.f32.mxu0 0.0
        %1572 = vmatmul.mubr.f32.gmra.mrb[0].mxu0 %v1252
        %v1573 = vpop.f32.mrb[0].mxu0
        %v1574 = vadd.f32 %v1471, %v1573
        %v1575 = vpop.f32.mrb[0].mxu0
        %1576 = vdwg.mxu0
        %v1578 = vsel %vm1040, %v1321, 0
        %v1581 = vsel %vm1040, %v1326, 0
        %v1584 = vsel %vm1040, %v1331, 0
        %v1587 = vsel %vm1040, %v1336, 0
        %v1590 = vsel %vm1040, %v1341, 0
        %v1593 = vsel %vm1040, %v1346, 0
        %v1596 = vsel %vm1040, %v1351, 0
        %v1599 = vsel %vm1040, %v1356, 0
        %v1602 = vsel %vm1040, %v1430, 0
        %v1605 = vsel %vm1040, %v1435, 0
        %v1608 = vsel %vm1040, %v1440, 0
        %v1611 = vsel %vm1040, %v1445, 0
        %v1614 = vsel %vm1040, %v1450, 0
        %v1617 = vsel %vm1040, %v1455, 0
        %v1620 = vsel %vm1040, %v1460, 0
        %v1623 = vsel %vm1040, %v1465, 0
        %1625 = vmatprep.subr.mxu0 0.0
        %1626 = vmatpush1.xpose.msra.mxu0 %v1602
        %1627 = vmatprep.subr.mxu0 0.0
        %1628 = vmatpush1.xpose.msra.mxu0 %v1605
        %1629 = vmatprep.subr.mxu0 0.0
        %1630 = vmatpush1.xpose.msra.mxu0 %v1608
        %1631 = vmatprep.subr.mxu0 0.0
        %1632 = vmatpush1.xpose.msra.mxu0 %v1611
        %1633 = vmatprep.subr.mxu0 0.0
        %1634 = vmatpush1.xpose.msra.mxu0 %v1614
        %1635 = vmatprep.subr.mxu0 0.0
        %1636 = vmatpush1.xpose.msra.mxu0 %v1617
        %1637 = vmatprep.subr.mxu0 0.0
        %1638 = vmatpush1.xpose.msra.mxu0 %v1620
        %1639 = vmatprep.subr.mxu0 0.0
        %1640 = vmatpush1.xpose.msra.mxu0 %v1623
        %1641 = vmatprep.subr.mxu0 0.0
        %1642 = vmatpush1.xpose.msra.mxu0 0.0
        %1643 = vmatprep.subr.mxu0 0.0
        %1644 = vmatpush1.xpose.msra.mxu0 0.0
        %1645 = vmatprep.subr.mxu0 0.0
        %1646 = vmatpush1.xpose.msra.mxu0 0.0
        %1647 = vmatprep.subr.mxu0 0.0
        %1648 = vmatpush1.xpose.msra.mxu0 0.0
        %1649 = vmatprep.subr.mxu0 0.0
        %1650 = vmatpush1.xpose.msra.mxu0 0.0
        %1651 = vmatprep.subr.mxu0 0.0
        %1652 = vmatpush1.xpose.msra.mxu0 0.0
        %1653 = vmatprep.subr.mxu0 0.0
        %1654 = vmatpush1.xpose.msra.mxu0 0.0
        %1655 = vmatprep.subr.mxu0 0.0
        %1656 = vmatpush1.xpose.msra.mxu0 0.0
        %1657 = vmatprep.subr.mxu0 0.0
        %1658 = vmatpush1.xpose.msra.mxu0 0.0
        %1659 = vmatprep.subr.mxu0 0.0
        %1660 = vmatpush1.xpose.msra.mxu0 0.0
        %1661 = vmatprep.subr.mxu0 0.0
        %1662 = vmatpush1.xpose.msra.mxu0 0.0
        %1663 = vmatprep.subr.mxu0 0.0
        %1664 = vmatpush1.xpose.msra.mxu0 0.0
        %1665 = vmatprep.subr.mxu0 0.0
        %1666 = vmatpush1.xpose.msra.mxu0 0.0
        %1667 = vmatprep.subr.mxu0 0.0
        %1668 = vmatpush1.xpose.msra.mxu0 0.0
        %1669 = vmatprep.subr.mxu0 0.0
        %1670 = vmatpush1.xpose.msra.mxu0 0.0
        %1671 = vmatprep.subr.mxu0 0.0
        %1672 = vmatpush1.xpose.msra.mxu0 0.0
        %1673 = vmatprep.subr.mxu0 0.0
        %1674 = vmatpush1.xpose.msra.mxu0 0.0
        %1675 = vmatprep.subr.mxu0 0.0
        %1676 = vmatpush1.xpose.msra.mxu0 0.0
        %1677 = vmatprep.subr.mxu0 0.0
        %1678 = vmatpush1.xpose.msra.mxu0 0.0
        %1679 = vmatprep.subr.mxu0 0.0
        %1680 = vmatpush1.xpose.msra.mxu0 0.0
        %1681 = vmatprep.subr.mxu0 0.0
        %1682 = vmatpush1.xpose.msra.mxu0 0.0
        %1683 = vmatprep.subr.mxu0 0.0
        %1684 = vmatpush1.xpose.msra.mxu0 0.0
        %1685 = vmatprep.subr.mxu0 0.0
        %1686 = vmatpush1.xpose.msra.mxu0 0.0
        %1687 = vmatprep.subr.mxu0 0.0
        %1688 = vmatpush1.xpose.msra.mxu0 0.0
        %1689 = vmatprep.mubr.f32.mxu0 0.0
        %1690 = vmatmul.mubr.f32.gmra.mrb[0].mxu0 %v1578
        %v1691 = vpop.f32.mrb[0].mxu0
        %v1692 = vadd.f32 0.0, %v1691
        %v1693 = vpop.f32.mrb[0].mxu0
        %1694 = vmatprep.mubr.f32.mxu0 0.0
        %1695 = vmatmul.mubr.f32.gmra.mrb[0].mxu0 %v1581
        %v1696 = vpop.f32.mrb[0].mxu0
        %v1697 = vadd.f32 0.0, %v1696
        %v1698 = vpop.f32.mrb[0].mxu0
        %1699 = vmatprep.mubr.f32.mxu0 0.0
        %1700 = vmatmul.mubr.f32.gmra.mrb[0].mxu0 %v1584
        %v1701 = vpop.f32.mrb[0].mxu0
        %v1702 = vadd.f32 0.0, %v1701
        %v1703 = vpop.f32.mrb[0].mxu0
        %1704 = vmatprep.mubr.f32.mxu0 0.0
        %1705 = vmatmul.mubr.f32.gmra.mrb[0].mxu0 %v1587
        %v1706 = vpop.f32.mrb[0].mxu0
        %v1707 = vadd.f32 0.0, %v1706
        %v1708 = vpop.f32.mrb[0].mxu0
        %1709 = vmatprep.mubr.f32.mxu0 0.0
        %1710 = vmatmul.mubr.f32.gmra.mrb[0].mxu0 %v1590
        %v1711 = vpop.f32.mrb[0].mxu0
        %v1712 = vadd.f32 0.0, %v1711
        %v1713 = vpop.f32.mrb[0].mxu0
        %1714 = vmatprep.mubr.f32.mxu0 0.0
        %1715 = vmatmul.mubr.f32.gmra.mrb[0].mxu0 %v1593
        %v1716 = vpop.f32.mrb[0].mxu0
        %v1717 = vadd.f32 0.0, %v1716
        %v1718 = vpop.f32.mrb[0].mxu0
        %1719 = vmatprep.mubr.f32.mxu0 0.0
        %1720 = vmatmul.mubr.f32.gmra.mrb[0].mxu0 %v1596
        %v1721 = vpop.f32.mrb[0].mxu0
        %v1722 = vadd.f32 0.0, %v1721
        %v1723 = vpop.f32.mrb[0].mxu0
        %1724 = vmatprep.mubr.f32.mxu0 0.0
        %1725 = vmatmul.mubr.f32.gmra.mrb[0].mxu0 %v1599
        %v1726 = vpop.f32.mrb[0].mxu0
        %v1727 = vadd.f32 0.0, %v1726
        %v1728 = vpop.f32.mrb[0].mxu0
        %1729 = vdwg.mxu0
        %vm1730 = vcmask 523264
        %v1731 = vsel %vm1730, %v1692, -inf
        %1732 = vmax.xlane.f32.xlu0 %v1731
        %v1733 = vpop.xlane.xlu0 %1732
        %v1734 = vsel %vm1730, %v1697, -inf
        %1735 = vmax.xlane.f32.xlu0 %v1734
        %v1736 = vpop.xlane.xlu0 %1735
        %v1737 = vsel %vm1730, %v1702, -inf
        %1738 = vmax.xlane.f32.xlu0 %v1737
        %v1739 = vpop.xlane.xlu0 %1738
        %v1740 = vsel %vm1730, %v1707, -inf
        %1741 = vmax.xlane.f32.xlu0 %v1740
        %v1742 = vpop.xlane.xlu0 %1741
        %v1743 = vsel %vm1730, %v1712, -inf
        %1744 = vmax.xlane.f32.xlu0 %v1743
        %v1745 = vpop.xlane.xlu0 %1744
        %v1746 = vsel %vm1730, %v1717, -inf
        %1747 = vmax.xlane.f32.xlu0 %v1746
        %v1748 = vpop.xlane.xlu0 %1747
        %v1749 = vsel %vm1730, %v1722, -inf
        %1750 = vmax.xlane.f32.xlu0 %v1749
        %v1751 = vpop.xlane.xlu0 %1750
        %v1752 = vsel %vm1730, %v1727, -inf
        %1753 = vmax.xlane.f32.xlu0 %v1752
        %v1754 = vpop.xlane.xlu0 %1753
        %v1755 = vmax.f32 %v1733, 0.0
        %v1756 = vmax.f32 %v1736, 0.0
        %v1757 = vmax.f32 %v1739, 0.0
        %v1758 = vmax.f32 %v1742, 0.0
        %v1759 = vmax.f32 %v1745, 0.0
        %v1760 = vmax.f32 %v1748, 0.0
        %v1761 = vmax.f32 %v1751, 0.0
        %v1762 = vmax.f32 %v1754, 0.0
        %v1763 = vsub.f32 %v1692, %v1755
        %v1764 = vsub.f32 %v1697, %v1756
        %v1765 = vsub.f32 %v1702, %v1757
        %v1766 = vsub.f32 %v1707, %v1758
        %v1767 = vsub.f32 %v1712, %v1759
        %v1768 = vsub.f32 %v1717, %v1760
        %v1769 = vsub.f32 %v1722, %v1761
        %v1770 = vsub.f32 %v1727, %v1762
        %v1771 = vmul.f32 %v1763, 1.442695
        %v1772 = vpow.pop %v1771
        %v1773 = vmul.f32 %v1764, 1.442695
        %v1774 = vpow.pop %v1773
        %v1775 = vmul.f32 %v1765, 1.442695
        %v1776 = vpow.pop %v1775
        %v1777 = vmul.f32 %v1766, 1.442695
        %v1778 = vpow.pop %v1777
        %v1779 = vmul.f32 %v1767, 1.442695
        %v1780 = vpow.pop %v1779
        %v1781 = vmul.f32 %v1768, 1.442695
        %v1782 = vpow.pop %v1781
        %v1783 = vmul.f32 %v1769, 1.442695
        %v1784 = vpow.pop %v1783
        %v1785 = vmul.f32 %v1770, 1.442695
        %v1786 = vpow.pop %v1785
        %v1787 = vld [vmem:[%s2] sm:$0xff]
        %v1788 = vld [vmem:[%s2 + $0x8] sm:$0xff]
        %v1789 = vld [vmem:[%s2 + $0x10] sm:$0xff]
        %v1790 = vld [vmem:[%s2 + $0x18] sm:$0xff]
        %v1791 = vld [vmem:[%s2 + $0x20] sm:$0xff]
        %v1792 = vld [vmem:[%s2 + $0x28] sm:$0xff]
        %v1793 = vld [vmem:[%s2 + $0x30] sm:$0xff]
        %v1794 = vld [vmem:[%s2 + $0x38] sm:$0xff]
        %v1795 = vld [vmem:[%s3] sm:$0x1]
        %1796 = vset.pattern.permute.xlu0 0
        %1797 = vperm.xlu0 %1796, %v1787
        %v1798 = vpop.permute.xlu0 %1797
        %1799 = vset.pattern.permute.xlu0 0
        %1800 = vperm.xlu0 %1799, %v1788
        %v1801 = vpop.permute.xlu0 %1800
        %1802 = vset.pattern.permute.xlu0 0
        %1803 = vperm.xlu0 %1802, %v1789
        %v1804 = vpop.permute.xlu0 %1803
        %1805 = vset.pattern.permute.xlu0 0
        %1806 = vperm.xlu0 %1805, %v1790
        %v1807 = vpop.permute.xlu0 %1806
        %1808 = vset.pattern.permute.xlu0 0
        %1809 = vperm.xlu0 %1808, %v1791
        %v1810 = vpop.permute.xlu0 %1809
        %1811 = vset.pattern.permute.xlu0 0
        %1812 = vperm.xlu0 %1811, %v1792
        %v1813 = vpop.permute.xlu0 %1812
        %1814 = vset.pattern.permute.xlu0 0
        %1815 = vperm.xlu0 %1814, %v1793
        %v1816 = vpop.permute.xlu0 %1815
        %1817 = vset.pattern.permute.xlu0 0
        %1818 = vperm.xlu0 %1817, %v1794
        %v1819 = vpop.permute.xlu0 %1818
        %v1820 = vlaneseq
        %v1821 = vshrl.u32 %v1820, 7
        %v1822 = vsub.s32 0, %v1821
        %v1823 = vrot.slane %v1795, %v1822
        %vm1824 = vcmp.eq.s32.totalorder %v1798, %v1823
        %vm1825 = vcmp.eq.s32.totalorder %v1801, %v1823
        %vm1826 = vcmp.eq.s32.totalorder %v1804, %v1823
        %vm1827 = vcmp.eq.s32.totalorder %v1807, %v1823
        %vm1828 = vcmp.eq.s32.totalorder %v1810, %v1823
        %vm1829 = vcmp.eq.s32.totalorder %v1813, %v1823
        %vm1830 = vcmp.eq.s32.totalorder %v1816, %v1823
        %vm1831 = vcmp.eq.s32.totalorder %v1819, %v1823
        %v1832 = vsel %vm1824, 1, 0
        %v1833 = vsel %vm1825, 1, 0
        %v1834 = vsel %vm1826, 1, 0
        %v1835 = vsel %vm1827, 1, 0
        %v1836 = vsel %vm1828, 1, 0
        %v1837 = vsel %vm1829, 1, 0
        %v1838 = vsel %vm1830, 1, 0
        %v1839 = vsel %vm1831, 1, 0
        %v1840 = vcvt.s32.f32 %v1832
        %v1841 = vcvt.s32.f32 %v1833
        %v1842 = vcvt.s32.f32 %v1834
        %v1843 = vcvt.s32.f32 %v1835
        %v1844 = vcvt.s32.f32 %v1836
        %v1845 = vcvt.s32.f32 %v1837
        %v1846 = vcvt.s32.f32 %v1838
        %v1847 = vcvt.s32.f32 %v1839
        %v1848 = vsub.f32 0.0, %v1755
        %v1849 = vsub.f32 0.0, %v1756
        %v1850 = vsub.f32 0.0, %v1757
        %v1851 = vsub.f32 0.0, %v1758
        %v1852 = vsub.f32 0.0, %v1759
        %v1853 = vsub.f32 0.0, %v1760
        %v1854 = vsub.f32 0.0, %v1761
        %v1855 = vsub.f32 0.0, %v1762
        %v1856 = vmul.f32 %v1848, 1.442695
        %v1857 = vpow.pop %v1856
        %v1858 = vmul.f32 %v1849, 1.442695
        %v1859 = vpow.pop %v1858
        %v1860 = vmul.f32 %v1850, 1.442695
        %v1861 = vpow.pop %v1860
        %v1862 = vmul.f32 %v1851, 1.442695
        %v1863 = vpow.pop %v1862
        %v1864 = vmul.f32 %v1852, 1.442695
        %v1865 = vpow.pop %v1864
        %v1866 = vmul.f32 %v1853, 1.442695
        %v1867 = vpow.pop %v1866
        %v1868 = vmul.f32 %v1854, 1.442695
        %v1869 = vpow.pop %v1868
        %v1870 = vmul.f32 %v1855, 1.442695
        %v1871 = vpow.pop %v1870
        %v1872 = vld [vmem:[%s4] sm:$0x1]
        %v1874 = vlaneseq
        %v1875 = vshrl.u32 %v1874, 7
        %v1876 = vsub.s32 0, %v1875
        %v1877 = vrot.slane %v1872, %v1876
        %v1879 = vmul.f32 %v1857, %v1877
        %v1880 = vmul.f32 %v1859, %v1877
        %v1881 = vmul.f32 %v1861, %v1877
        %v1882 = vmul.f32 %v1863, %v1877
        %v1883 = vmul.f32 %v1865, %v1877
        %v1884 = vmul.f32 %v1867, %v1877
        %v1885 = vmul.f32 %v1869, %v1877
        %v1886 = vmul.f32 %v1871, %v1877
        %v1888 = vsel %vm1730, %v1772, 0
        %v1891 = vsel %vm1730, %v1774, 0
        %v1894 = vsel %vm1730, %v1776, 0
        %v1897 = vsel %vm1730, %v1778, 0
        %v1900 = vsel %vm1730, %v1780, 0
        %v1903 = vsel %vm1730, %v1782, 0
        %v1906 = vsel %vm1730, %v1784, 0
        %v1909 = vsel %vm1730, %v1786, 0
        %1911 = vmatprep.subr.mxu0 0.0
        %1912 = vmatpush1.msra.mxu0 %v1840
        %1913 = vmatprep.subr.mxu0 0.0
        %1914 = vmatpush1.msra.mxu0 %v1841
        %1915 = vmatprep.subr.mxu0 0.0
        %1916 = vmatpush1.msra.mxu0 %v1842
        %1917 = vmatprep.subr.mxu0 0.0
        %1918 = vmatpush1.msra.mxu0 %v1843
        %1919 = vmatprep.subr.mxu0 0.0
        %1920 = vmatpush1.msra.mxu0 %v1844
        %1921 = vmatprep.subr.mxu0 0.0
        %1922 = vmatpush1.msra.mxu0 %v1845
        %1923 = vmatprep.subr.mxu0 0.0
        %1924 = vmatpush1.msra.mxu0 %v1846
        %1925 = vmatprep.subr.mxu0 0.0
        %1926 = vmatpush1.msra.mxu0 %v1847
        %1927 = vmatprep.subr.mxu0 0.0
        %1928 = vmatpush1.msra.mxu0 0.0
        %1929 = vmatprep.subr.mxu0 0.0
        %1930 = vmatpush1.msra.mxu0 0.0
        %1931 = vmatprep.subr.mxu0 0.0
        %1932 = vmatpush1.msra.mxu0 0.0
        %1933 = vmatprep.subr.mxu0 0.0
        %1934 = vmatpush1.msra.mxu0 0.0
        %1935 = vmatprep.subr.mxu0 0.0
        %1936 = vmatpush1.msra.mxu0 0.0
        %1937 = vmatprep.subr.mxu0 0.0
        %1938 = vmatpush1.msra.mxu0 0.0
        %1939 = vmatprep.subr.mxu0 0.0
        %1940 = vmatpush1.msra.mxu0 0.0
        %1941 = vmatprep.subr.mxu0 0.0
        %1942 = vmatpush1.msra.mxu0 0.0
        %1943 = vmatprep.subr.mxu0 0.0
        %1944 = vmatpush1.msra.mxu0 0.0
        %1945 = vmatprep.subr.mxu0 0.0
        %1946 = vmatpush1.msra.mxu0 0.0
        %1947 = vmatprep.subr.mxu0 0.0
        %1948 = vmatpush1.msra.mxu0 0.0
        %1949 = vmatprep.subr.mxu0 0.0
        %1950 = vmatpush1.msra.mxu0 0.0
        %1951 = vmatprep.subr.mxu0 0.0
        %1952 = vmatpush1.msra.mxu0 0.0
        %1953 = vmatprep.subr.mxu0 0.0
        %1954 = vmatpush1.msra.mxu0 0.0
        %1955 = vmatprep.subr.mxu0 0.0
        %1956 = vmatpush1.msra.mxu0 0.0
        %1957 = vmatprep.subr.mxu0 0.0
        %1958 = vmatpush1.msra.mxu0 0.0
        %1959 = vmatprep.subr.mxu0 0.0
        %1960 = vmatpush1.msra.mxu0 0.0
        %1961 = vmatprep.subr.mxu0 0.0
        %1962 = vmatpush1.msra.mxu0 0.0
        %1963 = vmatprep.subr.mxu0 0.0
        %1964 = vmatpush1.msra.mxu0 0.0
        %1965 = vmatprep.subr.mxu0 0.0
        %1966 = vmatpush1.msra.mxu0 0.0
        %1967 = vmatprep.subr.mxu0 0.0
        %1968 = vmatpush1.msra.mxu0 0.0
        %1969 = vmatprep.subr.mxu0 0.0
        %1970 = vmatpush1.msra.mxu0 0.0
        %1971 = vmatprep.subr.mxu0 0.0
        %1972 = vmatpush1.msra.mxu0 0.0
        %1973 = vmatprep.subr.mxu0 0.0
        %1974 = vmatpush1.msra.mxu0 0.0
        %1975 = vmatprep.mubr.f32.mxu0 0.0
        %1976 = vmatmul.mubr.f32.gmra.mrb[0].mxu0 %v1888
        %v1977 = vpop.f32.mrb[0].mxu0
        %v1978 = vadd.f32 %v1879, %v1977
        %v1979 = vpop.f32.mrb[0].mxu0
        %1980 = vmatprep.mubr.f32.mxu0 0.0
        %1981 = vmatmul.mubr.f32.gmra.mrb[0].mxu0 %v1891
        %v1982 = vpop.f32.mrb[0].mxu0
        %v1983 = vadd.f32 %v1880, %v1982
        %v1984 = vpop.f32.mrb[0].mxu0
        %1985 = vmatprep.mubr.f32.mxu0 0.0
        %1986 = vmatmul.mubr.f32.gmra.mrb[0].mxu0 %v1894
        %v1987 = vpop.f32.mrb[0].mxu0
        %v1988 = vadd.f32 %v1881, %v1987
        %v1989 = vpop.f32.mrb[0].mxu0
        %1990 = vmatprep.mubr.f32.mxu0 0.0
        %1991 = vmatmul.mubr.f32.gmra.mrb[0].mxu0 %v1897
        %v1992 = vpop.f32.mrb[0].mxu0
        %v1993 = vadd.f32 %v1882, %v1992
        %v1994 = vpop.f32.mrb[0].mxu0
        %1995 = vmatprep.mubr.f32.mxu0 0.0
        %1996 = vmatmul.mubr.f32.gmra.mrb[0].mxu0 %v1900
        %v1997 = vpop.f32.mrb[0].mxu0
        %v1998 = vadd.f32 %v1883, %v1997
        %v1999 = vpop.f32.mrb[0].mxu0
        %2000 = vmatprep.mubr.f32.mxu0 0.0
        %2001 = vmatmul.mubr.f32.gmra.mrb[0].mxu0 %v1903
        %v2002 = vpop.f32.mrb[0].mxu0
        %v2003 = vadd.f32 %v1884, %v2002
        %v2004 = vpop.f32.mrb[0].mxu0
        %2005 = vmatprep.mubr.f32.mxu0 0.0
        %2006 = vmatmul.mubr.f32.gmra.mrb[0].mxu0 %v1906
        %v2007 = vpop.f32.mrb[0].mxu0
        %v2008 = vadd.f32 %v1885, %v2007
        %v2009 = vpop.f32.mrb[0].mxu0
        %2010 = vmatprep.mubr.f32.mxu0 0.0
        %2011 = vmatmul.mubr.f32.gmra.mrb[0].mxu0 %v1909
        %v2012 = vpop.f32.mrb[0].mxu0
        %v2013 = vadd.f32 %v1886, %v2012
        %v2014 = vpop.f32.mrb[0].mxu0
        %2015 = vdwg.mxu0
        %v2016 = vmax.f32 %v1978, 1e-30
        %v2017 = vmax.f32 %v1983, 1e-30
        %v2018 = vmax.f32 %v1988, 1e-30
        %v2019 = vmax.f32 %v1993, 1e-30
        %v2020 = vmax.f32 %v1998, 1e-30
        %v2021 = vmax.f32 %v2003, 1e-30
        %v2022 = vmax.f32 %v2008, 1e-30
        %v2023 = vmax.f32 %v2013, 1e-30
        %v2024 = vrcp.pop %v2016
        %v2025 = vmul.f32 %v1772, %v2024
        %v2026 = vrcp.pop %v2017
        %v2027 = vmul.f32 %v1774, %v2026
        %v2028 = vrcp.pop %v2018
        %v2029 = vmul.f32 %v1776, %v2028
        %v2030 = vrcp.pop %v2019
        %v2031 = vmul.f32 %v1778, %v2030
        %v2032 = vrcp.pop %v2020
        %v2033 = vmul.f32 %v1780, %v2032
        %v2034 = vrcp.pop %v2021
        %v2035 = vmul.f32 %v1782, %v2034
        %v2036 = vrcp.pop %v2022
        %v2037 = vmul.f32 %v1784, %v2036
        %v2038 = vrcp.pop %v2023
        %v2039 = vmul.f32 %v1786, %v2038
        %v2041 = vsel %vm1730, %v2025, 0
        %v2044 = vsel %vm1730, %v2027, 0
        %v2047 = vsel %vm1730, %v2029, 0
        %v2050 = vsel %vm1730, %v2031, 0
        %v2053 = vsel %vm1730, %v2033, 0
        %v2056 = vsel %vm1730, %v2035, 0
        %v2059 = vsel %vm1730, %v2037, 0
        %v2062 = vsel %vm1730, %v2039, 0
        %2064 = vmatprep.subr.mxu0 0.0
        %2065 = vmatpush1.msra.mxu0 %v1539
        %2066 = vmatprep.subr.mxu0 0.0
        %2067 = vmatpush1.msra.mxu0 %v1544
        %2068 = vmatprep.subr.mxu0 0.0
        %2069 = vmatpush1.msra.mxu0 %v1549
        %2070 = vmatprep.subr.mxu0 0.0
        %2071 = vmatpush1.msra.mxu0 %v1554
        %2072 = vmatprep.subr.mxu0 0.0
        %2073 = vmatpush1.msra.mxu0 %v1559
        %2074 = vmatprep.subr.mxu0 0.0
        %2075 = vmatpush1.msra.mxu0 %v1564
        %2076 = vmatprep.subr.mxu0 0.0
        %2077 = vmatpush1.msra.mxu0 %v1569
        %2078 = vmatprep.subr.mxu0 0.0
        %2079 = vmatpush1.msra.mxu0 %v1574
        %2080 = vmatprep.subr.mxu0 0.0
        %2081 = vmatpush1.msra.mxu0 0.0
        %2082 = vmatprep.subr.mxu0 0.0
        %2083 = vmatpush1.msra.mxu0 0.0
        %2084 = vmatprep.subr.mxu0 0.0
        %2085 = vmatpush1.msra.mxu0 0.0
        %2086 = vmatprep.subr.mxu0 0.0
        %2087 = vmatpush1.msra.mxu0 0.0
        %2088 = vmatprep.subr.mxu0 0.0
        %2089 = vmatpush1.msra.mxu0 0.0
        %2090 = vmatprep.subr.mxu0 0.0
        %2091 = vmatpush1.msra.mxu0 0.0
        %2092 = vmatprep.subr.mxu0 0.0
        %2093 = vmatpush1.msra.mxu0 0.0
        %2094 = vmatprep.subr.mxu0 0.0
        %2095 = vmatpush1.msra.mxu0 0.0
        %2096 = vmatprep.subr.mxu0 0.0
        %2097 = vmatpush1.msra.mxu0 0.0
        %2098 = vmatprep.subr.mxu0 0.0
        %2099 = vmatpush1.msra.mxu0 0.0
        %2100 = vmatprep.subr.mxu0 0.0
        %2101 = vmatpush1.msra.mxu0 0.0
        %2102 = vmatprep.subr.mxu0 0.0
        %2103 = vmatpush1.msra.mxu0 0.0
        %2104 = vmatprep.subr.mxu0 0.0
        %2105 = vmatpush1.msra.mxu0 0.0
        %2106 = vmatprep.subr.mxu0 0.0
        %2107 = vmatpush1.msra.mxu0 0.0
        %2108 = vmatprep.subr.mxu0 0.0
        %2109 = vmatpush1.msra.mxu0 0.0
        %2110 = vmatprep.subr.mxu0 0.0
        %2111 = vmatpush1.msra.mxu0 0.0
        %2112 = vmatprep.subr.mxu0 0.0
        %2113 = vmatpush1.msra.mxu0 0.0
        %2114 = vmatprep.subr.mxu0 0.0
        %2115 = vmatpush1.msra.mxu0 0.0
        %2116 = vmatprep.subr.mxu0 0.0
        %2117 = vmatpush1.msra.mxu0 0.0
        %2118 = vmatprep.subr.mxu0 0.0
        %2119 = vmatpush1.msra.mxu0 0.0
        %2120 = vmatprep.subr.mxu0 0.0
        %2121 = vmatpush1.msra.mxu0 0.0
        %2122 = vmatprep.subr.mxu0 0.0
        %2123 = vmatpush1.msra.mxu0 0.0
        %2124 = vmatprep.subr.mxu0 0.0
        %2125 = vmatpush1.msra.mxu0 0.0
        %2126 = vmatprep.subr.mxu0 0.0
        %2127 = vmatpush1.msra.mxu0 0.0
        %2128 = vmatprep.mubr.f32.mxu0 0.0
        %2129 = vmatmul.mubr.f32.gmra.mrb[0].mxu0 %v2041
        %v2130 = vpop.f32.mrb[0].mxu0
        %v2131 = vadd.f32 0.0, %v2130
        %v2132 = vpop.f32.mrb[0].mxu0
        %2133 = vmatprep.mubr.f32.mxu0 0.0
        %2134 = vmatmul.mubr.f32.gmra.mrb[0].mxu0 %v2044
        %v2135 = vpop.f32.mrb[0].mxu0
        %v2136 = vadd.f32 0.0, %v2135
        %v2137 = vpop.f32.mrb[0].mxu0
        %2138 = vmatprep.mubr.f32.mxu0 0.0
        %2139 = vmatmul.mubr.f32.gmra.mrb[0].mxu0 %v2047
        %v2140 = vpop.f32.mrb[0].mxu0
        %v2141 = vadd.f32 0.0, %v2140
        %v2142 = vpop.f32.mrb[0].mxu0
        %2143 = vmatprep.mubr.f32.mxu0 0.0
        %2144 = vmatmul.mubr.f32.gmra.mrb[0].mxu0 %v2050
        %v2145 = vpop.f32.mrb[0].mxu0
        %v2146 = vadd.f32 0.0, %v2145
        %v2147 = vpop.f32.mrb[0].mxu0
        %2148 = vmatprep.mubr.f32.mxu0 0.0
        %2149 = vmatmul.mubr.f32.gmra.mrb[0].mxu0 %v2053
        %v2150 = vpop.f32.mrb[0].mxu0
        %v2151 = vadd.f32 0.0, %v2150
        %v2152 = vpop.f32.mrb[0].mxu0
        %2153 = vmatprep.mubr.f32.mxu0 0.0
        %2154 = vmatmul.mubr.f32.gmra.mrb[0].mxu0 %v2056
        %v2155 = vpop.f32.mrb[0].mxu0
        %v2156 = vadd.f32 0.0, %v2155
        %v2157 = vpop.f32.mrb[0].mxu0
        %2158 = vmatprep.mubr.f32.mxu0 0.0
        %2159 = vmatmul.mubr.f32.gmra.mrb[0].mxu0 %v2059
        %v2160 = vpop.f32.mrb[0].mxu0
        %v2161 = vadd.f32 0.0, %v2160
        %v2162 = vpop.f32.mrb[0].mxu0
        %2163 = vmatprep.mubr.f32.mxu0 0.0
        %2164 = vmatmul.mubr.f32.gmra.mrb[0].mxu0 %v2062
        %v2165 = vpop.f32.mrb[0].mxu0
        %v2166 = vadd.f32 0.0, %v2165
        %v2167 = vpop.f32.mrb[0].mxu0
        %2168 = vdwg.mxu0
        %v2169 = vlaneseq
        %v2170 = vshrl.u32 %v2169, 7
        %v2171 = vsub.s32 7, %v2170
        %v2172 = vrot.slane %v440, %v2171
        %v2174 = vsel %vm1040, %v2131, 0
        %v2177 = vsel %vm1040, %v2136, 0
        %v2180 = vsel %vm1040, %v2141, 0
        %v2183 = vsel %vm1040, %v2146, 0
        %v2186 = vsel %vm1040, %v2151, 0
        %v2189 = vsel %vm1040, %v2156, 0
        %v2192 = vsel %vm1040, %v2161, 0
        %v2195 = vsel %vm1040, %v2166, 0
        %2197 = vmatprep.subr.mxu0 0.0
        %2198 = vmatpush1.msra.mxu0 %v1182
        %2199 = vmatprep.subr.mxu0 0.0
        %2200 = vmatpush1.msra.mxu0 %v1183
        %2201 = vmatprep.subr.mxu0 0.0
        %2202 = vmatpush1.msra.mxu0 %v1184
        %2203 = vmatprep.subr.mxu0 0.0
        %2204 = vmatpush1.msra.mxu0 %v1185
        %2205 = vmatprep.subr.mxu0 0.0
        %2206 = vmatpush1.msra.mxu0 0.0
        %2207 = vmatprep.subr.mxu0 0.0
        %2208 = vmatpush1.msra.mxu0 0.0
        %2209 = vmatprep.subr.mxu0 0.0
        %2210 = vmatpush1.msra.mxu0 0.0
        %2211 = vmatprep.subr.mxu0 0.0
        %2212 = vmatpush1.msra.mxu0 0.0
        %2213 = vmatprep.subr.mxu0 0.0
        %2214 = vmatpush1.msra.mxu0 0.0
        %2215 = vmatprep.subr.mxu0 0.0
        %2216 = vmatpush1.msra.mxu0 0.0
        %2217 = vmatprep.subr.mxu0 0.0
        %2218 = vmatpush1.msra.mxu0 0.0
        %2219 = vmatprep.subr.mxu0 0.0
        %2220 = vmatpush1.msra.mxu0 0.0
        %2221 = vmatprep.subr.mxu0 0.0
        %2222 = vmatpush1.msra.mxu0 0.0
        %2223 = vmatprep.subr.mxu0 0.0
        %2224 = vmatpush1.msra.mxu0 0.0
        %2225 = vmatprep.subr.mxu0 0.0
        %2226 = vmatpush1.msra.mxu0 0.0
        %2227 = vmatprep.subr.mxu0 0.0
        %2228 = vmatpush1.msra.mxu0 0.0
        %2229 = vmatprep.subr.mxu0 0.0
        %2230 = vmatpush1.msra.mxu0 0.0
        %2231 = vmatprep.subr.mxu0 0.0
        %2232 = vmatpush1.msra.mxu0 0.0
        %2233 = vmatprep.subr.mxu0 0.0
        %2234 = vmatpush1.msra.mxu0 0.0
        %2235 = vmatprep.subr.mxu0 0.0
        %2236 = vmatpush1.msra.mxu0 0.0
        %2237 = vmatprep.subr.mxu0 0.0
        %2238 = vmatpush1.msra.mxu0 0.0
        %2239 = vmatprep.subr.mxu0 0.0
        %2240 = vmatpush1.msra.mxu0 0.0
        %2241 = vmatprep.subr.mxu0 0.0
        %2242 = vmatpush1.msra.mxu0 0.0
        %2243 = vmatprep.subr.mxu0 0.0
        %2244 = vmatpush1.msra.mxu0 0.0
        %2245 = vmatprep.subr.mxu0 0.0
        %2246 = vmatpush1.msra.mxu0 0.0
        %2247 = vmatprep.subr.mxu0 0.0
        %2248 = vmatpush1.msra.mxu0 0.0
        %2249 = vmatprep.subr.mxu0 0.0
        %2250 = vmatpush1.msra.mxu0 0.0
        %2251 = vmatprep.subr.mxu0 0.0
        %2252 = vmatpush1.msra.mxu0 0.0
        %2253 = vmatprep.subr.mxu0 0.0
        %2254 = vmatpush1.msra.mxu0 0.0
        %2255 = vmatprep.subr.mxu0 0.0
        %2256 = vmatpush1.msra.mxu0 0.0
        %2257 = vmatprep.subr.mxu0 0.0
        %2258 = vmatpush1.msra.mxu0 0.0
        %2259 = vmatprep.subr.mxu0 0.0
        %2260 = vmatpush1.msra.mxu0 0.0
        %2261 = vmatprep.mubr.f32.mxu0 0.0
        %2262 = vmatmul.mubr.f32.gmra.mrb[0].mxu0 %v2174
        %v2263 = vpop.f32.mrb[0].mxu0
        %v2264 = vadd.f32 %v2172, %v2263
        %v2265 = vpop.f32.mrb[0].mxu0
        %2266 = vmatprep.mubr.f32.mxu0 0.0
        %2267 = vmatmul.mubr.f32.gmra.mrb[0].mxu0 %v2177
        %v2268 = vpop.f32.mrb[0].mxu0
        %v2269 = vadd.f32 %v2172, %v2268
        %v2270 = vpop.f32.mrb[0].mxu0
        %2271 = vmatprep.mubr.f32.mxu0 0.0
        %2272 = vmatmul.mubr.f32.gmra.mrb[0].mxu0 %v2180
        %v2273 = vpop.f32.mrb[0].mxu0
        %v2274 = vadd.f32 %v2172, %v2273
        %v2275 = vpop.f32.mrb[0].mxu0
        %2276 = vmatprep.mubr.f32.mxu0 0.0
        %2277 = vmatmul.mubr.f32.gmra.mrb[0].mxu0 %v2183
        %v2278 = vpop.f32.mrb[0].mxu0
        %v2279 = vadd.f32 %v2172, %v2278
        %v2280 = vpop.f32.mrb[0].mxu0
        %2281 = vmatprep.mubr.f32.mxu0 0.0
        %2282 = vmatmul.mubr.f32.gmra.mrb[0].mxu0 %v2186
        %v2283 = vpop.f32.mrb[0].mxu0
        %v2284 = vadd.f32 %v2172, %v2283
        %v2285 = vpop.f32.mrb[0].mxu0
        %2286 = vmatprep.mubr.f32.mxu0 0.0
        %2287 = vmatmul.mubr.f32.gmra.mrb[0].mxu0 %v2189
        %v2288 = vpop.f32.mrb[0].mxu0
        %v2289 = vadd.f32 %v2172, %v2288
        %v2290 = vpop.f32.mrb[0].mxu0
        %2291 = vmatprep.mubr.f32.mxu0 0.0
        %2292 = vmatmul.mubr.f32.gmra.mrb[0].mxu0 %v2192
        %v2293 = vpop.f32.mrb[0].mxu0
        %v2294 = vadd.f32 %v2172, %v2293
        %v2295 = vpop.f32.mrb[0].mxu0
        %2296 = vmatprep.mubr.f32.mxu0 0.0
        %2297 = vmatmul.mubr.f32.gmra.mrb[0].mxu0 %v2195
        %v2298 = vpop.f32.mrb[0].mxu0
        %v2299 = vadd.f32 %v2172, %v2298
        %v2300 = vpop.f32.mrb[0].mxu0
        %2301 = vdwg.mxu0
        %v2302 = vsel %vm1040, %v2264, 0.0
        %2303 = vadd.xlane.f32.xlu0 %v2302
        %v2304 = vpop.xlane.xlu0 %2303
        %v2305 = vsel %vm1040, %v2269, 0.0
        %2306 = vadd.xlane.f32.xlu0 %v2305
        %v2307 = vpop.xlane.xlu0 %2306
        %v2308 = vsel %vm1040, %v2274, 0.0
        %2309 = vadd.xlane.f32.xlu0 %v2308
        %v2310 = vpop.xlane.xlu0 %2309
        %v2311 = vsel %vm1040, %v2279, 0.0
        %2312 = vadd.xlane.f32.xlu0 %v2311
        %v2313 = vpop.xlane.xlu0 %2312
        %v2314 = vsel %vm1040, %v2284, 0.0
        %2315 = vadd.xlane.f32.xlu0 %v2314
        %v2316 = vpop.xlane.xlu0 %2315
        %v2317 = vsel %vm1040, %v2289, 0.0
        %2318 = vadd.xlane.f32.xlu0 %v2317
        %v2319 = vpop.xlane.xlu0 %2318
        %v2320 = vsel %vm1040, %v2294, 0.0
        %2321 = vadd.xlane.f32.xlu0 %v2320
        %v2322 = vpop.xlane.xlu0 %2321
        %v2323 = vsel %vm1040, %v2299, 0.0
        %2324 = vadd.xlane.f32.xlu0 %v2323
        %v2325 = vpop.xlane.xlu0 %2324
        %v2326 = vmul.f32 %v2304, %v1065
        %v2327 = vmul.f32 %v2307, %v1065
        %v2328 = vmul.f32 %v2310, %v1065
        %v2329 = vmul.f32 %v2313, %v1065
        %v2330 = vmul.f32 %v2316, %v1065
        %v2331 = vmul.f32 %v2319, %v1065
        %v2332 = vmul.f32 %v2322, %v1065
        %v2333 = vmul.f32 %v2325, %v1065
        %v2334 = vsub.f32 %v2264, %v2326
        %v2335 = vsub.f32 %v2269, %v2327
        %v2336 = vsub.f32 %v2274, %v2328
        %v2337 = vsub.f32 %v2279, %v2329
        %v2338 = vsub.f32 %v2284, %v2330
        %v2339 = vsub.f32 %v2289, %v2331
        %v2340 = vsub.f32 %v2294, %v2332
        %v2341 = vsub.f32 %v2299, %v2333
        %v2342 = vmul.f32 %v2334, %v2334
        %v2343 = vmul.f32 %v2335, %v2335
        %v2344 = vmul.f32 %v2336, %v2336
        %v2345 = vmul.f32 %v2337, %v2337
        %v2346 = vmul.f32 %v2338, %v2338
        %v2347 = vmul.f32 %v2339, %v2339
        %v2348 = vmul.f32 %v2340, %v2340
        %v2349 = vmul.f32 %v2341, %v2341
        %v2350 = vsel %vm1040, %v2342, 0.0
        %2351 = vadd.xlane.f32.xlu0 %v2350
        %v2352 = vpop.xlane.xlu0 %2351
        %v2353 = vsel %vm1040, %v2343, 0.0
        %2354 = vadd.xlane.f32.xlu0 %v2353
        %v2355 = vpop.xlane.xlu0 %2354
        %v2356 = vsel %vm1040, %v2344, 0.0
        %2357 = vadd.xlane.f32.xlu0 %v2356
        %v2358 = vpop.xlane.xlu0 %2357
        %v2359 = vsel %vm1040, %v2345, 0.0
        %2360 = vadd.xlane.f32.xlu0 %v2359
        %v2361 = vpop.xlane.xlu0 %2360
        %v2362 = vsel %vm1040, %v2346, 0.0
        %2363 = vadd.xlane.f32.xlu0 %v2362
        %v2364 = vpop.xlane.xlu0 %2363
        %v2365 = vsel %vm1040, %v2347, 0.0
        %2366 = vadd.xlane.f32.xlu0 %v2365
        %v2367 = vpop.xlane.xlu0 %2366
        %v2368 = vsel %vm1040, %v2348, 0.0
        %2369 = vadd.xlane.f32.xlu0 %v2368
        %v2370 = vpop.xlane.xlu0 %2369
        %v2371 = vsel %vm1040, %v2349, 0.0
        %2372 = vadd.xlane.f32.xlu0 %v2371
        %v2373 = vpop.xlane.xlu0 %2372
        %v2374 = vmul.f32 %v2352, %v1065
        %v2375 = vmul.f32 %v2355, %v1065
        %v2376 = vmul.f32 %v2358, %v1065
        %v2377 = vmul.f32 %v2361, %v1065
        %v2378 = vmul.f32 %v2364, %v1065
        %v2379 = vmul.f32 %v2367, %v1065
        %v2380 = vmul.f32 %v2370, %v1065
        %v2381 = vmul.f32 %v2373, %v1065
        %v2382 = vadd.f32 %v2374, 1e-05
        %v2383 = vadd.f32 %v2375, 1e-05
        %v2384 = vadd.f32 %v2376, 1e-05
        %v2385 = vadd.f32 %v2377, 1e-05
        %v2386 = vadd.f32 %v2378, 1e-05
        %v2387 = vadd.f32 %v2379, 1e-05
        %v2388 = vadd.f32 %v2380, 1e-05
        %v2389 = vadd.f32 %v2381, 1e-05
        %v2390 = vrsqrt.pop %v2382
        %v2391 = vrsqrt.pop %v2383
        %v2392 = vrsqrt.pop %v2384
        %v2393 = vrsqrt.pop %v2385
        %v2394 = vrsqrt.pop %v2386
        %v2395 = vrsqrt.pop %v2387
        %v2396 = vrsqrt.pop %v2388
        %v2397 = vrsqrt.pop %v2389
        %v2398 = vmul.f32 %v2334, %v2390
        %v2399 = vmul.f32 %v2335, %v2391
        %v2400 = vmul.f32 %v2336, %v2392
        %v2401 = vmul.f32 %v2337, %v2393
        %v2402 = vmul.f32 %v2338, %v2394
        %v2403 = vmul.f32 %v2339, %v2395
        %v2404 = vmul.f32 %v2340, %v2396
        %v2405 = vmul.f32 %v2341, %v2397
        %v2406 = vlaneseq
        %v2407 = vshrl.u32 %v2406, 7
        %v2408 = vsub.s32 0, %v2407
        %v2409 = vrot.slane %v441, %v2408
        %v2410 = vmul.f32 %v2398, %v2409
        %v2411 = vmul.f32 %v2399, %v2409
        %v2412 = vmul.f32 %v2400, %v2409
        %v2413 = vmul.f32 %v2401, %v2409
        %v2414 = vmul.f32 %v2402, %v2409
        %v2415 = vmul.f32 %v2403, %v2409
        %v2416 = vmul.f32 %v2404, %v2409
        %v2417 = vmul.f32 %v2405, %v2409
        %v2418 = vlaneseq
        %v2419 = vshrl.u32 %v2418, 7
        %v2420 = vsub.s32 1, %v2419
        %v2421 = vrot.slane %v441, %v2420
        %v2422 = vadd.f32 %v2410, %v2421
        %v2423 = vadd.f32 %v2411, %v2421
        %v2424 = vadd.f32 %v2412, %v2421
        %v2425 = vadd.f32 %v2413, %v2421
        %v2426 = vadd.f32 %v2414, %v2421
        %v2427 = vadd.f32 %v2415, %v2421
        %v2428 = vadd.f32 %v2416, %v2421
        %v2429 = vadd.f32 %v2417, %v2421
        %v2430 = vlaneseq
        %v2431 = vshrl.u32 %v2430, 7
        %v2432 = vsub.s32 2, %v2431
        %v2433 = vrot.slane %v441, %v2432
        %v2435 = vsel %vm1040, %v2422, 0
        %v2438 = vsel %vm1040, %v2423, 0
        %v2441 = vsel %vm1040, %v2424, 0
        %v2444 = vsel %vm1040, %v2425, 0
        %v2447 = vsel %vm1040, %v2426, 0
        %v2450 = vsel %vm1040, %v2427, 0
        %v2453 = vsel %vm1040, %v2428, 0
        %v2456 = vsel %vm1040, %v2429, 0
        %2458 = vmatprep.subr.mxu0 0.0
        %2459 = vmatpush1.msra.mxu0 %v1186
        %2460 = vmatprep.subr.mxu0 0.0
        %2461 = vmatpush1.msra.mxu0 %v1187
        %2462 = vmatprep.subr.mxu0 0.0
        %2463 = vmatpush1.msra.mxu0 %v1188
        %2464 = vmatprep.subr.mxu0 0.0
        %2465 = vmatpush1.msra.mxu0 %v1189
        %2466 = vmatprep.subr.mxu0 0.0
        %2467 = vmatpush1.msra.mxu0 0.0
        %2468 = vmatprep.subr.mxu0 0.0
        %2469 = vmatpush1.msra.mxu0 0.0
        %2470 = vmatprep.subr.mxu0 0.0
        %2471 = vmatpush1.msra.mxu0 0.0
        %2472 = vmatprep.subr.mxu0 0.0
        %2473 = vmatpush1.msra.mxu0 0.0
        %2474 = vmatprep.subr.mxu0 0.0
        %2475 = vmatpush1.msra.mxu0 0.0
        %2476 = vmatprep.subr.mxu0 0.0
        %2477 = vmatpush1.msra.mxu0 0.0
        %2478 = vmatprep.subr.mxu0 0.0
        %2479 = vmatpush1.msra.mxu0 0.0
        %2480 = vmatprep.subr.mxu0 0.0
        %2481 = vmatpush1.msra.mxu0 0.0
        %2482 = vmatprep.subr.mxu0 0.0
        %2483 = vmatpush1.msra.mxu0 0.0
        %2484 = vmatprep.subr.mxu0 0.0
        %2485 = vmatpush1.msra.mxu0 0.0
        %2486 = vmatprep.subr.mxu0 0.0
        %2487 = vmatpush1.msra.mxu0 0.0
        %2488 = vmatprep.subr.mxu0 0.0
        %2489 = vmatpush1.msra.mxu0 0.0
        %2490 = vmatprep.subr.mxu0 0.0
        %2491 = vmatpush1.msra.mxu0 0.0
        %2492 = vmatprep.subr.mxu0 0.0
        %2493 = vmatpush1.msra.mxu0 0.0
        %2494 = vmatprep.subr.mxu0 0.0
        %2495 = vmatpush1.msra.mxu0 0.0
        %2496 = vmatprep.subr.mxu0 0.0
        %2497 = vmatpush1.msra.mxu0 0.0
        %2498 = vmatprep.subr.mxu0 0.0
        %2499 = vmatpush1.msra.mxu0 0.0
        %2500 = vmatprep.subr.mxu0 0.0
        %2501 = vmatpush1.msra.mxu0 0.0
        %2502 = vmatprep.subr.mxu0 0.0
        %2503 = vmatpush1.msra.mxu0 0.0
        %2504 = vmatprep.subr.mxu0 0.0
        %2505 = vmatpush1.msra.mxu0 0.0
        %2506 = vmatprep.subr.mxu0 0.0
        %2507 = vmatpush1.msra.mxu0 0.0
        %2508 = vmatprep.subr.mxu0 0.0
        %2509 = vmatpush1.msra.mxu0 0.0
        %2510 = vmatprep.subr.mxu0 0.0
        %2511 = vmatpush1.msra.mxu0 0.0
        %2512 = vmatprep.subr.mxu0 0.0
        %2513 = vmatpush1.msra.mxu0 0.0
        %2514 = vmatprep.subr.mxu0 0.0
        %2515 = vmatpush1.msra.mxu0 0.0
        %2516 = vmatprep.subr.mxu0 0.0
        %2517 = vmatpush1.msra.mxu0 0.0
        %2518 = vmatprep.subr.mxu0 0.0
        %2519 = vmatpush1.msra.mxu0 0.0
        %2520 = vmatprep.subr.mxu0 0.0
        %2521 = vmatpush1.msra.mxu0 0.0
        %2522 = vmatprep.mubr.f32.mxu0 0.0
        %2523 = vmatmul.mubr.f32.gmra.mrb[0].mxu0 %v2435
        %v2524 = vpop.f32.mrb[0].mxu0
        %v2525 = vadd.f32 %v2433, %v2524
        %v2526 = vpop.f32.mrb[0].mxu0
        %2527 = vmatprep.mubr.f32.mxu0 0.0
        %2528 = vmatmul.mubr.f32.gmra.mrb[0].mxu0 %v2438
        %v2529 = vpop.f32.mrb[0].mxu0
        %v2530 = vadd.f32 %v2433, %v2529
        %v2531 = vpop.f32.mrb[0].mxu0
        %2532 = vmatprep.mubr.f32.mxu0 0.0
        %2533 = vmatmul.mubr.f32.gmra.mrb[0].mxu0 %v2441
        %v2534 = vpop.f32.mrb[0].mxu0
        %v2535 = vadd.f32 %v2433, %v2534
        %v2536 = vpop.f32.mrb[0].mxu0
        %2537 = vmatprep.mubr.f32.mxu0 0.0
        %2538 = vmatmul.mubr.f32.gmra.mrb[0].mxu0 %v2444
        %v2539 = vpop.f32.mrb[0].mxu0
        %v2540 = vadd.f32 %v2433, %v2539
        %v2541 = vpop.f32.mrb[0].mxu0
        %2542 = vmatprep.mubr.f32.mxu0 0.0
        %2543 = vmatmul.mubr.f32.gmra.mrb[0].mxu0 %v2447
        %v2544 = vpop.f32.mrb[0].mxu0
        %v2545 = vadd.f32 %v2433, %v2544
        %v2546 = vpop.f32.mrb[0].mxu0
        %2547 = vmatprep.mubr.f32.mxu0 0.0
        %2548 = vmatmul.mubr.f32.gmra.mrb[0].mxu0 %v2450
        %v2549 = vpop.f32.mrb[0].mxu0
        %v2550 = vadd.f32 %v2433, %v2549
        %v2551 = vpop.f32.mrb[0].mxu0
        %2552 = vmatprep.mubr.f32.mxu0 0.0
        %2553 = vmatmul.mubr.f32.gmra.mrb[0].mxu0 %v2453
        %v2554 = vpop.f32.mrb[0].mxu0
        %v2555 = vadd.f32 %v2433, %v2554
        %v2556 = vpop.f32.mrb[0].mxu0
        %2557 = vmatprep.mubr.f32.mxu0 0.0
        %2558 = vmatmul.mubr.f32.gmra.mrb[0].mxu0 %v2456
        %v2559 = vpop.f32.mrb[0].mxu0
        %v2560 = vadd.f32 %v2433, %v2559
        %v2561 = vpop.f32.mrb[0].mxu0
        %2562 = vdwg.mxu0
        %v2563 = vmul.f32 %v2525, 0.5
        %v2564 = vmul.f32 %v2530, 0.5
        %v2565 = vmul.f32 %v2535, 0.5
        %v2566 = vmul.f32 %v2540, 0.5
        %v2567 = vmul.f32 %v2545, 0.5
        %v2568 = vmul.f32 %v2550, 0.5
        %v2569 = vmul.f32 %v2555, 0.5
        %v2570 = vmul.f32 %v2560, 0.5
        %v2571 = vmul.f32 %v2525, 0.70710677
        %v2572 = vmul.f32 %v2530, 0.70710677
        %v2573 = vmul.f32 %v2535, 0.70710677
        %v2574 = vmul.f32 %v2540, 0.70710677
        %v2575 = vmul.f32 %v2545, 0.70710677
        %v2576 = vmul.f32 %v2550, 0.70710677
        %v2577 = vmul.f32 %v2555, 0.70710677
        %v2578 = vmul.f32 %v2560, 0.70710677
        %vm2579 = vcmp.ge.f32.partialorder %v2571, 0.0
        %vm2580 = vcmp.ge.f32.partialorder %v2572, 0.0
        %vm2581 = vcmp.ge.f32.partialorder %v2573, 0.0
        %vm2582 = vcmp.ge.f32.partialorder %v2574, 0.0
        %vm2583 = vcmp.ge.f32.partialorder %v2575, 0.0
        %vm2584 = vcmp.ge.f32.partialorder %v2576, 0.0
        %vm2585 = vcmp.ge.f32.partialorder %v2577, 0.0
        %vm2586 = vcmp.ge.f32.partialorder %v2578, 0.0
        %v2587 = vsel %vm2579, 1.0, -1.0
        %v2588 = vsel %vm2580, 1.0, -1.0
        %v2589 = vsel %vm2581, 1.0, -1.0
        %v2590 = vsel %vm2582, 1.0, -1.0
        %v2591 = vsel %vm2583, 1.0, -1.0
        %v2592 = vsel %vm2584, 1.0, -1.0
        %v2593 = vsel %vm2585, 1.0, -1.0
        %v2594 = vsel %vm2586, 1.0, -1.0
        %v2595 = vand.u32 2147483647, %v2571
        %v2596 = vand.u32 2147483647, %v2572
        %v2597 = vand.u32 2147483647, %v2573
        %v2598 = vand.u32 2147483647, %v2574
        %v2599 = vand.u32 2147483647, %v2575
        %v2600 = vand.u32 2147483647, %v2576
        %v2601 = vand.u32 2147483647, %v2577
        %v2602 = vand.u32 2147483647, %v2578
        %v2603 = vmul.f32 %v2595, 0.3275911
        %v2604 = vmul.f32 %v2596, 0.3275911
        %v2605 = vmul.f32 %v2597, 0.3275911
        %v2606 = vmul.f32 %v2598, 0.3275911
        %v2607 = vmul.f32 %v2599, 0.3275911
        %v2608 = vmul.f32 %v2600, 0.3275911
        %v2609 = vmul.f32 %v2601, 0.3275911
        %v2610 = vmul.f32 %v2602, 0.3275911
        %v2611 = vadd.f32 %v2603, 1.0
        %v2612 = vadd.f32 %v2604, 1.0
        %v2613 = vadd.f32 %v2605, 1.0
        %v2614 = vadd.f32 %v2606, 1.0
        %v2615 = vadd.f32 %v2607, 1.0
        %v2616 = vadd.f32 %v2608, 1.0
        %v2617 = vadd.f32 %v2609, 1.0
        %v2618 = vadd.f32 %v2610, 1.0
        %v2619 = vrcp.pop %v2611
        %v2620 = vmul.f32 1.0, %v2619
        %v2621 = vrcp.pop %v2612
        %v2622 = vmul.f32 1.0, %v2621
        %v2623 = vrcp.pop %v2613
        %v2624 = vmul.f32 1.0, %v2623
        %v2625 = vrcp.pop %v2614
        %v2626 = vmul.f32 1.0, %v2625
        %v2627 = vrcp.pop %v2615
        %v2628 = vmul.f32 1.0, %v2627
        %v2629 = vrcp.pop %v2616
        %v2630 = vmul.f32 1.0, %v2629
        %v2631 = vrcp.pop %v2617
        %v2632 = vmul.f32 1.0, %v2631
        %v2633 = vrcp.pop %v2618
        %v2634 = vmul.f32 1.0, %v2633
        %v2635 = vmul.f32 %v2620, 1.0614054
        %v2636 = vmul.f32 %v2622, 1.0614054
        %v2637 = vmul.f32 %v2624, 1.0614054
        %v2638 = vmul.f32 %v2626, 1.0614054
        %v2639 = vmul.f32 %v2628, 1.0614054
        %v2640 = vmul.f32 %v2630, 1.0614054
        %v2641 = vmul.f32 %v2632, 1.0614054
        %v2642 = vmul.f32 %v2634, 1.0614054
        %v2643 = vadd.f32 %v2635, -1.4531521
        %v2644 = vadd.f32 %v2636, -1.4531521
        %v2645 = vadd.f32 %v2637, -1.4531521
        %v2646 = vadd.f32 %v2638, -1.4531521
        %v2647 = vadd.f32 %v2639, -1.4531521
        %v2648 = vadd.f32 %v2640, -1.4531521
        %v2649 = vadd.f32 %v2641, -1.4531521
        %v2650 = vadd.f32 %v2642, -1.4531521
        %v2651 = vmul.f32 %v2643, %v2620
        %v2652 = vmul.f32 %v2644, %v2622
        %v2653 = vmul.f32 %v2645, %v2624
        %v2654 = vmul.f32 %v2646, %v2626
        %v2655 = vmul.f32 %v2647, %v2628
        %v2656 = vmul.f32 %v2648, %v2630
        %v2657 = vmul.f32 %v2649, %v2632
        %v2658 = vmul.f32 %v2650, %v2634
        %v2659 = vadd.f32 %v2651, 1.4214138
        %v2660 = vadd.f32 %v2652, 1.4214138
        %v2661 = vadd.f32 %v2653, 1.4214138
        %v2662 = vadd.f32 %v2654, 1.4214138
        %v2663 = vadd.f32 %v2655, 1.4214138
        %v2664 = vadd.f32 %v2656, 1.4214138
        %v2665 = vadd.f32 %v2657, 1.4214138
        %v2666 = vadd.f32 %v2658, 1.4214138
        %v2667 = vmul.f32 %v2659, %v2620
        %v2668 = vmul.f32 %v2660, %v2622
        %v2669 = vmul.f32 %v2661, %v2624
        %v2670 = vmul.f32 %v2662, %v2626
        %v2671 = vmul.f32 %v2663, %v2628
        %v2672 = vmul.f32 %v2664, %v2630
        %v2673 = vmul.f32 %v2665, %v2632
        %v2674 = vmul.f32 %v2666, %v2634
        %v2675 = vadd.f32 %v2667, -0.28449672
        %v2676 = vadd.f32 %v2668, -0.28449672
        %v2677 = vadd.f32 %v2669, -0.28449672
        %v2678 = vadd.f32 %v2670, -0.28449672
        %v2679 = vadd.f32 %v2671, -0.28449672
        %v2680 = vadd.f32 %v2672, -0.28449672
        %v2681 = vadd.f32 %v2673, -0.28449672
        %v2682 = vadd.f32 %v2674, -0.28449672
        %v2683 = vmul.f32 %v2675, %v2620
        %v2684 = vmul.f32 %v2676, %v2622
        %v2685 = vmul.f32 %v2677, %v2624
        %v2686 = vmul.f32 %v2678, %v2626
        %v2687 = vmul.f32 %v2679, %v2628
        %v2688 = vmul.f32 %v2680, %v2630
        %v2689 = vmul.f32 %v2681, %v2632
        %v2690 = vmul.f32 %v2682, %v2634
        %v2691 = vadd.f32 %v2683, 0.2548296
        %v2692 = vadd.f32 %v2684, 0.2548296
        %v2693 = vadd.f32 %v2685, 0.2548296
        %v2694 = vadd.f32 %v2686, 0.2548296
        %v2695 = vadd.f32 %v2687, 0.2548296
        %v2696 = vadd.f32 %v2688, 0.2548296
        %v2697 = vadd.f32 %v2689, 0.2548296
        %v2698 = vadd.f32 %v2690, 0.2548296
        %v2699 = vmul.f32 %v2691, %v2620
        %v2700 = vmul.f32 %v2692, %v2622
        %v2701 = vmul.f32 %v2693, %v2624
        %v2702 = vmul.f32 %v2694, %v2626
        %v2703 = vmul.f32 %v2695, %v2628
        %v2704 = vmul.f32 %v2696, %v2630
        %v2705 = vmul.f32 %v2697, %v2632
        %v2706 = vmul.f32 %v2698, %v2634
        %v2707 = vsub.f32 0.0, %v2595
        %v2708 = vsub.f32 0.0, %v2596
        %v2709 = vsub.f32 0.0, %v2597
        %v2710 = vsub.f32 0.0, %v2598
        %v2711 = vsub.f32 0.0, %v2599
        %v2712 = vsub.f32 0.0, %v2600
        %v2713 = vsub.f32 0.0, %v2601
        %v2714 = vsub.f32 0.0, %v2602
        %v2715 = vmul.f32 %v2707, %v2595
        %v2716 = vmul.f32 %v2708, %v2596
        %v2717 = vmul.f32 %v2709, %v2597
        %v2718 = vmul.f32 %v2710, %v2598
        %v2719 = vmul.f32 %v2711, %v2599
        %v2720 = vmul.f32 %v2712, %v2600
        %v2721 = vmul.f32 %v2713, %v2601
        %v2722 = vmul.f32 %v2714, %v2602
        %v2723 = vmul.f32 %v2715, 1.442695
        %v2724 = vpow.pop %v2723
        %v2725 = vmul.f32 %v2716, 1.442695
        %v2726 = vpow.pop %v2725
        %v2727 = vmul.f32 %v2717, 1.442695
        %v2728 = vpow.pop %v2727
        %v2729 = vmul.f32 %v2718, 1.442695
        %v2730 = vpow.pop %v2729
        %v2731 = vmul.f32 %v2719, 1.442695
        %v2732 = vpow.pop %v2731
        %v2733 = vmul.f32 %v2720, 1.442695
        %v2734 = vpow.pop %v2733
        %v2735 = vmul.f32 %v2721, 1.442695
        %v2736 = vpow.pop %v2735
        %v2737 = vmul.f32 %v2722, 1.442695
        %v2738 = vpow.pop %v2737
        %v2739 = vmul.f32 %v2699, %v2724
        %v2740 = vmul.f32 %v2700, %v2726
        %v2741 = vmul.f32 %v2701, %v2728
        %v2742 = vmul.f32 %v2702, %v2730
        %v2743 = vmul.f32 %v2703, %v2732
        %v2744 = vmul.f32 %v2704, %v2734
        %v2745 = vmul.f32 %v2705, %v2736
        %v2746 = vmul.f32 %v2706, %v2738
        %v2747 = vsub.f32 1.0, %v2739
        %v2748 = vsub.f32 1.0, %v2740
        %v2749 = vsub.f32 1.0, %v2741
        %v2750 = vsub.f32 1.0, %v2742
        %v2751 = vsub.f32 1.0, %v2743
        %v2752 = vsub.f32 1.0, %v2744
        %v2753 = vsub.f32 1.0, %v2745
        %v2754 = vsub.f32 1.0, %v2746
        %v2755 = vmul.f32 %v2587, %v2747
        %v2756 = vmul.f32 %v2588, %v2748
        %v2757 = vmul.f32 %v2589, %v2749
        %v2758 = vmul.f32 %v2590, %v2750
        %v2759 = vmul.f32 %v2591, %v2751
        %v2760 = vmul.f32 %v2592, %v2752
        %v2761 = vmul.f32 %v2593, %v2753
        %v2762 = vmul.f32 %v2594, %v2754
        %v2763 = vadd.f32 %v2755, 1.0
        %v2764 = vadd.f32 %v2756, 1.0
        %v2765 = vadd.f32 %v2757, 1.0
        %v2766 = vadd.f32 %v2758, 1.0
        %v2767 = vadd.f32 %v2759, 1.0
        %v2768 = vadd.f32 %v2760, 1.0
        %v2769 = vadd.f32 %v2761, 1.0
        %v2770 = vadd.f32 %v2762, 1.0
        %v2771 = vmul.f32 %v2563, %v2763
        %v2772 = vmul.f32 %v2564, %v2764
        %v2773 = vmul.f32 %v2565, %v2765
        %v2774 = vmul.f32 %v2566, %v2766
        %v2775 = vmul.f32 %v2567, %v2767
        %v2776 = vmul.f32 %v2568, %v2768
        %v2777 = vmul.f32 %v2569, %v2769
        %v2778 = vmul.f32 %v2570, %v2770
        %v2779 = vlaneseq
        %v2780 = vshrl.u32 %v2779, 7
        %v2781 = vsub.s32 3, %v2780
        %v2782 = vrot.slane %v441, %v2781
        %2783 = vmatprep.subr.mxu0 0.0
        %2784 = vmatpush1.msra.mxu0 %v1190
        %2785 = vmatprep.subr.mxu0 0.0
        %2786 = vmatpush1.msra.mxu0 %v1191
        %2787 = vmatprep.subr.mxu0 0.0
        %2788 = vmatpush1.msra.mxu0 %v1192
        %2789 = vmatprep.subr.mxu0 0.0
        %2790 = vmatpush1.msra.mxu0 %v1193
        %2791 = vmatprep.subr.mxu0 0.0
        %2792 = vmatpush1.msra.mxu0 %v1194
        %2793 = vmatprep.subr.mxu0 0.0
        %2794 = vmatpush1.msra.mxu0 %v1195
        %2795 = vmatprep.subr.mxu0 0.0
        %2796 = vmatpush1.msra.mxu0 %v1196
        %2797 = vmatprep.subr.mxu0 0.0
        %2798 = vmatpush1.msra.mxu0 %v1197
        %2799 = vmatprep.subr.mxu0 0.0
        %2800 = vmatpush1.msra.mxu0 %v1198
        %2801 = vmatprep.subr.mxu0 0.0
        %2802 = vmatpush1.msra.mxu0 %v1199
        %2803 = vmatprep.subr.mxu0 0.0
        %2804 = vmatpush1.msra.mxu0 %v1200
        %2805 = vmatprep.subr.mxu0 0.0
        %2806 = vmatpush1.msra.mxu0 %v1201
        %2807 = vmatprep.subr.mxu0 0.0
        %2808 = vmatpush1.msra.mxu0 %v1202
        %2809 = vmatprep.subr.mxu0 0.0
        %2810 = vmatpush1.msra.mxu0 %v1203
        %2811 = vmatprep.subr.mxu0 0.0
        %2812 = vmatpush1.msra.mxu0 %v1204
        %2813 = vmatprep.subr.mxu0 0.0
        %2814 = vmatpush1.msra.mxu0 %v1205
        %2815 = vmatprep.subr.mxu0 0.0
        %2816 = vmatpush1.msra.mxu0 0.0
        %2817 = vmatprep.subr.mxu0 0.0
        %2818 = vmatpush1.msra.mxu0 0.0
        %2819 = vmatprep.subr.mxu0 0.0
        %2820 = vmatpush1.msra.mxu0 0.0
        %2821 = vmatprep.subr.mxu0 0.0
        %2822 = vmatpush1.msra.mxu0 0.0
        %2823 = vmatprep.subr.mxu0 0.0
        %2824 = vmatpush1.msra.mxu0 0.0
        %2825 = vmatprep.subr.mxu0 0.0
        %2826 = vmatpush1.msra.mxu0 0.0
        %2827 = vmatprep.subr.mxu0 0.0
        %2828 = vmatpush1.msra.mxu0 0.0
        %2829 = vmatprep.subr.mxu0 0.0
        %2830 = vmatpush1.msra.mxu0 0.0
        %2831 = vmatprep.subr.mxu0 0.0
        %2832 = vmatpush1.msra.mxu0 0.0
        %2833 = vmatprep.subr.mxu0 0.0
        %2834 = vmatpush1.msra.mxu0 0.0
        %2835 = vmatprep.subr.mxu0 0.0
        %2836 = vmatpush1.msra.mxu0 0.0
        %2837 = vmatprep.subr.mxu0 0.0
        %2838 = vmatpush1.msra.mxu0 0.0
        %2839 = vmatprep.subr.mxu0 0.0
        %2840 = vmatpush1.msra.mxu0 0.0
        %2841 = vmatprep.subr.mxu0 0.0
        %2842 = vmatpush1.msra.mxu0 0.0
        %2843 = vmatprep.subr.mxu0 0.0
        %2844 = vmatpush1.msra.mxu0 0.0
        %2845 = vmatprep.subr.mxu0 0.0
        %2846 = vmatpush1.msra.mxu0 0.0
        %2847 = vmatprep.mubr.f32.mxu0 0.0
        %2848 = vmatmul.mubr.f32.gmra.mrb[0].mxu0 %v2771
        %v2849 = vpop.f32.mrb[0].mxu0
        %v2850 = vadd.f32 %v2782, %v2849
        %v2851 = vpop.f32.mrb[0].mxu0
        %2852 = vmatprep.mubr.f32.mxu0 0.0
        %2853 = vmatmul.mubr.f32.gmra.mrb[0].mxu0 %v2772
        %v2854 = vpop.f32.mrb[0].mxu0
        %v2855 = vadd.f32 %v2782, %v2854
        %v2856 = vpop.f32.mrb[0].mxu0
        %2857 = vmatprep.mubr.f32.mxu0 0.0
        %2858 = vmatmul.mubr.f32.gmra.mrb[0].mxu0 %v2773
        %v2859 = vpop.f32.mrb[0].mxu0
        %v2860 = vadd.f32 %v2782, %v2859
        %v2861 = vpop.f32.mrb[0].mxu0
        %2862 = vmatprep.mubr.f32.mxu0 0.0
        %2863 = vmatmul.mubr.f32.gmra.mrb[0].mxu0 %v2774
        %v2864 = vpop.f32.mrb[0].mxu0
        %v2865 = vadd.f32 %v2782, %v2864
        %v2866 = vpop.f32.mrb[0].mxu0
        %2867 = vmatprep.mubr.f32.mxu0 0.0
        %2868 = vmatmul.mubr.f32.gmra.mrb[0].mxu0 %v2775
        %v2869 = vpop.f32.mrb[0].mxu0
        %v2870 = vadd.f32 %v2782, %v2869
        %v2871 = vpop.f32.mrb[0].mxu0
        %2872 = vmatprep.mubr.f32.mxu0 0.0
        %2873 = vmatmul.mubr.f32.gmra.mrb[0].mxu0 %v2776
        %v2874 = vpop.f32.mrb[0].mxu0
        %v2875 = vadd.f32 %v2782, %v2874
        %v2876 = vpop.f32.mrb[0].mxu0
        %2877 = vmatprep.mubr.f32.mxu0 0.0
        %2878 = vmatmul.mubr.f32.gmra.mrb[0].mxu0 %v2777
        %v2879 = vpop.f32.mrb[0].mxu0
        %v2880 = vadd.f32 %v2782, %v2879
        %v2881 = vpop.f32.mrb[0].mxu0
        %2882 = vmatprep.mubr.f32.mxu0 0.0
        %2883 = vmatmul.mubr.f32.gmra.mrb[0].mxu0 %v2778
        %v2884 = vpop.f32.mrb[0].mxu0
        %v2885 = vadd.f32 %v2782, %v2884
        %v2886 = vpop.f32.mrb[0].mxu0
        %2887 = vdwg.mxu0
        %v2888 = vadd.f32 %v2850, %v2422
        %v2889 = vadd.f32 %v2855, %v2423
        %v2890 = vadd.f32 %v2860, %v2424
        %v2891 = vadd.f32 %v2865, %v2425
        %v2892 = vadd.f32 %v2870, %v2426
        %v2893 = vadd.f32 %v2875, %v2427
        %v2894 = vadd.f32 %v2880, %v2428
        %v2895 = vadd.f32 %v2885, %v2429
        %v2896 = vsel %vm1040, %v2888, 0.0
        %2897 = vadd.xlane.f32.xlu0 %v2896
        %v2898 = vpop.xlane.xlu0 %2897
        %v2899 = vsel %vm1040, %v2889, 0.0
        %2900 = vadd.xlane.f32.xlu0 %v2899
        %v2901 = vpop.xlane.xlu0 %2900
        %v2902 = vsel %vm1040, %v2890, 0.0
        %2903 = vadd.xlane.f32.xlu0 %v2902
        %v2904 = vpop.xlane.xlu0 %2903
        %v2905 = vsel %vm1040, %v2891, 0.0
        %2906 = vadd.xlane.f32.xlu0 %v2905
        %v2907 = vpop.xlane.xlu0 %2906
        %v2908 = vsel %vm1040, %v2892, 0.0
        %2909 = vadd.xlane.f32.xlu0 %v2908
        %v2910 = vpop.xlane.xlu0 %2909
        %v2911 = vsel %vm1040, %v2893, 0.0
        %2912 = vadd.xlane.f32.xlu0 %v2911
        %v2913 = vpop.xlane.xlu0 %2912
        %v2914 = vsel %vm1040, %v2894, 0.0
        %2915 = vadd.xlane.f32.xlu0 %v2914
        %v2916 = vpop.xlane.xlu0 %2915
        %v2917 = vsel %vm1040, %v2895, 0.0
        %2918 = vadd.xlane.f32.xlu0 %v2917
        %v2919 = vpop.xlane.xlu0 %2918
        %v2920 = vmul.f32 %v2898, %v1065
        %v2921 = vmul.f32 %v2901, %v1065
        %v2922 = vmul.f32 %v2904, %v1065
        %v2923 = vmul.f32 %v2907, %v1065
        %v2924 = vmul.f32 %v2910, %v1065
        %v2925 = vmul.f32 %v2913, %v1065
        %v2926 = vmul.f32 %v2916, %v1065
        %v2927 = vmul.f32 %v2919, %v1065
        %v2928 = vsub.f32 %v2888, %v2920
        %v2929 = vsub.f32 %v2889, %v2921
        %v2930 = vsub.f32 %v2890, %v2922
        %v2931 = vsub.f32 %v2891, %v2923
        %v2932 = vsub.f32 %v2892, %v2924
        %v2933 = vsub.f32 %v2893, %v2925
        %v2934 = vsub.f32 %v2894, %v2926
        %v2935 = vsub.f32 %v2895, %v2927
        %v2936 = vmul.f32 %v2928, %v2928
        %v2937 = vmul.f32 %v2929, %v2929
        %v2938 = vmul.f32 %v2930, %v2930
        %v2939 = vmul.f32 %v2931, %v2931
        %v2940 = vmul.f32 %v2932, %v2932
        %v2941 = vmul.f32 %v2933, %v2933
        %v2942 = vmul.f32 %v2934, %v2934
        %v2943 = vmul.f32 %v2935, %v2935
        %v2944 = vsel %vm1040, %v2936, 0.0
        %2945 = vadd.xlane.f32.xlu0 %v2944
        %v2946 = vpop.xlane.xlu0 %2945
        %v2947 = vsel %vm1040, %v2937, 0.0
        %2948 = vadd.xlane.f32.xlu0 %v2947
        %v2949 = vpop.xlane.xlu0 %2948
        %v2950 = vsel %vm1040, %v2938, 0.0
        %2951 = vadd.xlane.f32.xlu0 %v2950
        %v2952 = vpop.xlane.xlu0 %2951
        %v2953 = vsel %vm1040, %v2939, 0.0
        %2954 = vadd.xlane.f32.xlu0 %v2953
        %v2955 = vpop.xlane.xlu0 %2954
        %v2956 = vsel %vm1040, %v2940, 0.0
        %2957 = vadd.xlane.f32.xlu0 %v2956
        %v2958 = vpop.xlane.xlu0 %2957
        %v2959 = vsel %vm1040, %v2941, 0.0
        %2960 = vadd.xlane.f32.xlu0 %v2959
        %v2961 = vpop.xlane.xlu0 %2960
        %v2962 = vsel %vm1040, %v2942, 0.0
        %2963 = vadd.xlane.f32.xlu0 %v2962
        %v2964 = vpop.xlane.xlu0 %2963
        %v2965 = vsel %vm1040, %v2943, 0.0
        %2966 = vadd.xlane.f32.xlu0 %v2965
        %v2967 = vpop.xlane.xlu0 %2966
        %v2968 = vmul.f32 %v2946, %v1065
        %v2969 = vmul.f32 %v2949, %v1065
        %v2970 = vmul.f32 %v2952, %v1065
        %v2971 = vmul.f32 %v2955, %v1065
        %v2972 = vmul.f32 %v2958, %v1065
        %v2973 = vmul.f32 %v2961, %v1065
        %v2974 = vmul.f32 %v2964, %v1065
        %v2975 = vmul.f32 %v2967, %v1065
        %v2976 = vadd.f32 %v2968, 1e-05
        %v2977 = vadd.f32 %v2969, 1e-05
        %v2978 = vadd.f32 %v2970, 1e-05
        %v2979 = vadd.f32 %v2971, 1e-05
        %v2980 = vadd.f32 %v2972, 1e-05
        %v2981 = vadd.f32 %v2973, 1e-05
        %v2982 = vadd.f32 %v2974, 1e-05
        %v2983 = vadd.f32 %v2975, 1e-05
        %v2984 = vrsqrt.pop %v2976
        %v2985 = vrsqrt.pop %v2977
        %v2986 = vrsqrt.pop %v2978
        %v2987 = vrsqrt.pop %v2979
        %v2988 = vrsqrt.pop %v2980
        %v2989 = vrsqrt.pop %v2981
        %v2990 = vrsqrt.pop %v2982
        %v2991 = vrsqrt.pop %v2983
        %v2992 = vmul.f32 %v2928, %v2984
        %v2993 = vmul.f32 %v2929, %v2985
        %v2994 = vmul.f32 %v2930, %v2986
        %v2995 = vmul.f32 %v2931, %v2987
        %v2996 = vmul.f32 %v2932, %v2988
        %v2997 = vmul.f32 %v2933, %v2989
        %v2998 = vmul.f32 %v2934, %v2990
        %v2999 = vmul.f32 %v2935, %v2991
        %v3000 = vlaneseq
        %v3001 = vshrl.u32 %v3000, 7
        %v3002 = vsub.s32 4, %v3001
        %v3003 = vrot.slane %v441, %v3002
        %v3004 = vmul.f32 %v2992, %v3003
        %v3005 = vmul.f32 %v2993, %v3003
        %v3006 = vmul.f32 %v2994, %v3003
        %v3007 = vmul.f32 %v2995, %v3003
        %v3008 = vmul.f32 %v2996, %v3003
        %v3009 = vmul.f32 %v2997, %v3003
        %v3010 = vmul.f32 %v2998, %v3003
        %v3011 = vmul.f32 %v2999, %v3003
        %v3012 = vlaneseq
        %v3013 = vshrl.u32 %v3012, 7
        %v3014 = vsub.s32 5, %v3013
        %v3015 = vrot.slane %v441, %v3014
        %v3016 = vadd.f32 %v3004, %v3015
        %v3017 = vadd.f32 %v3005, %v3015
        %v3018 = vadd.f32 %v3006, %v3015
        %v3019 = vadd.f32 %v3007, %v3015
        %v3020 = vadd.f32 %v3008, %v3015
        %v3021 = vadd.f32 %v3009, %v3015
        %v3022 = vadd.f32 %v3010, %v3015
        %v3023 = vadd.f32 %v3011, %v3015
        %v3024 = vlaneseq
        %v3025 = vshrl.u32 %v3024, 7
        %v3026 = vsub.s32 6, %v3025
        %v3027 = vrot.slane %v441, %v3026
        %v3029 = vsel %vm1040, %v3016, 0
        %v3032 = vsel %vm1040, %v3017, 0
        %v3035 = vsel %vm1040, %v3018, 0
        %v3038 = vsel %vm1040, %v3019, 0
        %v3041 = vsel %vm1040, %v3020, 0
        %v3044 = vsel %vm1040, %v3021, 0
        %v3047 = vsel %vm1040, %v3022, 0
        %v3050 = vsel %vm1040, %v3023, 0
        %3052 = vmatprep.subr.mxu0 0.0
        %3053 = vmatpush1.msra.mxu0 %v1206
        %3054 = vmatprep.subr.mxu0 0.0
        %3055 = vmatpush1.msra.mxu0 %v1207
        %3056 = vmatprep.subr.mxu0 0.0
        %3057 = vmatpush1.msra.mxu0 %v1208
        %3058 = vmatprep.subr.mxu0 0.0
        %3059 = vmatpush1.msra.mxu0 %v1209
        %3060 = vmatprep.subr.mxu0 0.0
        %3061 = vmatpush1.msra.mxu0 0.0
        %3062 = vmatprep.subr.mxu0 0.0
        %3063 = vmatpush1.msra.mxu0 0.0
        %3064 = vmatprep.subr.mxu0 0.0
        %3065 = vmatpush1.msra.mxu0 0.0
        %3066 = vmatprep.subr.mxu0 0.0
        %3067 = vmatpush1.msra.mxu0 0.0
        %3068 = vmatprep.subr.mxu0 0.0
        %3069 = vmatpush1.msra.mxu0 0.0
        %3070 = vmatprep.subr.mxu0 0.0
        %3071 = vmatpush1.msra.mxu0 0.0
        %3072 = vmatprep.subr.mxu0 0.0
        %3073 = vmatpush1.msra.mxu0 0.0
        %3074 = vmatprep.subr.mxu0 0.0
        %3075 = vmatpush1.msra.mxu0 0.0
        %3076 = vmatprep.subr.mxu0 0.0
        %3077 = vmatpush1.msra.mxu0 0.0
        %3078 = vmatprep.subr.mxu0 0.0
        %3079 = vmatpush1.msra.mxu0 0.0
        %3080 = vmatprep.subr.mxu0 0.0
        %3081 = vmatpush1.msra.mxu0 0.0
        %3082 = vmatprep.subr.mxu0 0.0
        %3083 = vmatpush1.msra.mxu0 0.0
        %3084 = vmatprep.subr.mxu0 0.0
        %3085 = vmatpush1.msra.mxu0 0.0
        %3086 = vmatprep.subr.mxu0 0.0
        %3087 = vmatpush1.msra.mxu0 0.0
        %3088 = vmatprep.subr.mxu0 0.0
        %3089 = vmatpush1.msra.mxu0 0.0
        %3090 = vmatprep.subr.mxu0 0.0
        %3091 = vmatpush1.msra.mxu0 0.0
        %3092 = vmatprep.subr.mxu0 0.0
        %3093 = vmatpush1.msra.mxu0 0.0
        %3094 = vmatprep.subr.mxu0 0.0
        %3095 = vmatpush1.msra.mxu0 0.0
        %3096 = vmatprep.subr.mxu0 0.0
        %3097 = vmatpush1.msra.mxu0 0.0
        %3098 = vmatprep.subr.mxu0 0.0
        %3099 = vmatpush1.msra.mxu0 0.0
        %3100 = vmatprep.subr.mxu0 0.0
        %3101 = vmatpush1.msra.mxu0 0.0
        %3102 = vmatprep.subr.mxu0 0.0
        %3103 = vmatpush1.msra.mxu0 0.0
        %3104 = vmatprep.subr.mxu0 0.0
        %3105 = vmatpush1.msra.mxu0 0.0
        %3106 = vmatprep.subr.mxu0 0.0
        %3107 = vmatpush1.msra.mxu0 0.0
        %3108 = vmatprep.subr.mxu0 0.0
        %3109 = vmatpush1.msra.mxu0 0.0
        %3110 = vmatprep.subr.mxu0 0.0
        %3111 = vmatpush1.msra.mxu0 0.0
        %3112 = vmatprep.subr.mxu0 0.0
        %3113 = vmatpush1.msra.mxu0 0.0
        %3114 = vmatprep.subr.mxu0 0.0
        %3115 = vmatpush1.msra.mxu0 0.0
        %3116 = vmatprep.mubr.f32.mxu0 0.0
        %3117 = vmatmul.mubr.f32.gmra.mrb[0].mxu0 %v3029
        %v3118 = vpop.f32.mrb[0].mxu0
        %v3119 = vadd.f32 %v3027, %v3118
        %v3120 = vpop.f32.mrb[0].mxu0
        %3121 = vmatprep.mubr.f32.mxu0 0.0
        %3122 = vmatmul.mubr.f32.gmra.mrb[0].mxu0 %v3032
        %v3123 = vpop.f32.mrb[0].mxu0
        %v3124 = vadd.f32 %v3027, %v3123
        %v3125 = vpop.f32.mrb[0].mxu0
        %3126 = vmatprep.mubr.f32.mxu0 0.0
        %3127 = vmatmul.mubr.f32.gmra.mrb[0].mxu0 %v3035
        %v3128 = vpop.f32.mrb[0].mxu0
        %v3129 = vadd.f32 %v3027, %v3128
        %v3130 = vpop.f32.mrb[0].mxu0
        %3131 = vmatprep.mubr.f32.mxu0 0.0
        %3132 = vmatmul.mubr.f32.gmra.mrb[0].mxu0 %v3038
        %v3133 = vpop.f32.mrb[0].mxu0
        %v3134 = vadd.f32 %v3027, %v3133
        %v3135 = vpop.f32.mrb[0].mxu0
        %3136 = vmatprep.mubr.f32.mxu0 0.0
        %3137 = vmatmul.mubr.f32.gmra.mrb[0].mxu0 %v3041
        %v3138 = vpop.f32.mrb[0].mxu0
        %v3139 = vadd.f32 %v3027, %v3138
        %v3140 = vpop.f32.mrb[0].mxu0
        %3141 = vmatprep.mubr.f32.mxu0 0.0
        %3142 = vmatmul.mubr.f32.gmra.mrb[0].mxu0 %v3044
        %v3143 = vpop.f32.mrb[0].mxu0
        %v3144 = vadd.f32 %v3027, %v3143
        %v3145 = vpop.f32.mrb[0].mxu0
        %3146 = vmatprep.mubr.f32.mxu0 0.0
        %3147 = vmatmul.mubr.f32.gmra.mrb[0].mxu0 %v3047
        %v3148 = vpop.f32.mrb[0].mxu0
        %v3149 = vadd.f32 %v3027, %v3148
        %v3150 = vpop.f32.mrb[0].mxu0
        %3151 = vmatprep.mubr.f32.mxu0 0.0
        %3152 = vmatmul.mubr.f32.gmra.mrb[0].mxu0 %v3050
        %v3153 = vpop.f32.mrb[0].mxu0
        %v3154 = vadd.f32 %v3027, %v3153
        %v3155 = vpop.f32.mrb[0].mxu0
        %3156 = vdwg.mxu0
        %v3157 = vmul.f32 %v3119, 0.5
        %v3158 = vmul.f32 %v3124, 0.5
        %v3159 = vmul.f32 %v3129, 0.5
        %v3160 = vmul.f32 %v3134, 0.5
        %v3161 = vmul.f32 %v3139, 0.5
        %v3162 = vmul.f32 %v3144, 0.5
        %v3163 = vmul.f32 %v3149, 0.5
        %v3164 = vmul.f32 %v3154, 0.5
        %v3165 = vmul.f32 %v3119, 0.70710677
        %v3166 = vmul.f32 %v3124, 0.70710677
        %v3167 = vmul.f32 %v3129, 0.70710677
        %v3168 = vmul.f32 %v3134, 0.70710677
        %v3169 = vmul.f32 %v3139, 0.70710677
        %v3170 = vmul.f32 %v3144, 0.70710677
        %v3171 = vmul.f32 %v3149, 0.70710677
        %v3172 = vmul.f32 %v3154, 0.70710677
        %vm3173 = vcmp.ge.f32.partialorder %v3165, 0.0
        %vm3174 = vcmp.ge.f32.partialorder %v3166, 0.0
        %vm3175 = vcmp.ge.f32.partialorder %v3167, 0.0
        %vm3176 = vcmp.ge.f32.partialorder %v3168, 0.0
        %vm3177 = vcmp.ge.f32.partialorder %v3169, 0.0
        %vm3178 = vcmp.ge.f32.partialorder %v3170, 0.0
        %vm3179 = vcmp.ge.f32.partialorder %v3171, 0.0
        %vm3180 = vcmp.ge.f32.partialorder %v3172, 0.0
        %v3181 = vsel %vm3173, 1.0, -1.0
        %v3182 = vsel %vm3174, 1.0, -1.0
        %v3183 = vsel %vm3175, 1.0, -1.0
        %v3184 = vsel %vm3176, 1.0, -1.0
        %v3185 = vsel %vm3177, 1.0, -1.0
        %v3186 = vsel %vm3178, 1.0, -1.0
        %v3187 = vsel %vm3179, 1.0, -1.0
        %v3188 = vsel %vm3180, 1.0, -1.0
        %v3189 = vand.u32 2147483647, %v3165
        %v3190 = vand.u32 2147483647, %v3166
        %v3191 = vand.u32 2147483647, %v3167
        %v3192 = vand.u32 2147483647, %v3168
        %v3193 = vand.u32 2147483647, %v3169
        %v3194 = vand.u32 2147483647, %v3170
        %v3195 = vand.u32 2147483647, %v3171
        %v3196 = vand.u32 2147483647, %v3172
        %v3197 = vmul.f32 %v3189, 0.3275911
        %v3198 = vmul.f32 %v3190, 0.3275911
        %v3199 = vmul.f32 %v3191, 0.3275911
        %v3200 = vmul.f32 %v3192, 0.3275911
        %v3201 = vmul.f32 %v3193, 0.3275911
        %v3202 = vmul.f32 %v3194, 0.3275911
        %v3203 = vmul.f32 %v3195, 0.3275911
        %v3204 = vmul.f32 %v3196, 0.3275911
        %v3205 = vadd.f32 %v3197, 1.0
        %v3206 = vadd.f32 %v3198, 1.0
        %v3207 = vadd.f32 %v3199, 1.0
        %v3208 = vadd.f32 %v3200, 1.0
        %v3209 = vadd.f32 %v3201, 1.0
        %v3210 = vadd.f32 %v3202, 1.0
        %v3211 = vadd.f32 %v3203, 1.0
        %v3212 = vadd.f32 %v3204, 1.0
        %v3213 = vrcp.pop %v3205
        %v3214 = vmul.f32 1.0, %v3213
        %v3215 = vrcp.pop %v3206
        %v3216 = vmul.f32 1.0, %v3215
        %v3217 = vrcp.pop %v3207
        %v3218 = vmul.f32 1.0, %v3217
        %v3219 = vrcp.pop %v3208
        %v3220 = vmul.f32 1.0, %v3219
        %v3221 = vrcp.pop %v3209
        %v3222 = vmul.f32 1.0, %v3221
        %v3223 = vrcp.pop %v3210
        %v3224 = vmul.f32 1.0, %v3223
        %v3225 = vrcp.pop %v3211
        %v3226 = vmul.f32 1.0, %v3225
        %v3227 = vrcp.pop %v3212
        %v3228 = vmul.f32 1.0, %v3227
        %v3229 = vmul.f32 %v3214, 1.0614054
        %v3230 = vmul.f32 %v3216, 1.0614054
        %v3231 = vmul.f32 %v3218, 1.0614054
        %v3232 = vmul.f32 %v3220, 1.0614054
        %v3233 = vmul.f32 %v3222, 1.0614054
        %v3234 = vmul.f32 %v3224, 1.0614054
        %v3235 = vmul.f32 %v3226, 1.0614054
        %v3236 = vmul.f32 %v3228, 1.0614054
        %v3237 = vadd.f32 %v3229, -1.4531521
        %v3238 = vadd.f32 %v3230, -1.4531521
        %v3239 = vadd.f32 %v3231, -1.4531521
        %v3240 = vadd.f32 %v3232, -1.4531521
        %v3241 = vadd.f32 %v3233, -1.4531521
        %v3242 = vadd.f32 %v3234, -1.4531521
        %v3243 = vadd.f32 %v3235, -1.4531521
        %v3244 = vadd.f32 %v3236, -1.4531521
        %v3245 = vmul.f32 %v3237, %v3214
        %v3246 = vmul.f32 %v3238, %v3216
        %v3247 = vmul.f32 %v3239, %v3218
        %v3248 = vmul.f32 %v3240, %v3220
        %v3249 = vmul.f32 %v3241, %v3222
        %v3250 = vmul.f32 %v3242, %v3224
        %v3251 = vmul.f32 %v3243, %v3226
        %v3252 = vmul.f32 %v3244, %v3228
        %v3253 = vadd.f32 %v3245, 1.4214138
        %v3254 = vadd.f32 %v3246, 1.4214138
        %v3255 = vadd.f32 %v3247, 1.4214138
        %v3256 = vadd.f32 %v3248, 1.4214138
        %v3257 = vadd.f32 %v3249, 1.4214138
        %v3258 = vadd.f32 %v3250, 1.4214138
        %v3259 = vadd.f32 %v3251, 1.4214138
        %v3260 = vadd.f32 %v3252, 1.4214138
        %v3261 = vmul.f32 %v3253, %v3214
        %v3262 = vmul.f32 %v3254, %v3216
        %v3263 = vmul.f32 %v3255, %v3218
        %v3264 = vmul.f32 %v3256, %v3220
        %v3265 = vmul.f32 %v3257, %v3222
        %v3266 = vmul.f32 %v3258, %v3224
        %v3267 = vmul.f32 %v3259, %v3226
        %v3268 = vmul.f32 %v3260, %v3228
        %v3269 = vadd.f32 %v3261, -0.28449672
        %v3270 = vadd.f32 %v3262, -0.28449672
        %v3271 = vadd.f32 %v3263, -0.28449672
        %v3272 = vadd.f32 %v3264, -0.28449672
        %v3273 = vadd.f32 %v3265, -0.28449672
        %v3274 = vadd.f32 %v3266, -0.28449672
        %v3275 = vadd.f32 %v3267, -0.28449672
        %v3276 = vadd.f32 %v3268, -0.28449672
        %v3277 = vmul.f32 %v3269, %v3214
        %v3278 = vmul.f32 %v3270, %v3216
        %v3279 = vmul.f32 %v3271, %v3218
        %v3280 = vmul.f32 %v3272, %v3220
        %v3281 = vmul.f32 %v3273, %v3222
        %v3282 = vmul.f32 %v3274, %v3224
        %v3283 = vmul.f32 %v3275, %v3226
        %v3284 = vmul.f32 %v3276, %v3228
        %v3285 = vadd.f32 %v3277, 0.2548296
        %v3286 = vadd.f32 %v3278, 0.2548296
        %v3287 = vadd.f32 %v3279, 0.2548296
        %v3288 = vadd.f32 %v3280, 0.2548296
        %v3289 = vadd.f32 %v3281, 0.2548296
        %v3290 = vadd.f32 %v3282, 0.2548296
        %v3291 = vadd.f32 %v3283, 0.2548296
        %v3292 = vadd.f32 %v3284, 0.2548296
        %v3293 = vmul.f32 %v3285, %v3214
        %v3294 = vmul.f32 %v3286, %v3216
        %v3295 = vmul.f32 %v3287, %v3218
        %v3296 = vmul.f32 %v3288, %v3220
        %v3297 = vmul.f32 %v3289, %v3222
        %v3298 = vmul.f32 %v3290, %v3224
        %v3299 = vmul.f32 %v3291, %v3226
        %v3300 = vmul.f32 %v3292, %v3228
        %v3301 = vsub.f32 0.0, %v3189
        %v3302 = vsub.f32 0.0, %v3190
        %v3303 = vsub.f32 0.0, %v3191
        %v3304 = vsub.f32 0.0, %v3192
        %v3305 = vsub.f32 0.0, %v3193
        %v3306 = vsub.f32 0.0, %v3194
        %v3307 = vsub.f32 0.0, %v3195
        %v3308 = vsub.f32 0.0, %v3196
        %v3309 = vmul.f32 %v3301, %v3189
        %v3310 = vmul.f32 %v3302, %v3190
        %v3311 = vmul.f32 %v3303, %v3191
        %v3312 = vmul.f32 %v3304, %v3192
        %v3313 = vmul.f32 %v3305, %v3193
        %v3314 = vmul.f32 %v3306, %v3194
        %v3315 = vmul.f32 %v3307, %v3195
        %v3316 = vmul.f32 %v3308, %v3196
        %v3317 = vmul.f32 %v3309, 1.442695
        %v3318 = vpow.pop %v3317
        %v3319 = vmul.f32 %v3310, 1.442695
        %v3320 = vpow.pop %v3319
        %v3321 = vmul.f32 %v3311, 1.442695
        %v3322 = vpow.pop %v3321
        %v3323 = vmul.f32 %v3312, 1.442695
        %v3324 = vpow.pop %v3323
        %v3325 = vmul.f32 %v3313, 1.442695
        %v3326 = vpow.pop %v3325
        %v3327 = vmul.f32 %v3314, 1.442695
        %v3328 = vpow.pop %v3327
        %v3329 = vmul.f32 %v3315, 1.442695
        %v3330 = vpow.pop %v3329
        %v3331 = vmul.f32 %v3316, 1.442695
        %v3332 = vpow.pop %v3331
        %v3333 = vmul.f32 %v3293, %v3318
        %v3334 = vmul.f32 %v3294, %v3320
        %v3335 = vmul.f32 %v3295, %v3322
        %v3336 = vmul.f32 %v3296, %v3324
        %v3337 = vmul.f32 %v3297, %v3326
        %v3338 = vmul.f32 %v3298, %v3328
        %v3339 = vmul.f32 %v3299, %v3330
        %v3340 = vmul.f32 %v3300, %v3332
        %v3341 = vsub.f32 1.0, %v3333
        %v3342 = vsub.f32 1.0, %v3334
        %v3343 = vsub.f32 1.0, %v3335
        %v3344 = vsub.f32 1.0, %v3336
        %v3345 = vsub.f32 1.0, %v3337
        %v3346 = vsub.f32 1.0, %v3338
        %v3347 = vsub.f32 1.0, %v3339
        %v3348 = vsub.f32 1.0, %v3340
        %v3349 = vmul.f32 %v3181, %v3341
        %v3350 = vmul.f32 %v3182, %v3342
        %v3351 = vmul.f32 %v3183, %v3343
        %v3352 = vmul.f32 %v3184, %v3344
        %v3353 = vmul.f32 %v3185, %v3345
        %v3354 = vmul.f32 %v3186, %v3346
        %v3355 = vmul.f32 %v3187, %v3347
        %v3356 = vmul.f32 %v3188, %v3348
        %v3357 = vadd.f32 %v3349, 1.0
        %v3358 = vadd.f32 %v3350, 1.0
        %v3359 = vadd.f32 %v3351, 1.0
        %v3360 = vadd.f32 %v3352, 1.0
        %v3361 = vadd.f32 %v3353, 1.0
        %v3362 = vadd.f32 %v3354, 1.0
        %v3363 = vadd.f32 %v3355, 1.0
        %v3364 = vadd.f32 %v3356, 1.0
        %v3365 = vmul.f32 %v3157, %v3357
        %v3366 = vmul.f32 %v3158, %v3358
        %v3367 = vmul.f32 %v3159, %v3359
        %v3368 = vmul.f32 %v3160, %v3360
        %v3369 = vmul.f32 %v3161, %v3361
        %v3370 = vmul.f32 %v3162, %v3362
        %v3371 = vmul.f32 %v3163, %v3363
        %v3372 = vmul.f32 %v3164, %v3364
        %v3373 = vlaneseq
        %v3374 = vshrl.u32 %v3373, 7
        %v3375 = vsub.s32 7, %v3374
        %v3376 = vrot.slane %v441, %v3375
        %3377 = vmatprep.subr.mxu0 0.0
        %3378 = vmatpush1.msra.mxu0 %v1210
        %3379 = vmatprep.subr.mxu0 0.0
        %3380 = vmatpush1.msra.mxu0 %v1211
        %3381 = vmatprep.subr.mxu0 0.0
        %3382 = vmatpush1.msra.mxu0 %v1212
        %3383 = vmatprep.subr.mxu0 0.0
        %3384 = vmatpush1.msra.mxu0 %v1213
        %3385 = vmatprep.subr.mxu0 0.0
        %3386 = vmatpush1.msra.mxu0 %v1214
        %3387 = vmatprep.subr.mxu0 0.0
        %3388 = vmatpush1.msra.mxu0 %v1215
        %3389 = vmatprep.subr.mxu0 0.0
        %3390 = vmatpush1.msra.mxu0 %v1216
        %3391 = vmatprep.subr.mxu0 0.0
        %3392 = vmatpush1.msra.mxu0 %v1217
        %3393 = vmatprep.subr.mxu0 0.0
        %3394 = vmatpush1.msra.mxu0 %v1218
        %3395 = vmatprep.subr.mxu0 0.0
        %3396 = vmatpush1.msra.mxu0 %v1219
        %3397 = vmatprep.subr.mxu0 0.0
        %3398 = vmatpush1.msra.mxu0 %v1220
        %3399 = vmatprep.subr.mxu0 0.0
        %3400 = vmatpush1.msra.mxu0 %v1221
        %3401 = vmatprep.subr.mxu0 0.0
        %3402 = vmatpush1.msra.mxu0 %v1222
        %3403 = vmatprep.subr.mxu0 0.0
        %3404 = vmatpush1.msra.mxu0 %v1223
        %3405 = vmatprep.subr.mxu0 0.0
        %3406 = vmatpush1.msra.mxu0 %v1224
        %3407 = vmatprep.subr.mxu0 0.0
        %3408 = vmatpush1.msra.mxu0 %v1225
        %3409 = vmatprep.subr.mxu0 0.0
        %3410 = vmatpush1.msra.mxu0 0.0
        %3411 = vmatprep.subr.mxu0 0.0
        %3412 = vmatpush1.msra.mxu0 0.0
        %3413 = vmatprep.subr.mxu0 0.0
        %3414 = vmatpush1.msra.mxu0 0.0
        %3415 = vmatprep.subr.mxu0 0.0
        %3416 = vmatpush1.msra.mxu0 0.0
        %3417 = vmatprep.subr.mxu0 0.0
        %3418 = vmatpush1.msra.mxu0 0.0
        %3419 = vmatprep.subr.mxu0 0.0
        %3420 = vmatpush1.msra.mxu0 0.0
        %3421 = vmatprep.subr.mxu0 0.0
        %3422 = vmatpush1.msra.mxu0 0.0
        %3423 = vmatprep.subr.mxu0 0.0
        %3424 = vmatpush1.msra.mxu0 0.0
        %3425 = vmatprep.subr.mxu0 0.0
        %3426 = vmatpush1.msra.mxu0 0.0
        %3427 = vmatprep.subr.mxu0 0.0
        %3428 = vmatpush1.msra.mxu0 0.0
        %3429 = vmatprep.subr.mxu0 0.0
        %3430 = vmatpush1.msra.mxu0 0.0
        %3431 = vmatprep.subr.mxu0 0.0
        %3432 = vmatpush1.msra.mxu0 0.0
        %3433 = vmatprep.subr.mxu0 0.0
        %3434 = vmatpush1.msra.mxu0 0.0
        %3435 = vmatprep.subr.mxu0 0.0
        %3436 = vmatpush1.msra.mxu0 0.0
        %3437 = vmatprep.subr.mxu0 0.0
        %3438 = vmatpush1.msra.mxu0 0.0
        %3439 = vmatprep.subr.mxu0 0.0
        %3440 = vmatpush1.msra.mxu0 0.0
        %3441 = vmatprep.mubr.f32.mxu0 0.0
        %3442 = vmatmul.mubr.f32.gmra.mrb[0].mxu0 %v3365
        %v3443 = vpop.f32.mrb[0].mxu0
        %v3444 = vadd.f32 %v3376, %v3443
        %v3445 = vpop.f32.mrb[0].mxu0
        %3446 = vmatprep.mubr.f32.mxu0 0.0
        %3447 = vmatmul.mubr.f32.gmra.mrb[0].mxu0 %v3366
        %v3448 = vpop.f32.mrb[0].mxu0
        %v3449 = vadd.f32 %v3376, %v3448
        %v3450 = vpop.f32.mrb[0].mxu0
        %3451 = vmatprep.mubr.f32.mxu0 0.0
        %3452 = vmatmul.mubr.f32.gmra.mrb[0].mxu0 %v3367
        %v3453 = vpop.f32.mrb[0].mxu0
        %v3454 = vadd.f32 %v3376, %v3453
        %v3455 = vpop.f32.mrb[0].mxu0
        %3456 = vmatprep.mubr.f32.mxu0 0.0
        %3457 = vmatmul.mubr.f32.gmra.mrb[0].mxu0 %v3368
        %v3458 = vpop.f32.mrb[0].mxu0
        %v3459 = vadd.f32 %v3376, %v3458
        %v3460 = vpop.f32.mrb[0].mxu0
        %3461 = vmatprep.mubr.f32.mxu0 0.0
        %3462 = vmatmul.mubr.f32.gmra.mrb[0].mxu0 %v3369
        %v3463 = vpop.f32.mrb[0].mxu0
        %v3464 = vadd.f32 %v3376, %v3463
        %v3465 = vpop.f32.mrb[0].mxu0
        %3466 = vmatprep.mubr.f32.mxu0 0.0
        %3467 = vmatmul.mubr.f32.gmra.mrb[0].mxu0 %v3370
        %v3468 = vpop.f32.mrb[0].mxu0
        %v3469 = vadd.f32 %v3376, %v3468
        %v3470 = vpop.f32.mrb[0].mxu0
        %3471 = vmatprep.mubr.f32.mxu0 0.0
        %3472 = vmatmul.mubr.f32.gmra.mrb[0].mxu0 %v3371
        %v3473 = vpop.f32.mrb[0].mxu0
        %v3474 = vadd.f32 %v3376, %v3473
        %v3475 = vpop.f32.mrb[0].mxu0
        %3476 = vmatprep.mubr.f32.mxu0 0.0
        %3477 = vmatmul.mubr.f32.gmra.mrb[0].mxu0 %v3372
        %v3478 = vpop.f32.mrb[0].mxu0
        %v3479 = vadd.f32 %v3376, %v3478
        %v3480 = vpop.f32.mrb[0].mxu0
        %3481 = vdwg.mxu0
        %v3482 = vadd.f32 %v3444, %v3016
        %v3483 = vadd.f32 %v3449, %v3017
        %v3484 = vadd.f32 %v3454, %v3018
        %v3485 = vadd.f32 %v3459, %v3019
        %v3486 = vadd.f32 %v3464, %v3020
        %v3487 = vadd.f32 %v3469, %v3021
        %v3488 = vadd.f32 %v3474, %v3022
        %v3489 = vadd.f32 %v3479, %v3023
        %3490 = vst.msk [vmem:[%s433] sm:$0xff] %vm1040, %v3482
        %3491 = vst.msk [vmem:[%s433 + $0x8] sm:$0xff] %vm1040, %v3483
        %3492 = vst.msk [vmem:[%s433 + $0x10] sm:$0xff] %vm1040, %v3484
        %3493 = vst.msk [vmem:[%s433 + $0x18] sm:$0xff] %vm1040, %v3485
        %3494 = vst.msk [vmem:[%s433 + $0x20] sm:$0xff] %vm1040, %v3486
        %3495 = vst.msk [vmem:[%s433 + $0x28] sm:$0xff] %vm1040, %v3487
        %3496 = vst.msk [vmem:[%s433 + $0x30] sm:$0xff] %vm1040, %v3488
        %3497 = vst.msk [vmem:[%s433 + $0x38] sm:$0xff] %vm1040, %v3489
        %s3498 = sand.u32 %s313, 1
        %s3499 = scalar_lea.sflag [#allocation3], %s3498
        %s3500 = sand.u32 %s313, 1
        %s3501 = smul.addr %s3500, 64
        %s3502 = scalar_lea.vmem [#allocation2], %s3501
        // Predicated region
        $region73: #{attention_block_forward.1} parent=71 // pred_check
          %p3503 = pneg %p323
        $region74: #{attention_block_forward.1} parent=71 // pred_check_branch
          %3505 = sbr.rel (%p3503) target = $region76
        $region75: #{attention_block_forward.1} parent=71 // pred_region
          %s3507 = ssub.s32 1024, 1024
          %3508 = vsyncadd %s3499, %s3507
          %s3509 = smul.addr %s27, 8
          %s3510 = smul.addr %s3509, 128
          %s3511 = scalar_lea.hbm %s13, %s3510
          %s3512 = sshll.u32 %s3502, 4
          %s3513 = int_to_ptr.vmem [resolvable:$true] %s3512
          %3518 = dma.vmem_to_hbm [thread:$0]  %s3513, 1024, %s3511, %s3499, 128, 128, 8
        $region76: #{attention_block_forward.1} parent=71 // pred_fallthru
          _
      $region72: #{attention_block_forward.1} parent=5 // pred_fallthru
        _
      %p3519 = scmp.le.s32.totalorder 2, %s22
      // Predicated region
      $region77: #{attention_block_forward.1} parent=5 // pred_check
        %p3520 = pneg %p3519
      $region78: #{attention_block_forward.1} parent=5 // pred_check_branch
        %3522 = sbr.rel (%p3520) target = $region80
      $region79: #{attention_block_forward.1} parent=5 // pred_region
        %s3523 = ssub.s32 %s22, 2
        // Predicated region
        $region81: #{attention_block_forward.1} parent=79 // pred_check
          %p3524 = pneg %p329
        $region82: #{attention_block_forward.1} parent=79 // pred_check_branch
          %3526 = sbr.rel (%p3524) target = $region84
        $region83: #{attention_block_forward.1} parent=79 // pred_region
          %s3527 = sand.u32 %s314, 1
          %s3528 = scalar_lea.sflag [#allocation3], %s3527
          %s3529 = sand.u32 %s314, 1
          %s3530 = smul.addr %s3529, 64
          %s3531 = scalar_lea.vmem [#allocation2], %s3530
          %3532 = dma.done %s3528, 1024
        $region84: #{attention_block_forward.1} parent=79 // pred_fallthru
          _
      $region80: #{attention_block_forward.1} parent=5 // pred_fallthru
        _
    $region6: #{attention_block_forward.1} parent=1 // loop_footer
      %s26 = sadd.s32 1, %s22
    $region7: #{attention_block_forward.1} parent=1 // loop_footer_branch
      %21 = sbr.rel target = $region3
    $region8: #{attention_block_forward.1} parent=1 // loop_exit
      _
    %3533 = vsyncpa [#allocation3], 1
    %s3534 = scalar_lea.sflag [#allocation3], 1
    %3535 = vsyncpa %s3534, 1

</llo_original>
